<compile_context>
chip_gen: v7x
topology: tpu7x:2x2x1
jax: 0.10.0
libtpu: 0.0.40
codegen_flags: <defaults>
</compile_context>

<pallas_src>
import jax
import jax.numpy as jnp
from jax.experimental import pallas as pl
from jax.experimental.pallas import tpu as pltpu


OUTDIM = 36
C_IN, H, W = 3, 32, 32
C_OUT = 16
HP, WP = H // 2, W // 2          # 16, 16 after 2x2 pool
K_IM2COL = C_IN * 9              # 27
K_PAD = 32                       # pad K to a clean sublane multiple
N_PIX = HP * WP                  # 256 pooled pixels
HIDDEN = 128
FLAT = C_OUT * N_PIX             # 4096
FC2_PAD = 128                    # fc2 output lanes padded 36 -> 128


# ------------------------------ fused kernel ----------------------------------


def policy_kernel(patches_ref, wc_ref, bc_ref, w1_ref, b1_ref, w2_ref, b2_ref,
                  o_ref, flat_ref):
    B = o_ref.shape[0]

    # conv1 for the whole batch and all 4 pool positions as ONE MXU dot:
    # (16, 32) @ (32, B*4*256) -> (16, B*4*256), f32 accumulation.
    conv = jnp.dot(wc_ref[...], patches_ref[...],
                   preferred_element_type=jnp.float32)
    bc = bc_ref[...]                                        # (16, 1) f32

    for b in range(B):
        base = b * 4 * N_PIX
        # 2x2 max-pool == elementwise running max over the four 256-lane
        # pool-position blocks (no cross-lane shuffles).
        pooled = conv[:, base:base + N_PIX]
        for j in range(1, 4):
            pooled = jnp.maximum(
                pooled, conv[:, base + j * N_PIX:base + (j + 1) * N_PIX])
        # shared bias + ReLU once, after the max (both commute with max).
        pooled = jnp.maximum(pooled + bc, 0.0)              # (16, 256) f32
        # channel-major flatten (PyTorch .view order) into the (B, 4096)
        # VMEM scratch: 16 static, lane-aligned single-sublane stores.
        for c in range(C_OUT):
            flat_ref[pl.ds(b, 1), pl.ds(c * N_PIX, N_PIX)] = pooled[c:c + 1, :]

    # fc1: one K=4096 contraction for the whole batch, + bias + ReLU.
    flat_bf = flat_ref[...].astype(jnp.bfloat16)            # (B, 4096)
    h = jnp.dot(flat_bf, w1_ref[...], preferred_element_type=jnp.float32)
    h = jnp.maximum(h + b1_ref[...], 0.0)                   # (B, 128) f32

    # fc2 (weights zero-padded to 128 lanes -> dense lane-aligned store).
    o_ref[...] = (jnp.dot(h, w2_ref[...], preferred_element_type=jnp.float32)
                  + b2_ref[...])


# ------------------------------ wrappers ---------------------------------------


def _build_patches(x):
    """x: (B, 3, 32, 32) -> (32, B*4*256) bf16 im2col slab.

    patches[ci*9 + dy*3 + dx, b*1024 + (jy*2+jx)*256 + yp*16 + xq]
        = pad(x)[b, ci, 2*yp + jy + dy, 2*xq + jx + dx]
    (rows 27..31 are zero padding; matching zero columns are added to wc).
    """
    x = x.astype(jnp.float32)
    B = x.shape[0]
    xp = jnp.pad(x, ((0, 0), (0, 0), (1, 1), (1, 1)))        # (B, 3, 34, 34)
    shards = [xp[:, :, dy:dy + H, dx:dx + W]
              for dy in range(3) for dx in range(3)]         # 9 x (B, 3, 32, 32)
    p = jnp.stack(shards, axis=2)                            # (B, 3, 9, 32, 32)
    p = p.reshape(B, K_IM2COL, HP, 2, WP, 2)                 # (B, K, yp, jy, xq, jx)
    p = p.transpose(1, 0, 3, 5, 2, 4)                        # (K, B, jy, jx, yp, xq)
    p = p.reshape(K_IM2COL, B * 4 * N_PIX)
    p = jnp.pad(p, ((0, K_PAD - K_IM2COL), (0, 0)))          # (32, B*1024)
    return p.astype(jnp.bfloat16)


def prepare_params(conv_w, conv_b, fc1_w, fc1_b, fc2_w, fc2_b, outdim=OUTDIM):
    """Rearrange PyTorch-layout weights into kernel-friendly layouts."""
    wc = jnp.pad(conv_w.reshape(C_OUT, K_IM2COL),
                 ((0, 0), (0, K_PAD - K_IM2COL))).astype(jnp.bfloat16)  # (16, 32)
    bc = conv_b.reshape(C_OUT, 1).astype(jnp.float32)                   # (16, 1)
    w1 = fc1_w.T.astype(jnp.bfloat16)                                   # (4096, 128)
    b1 = fc1_b.reshape(1, HIDDEN).astype(jnp.float32)                   # (1, 128)
    w2p = jnp.zeros((HIDDEN, FC2_PAD), jnp.float32).at[:, :outdim].set(fc2_w.T)
    b2p = jnp.zeros((1, FC2_PAD), jnp.float32).at[0, :outdim].set(fc2_b)
    return dict(wc=wc, bc=bc, w1=w1, b1=b1, w2p=w2p, b2p=b2p)


@jax.jit
def policy_network_forward(x, params):
    B = x.shape[0]
    patches = _build_patches(x)                              # (32, B*1024) bf16

    out = pl.pallas_call(
        policy_kernel,
        out_shape=jax.ShapeDtypeStruct((B, FC2_PAD), jnp.float32),
        scratch_shapes=[pltpu.VMEM((B, FLAT), jnp.float32)],
    )(patches, params["wc"], params["bc"], params["w1"], params["b1"],
      params["w2p"], params["b2p"])

    return out[:, :OUTDIM]                                   # (B, 36)


# --------------------------- pure-JAX reference ---------------------------------


def _ref_forward(x, conv_w, conv_b, fc1_w, fc1_b, fc2_w, fc2_b):
    y = jax.lax.conv_general_dilated(
        x, conv_w, window_strides=(1, 1), padding=((1, 1), (1, 1)),
        dimension_numbers=("NCHW", "OIHW", "NCHW"))
    y = jnp.maximum(y + conv_b[None, :, None, None], 0.0)
    B, C, Hh, Ww = y.shape
    y = y.reshape(B, C, Hh // 2, 2, Ww // 2, 2).max(axis=(3, 5))
    y = y.reshape(B, -1)
    y = jnp.maximum(y @ fc1_w.T + fc1_b, 0.0)
    return y @ fc2_w.T + fc2_b


# ------------------------------------ main ---------------------------------------


if __name__ == "__main__":
    B = 2
    key = jax.random.PRNGKey(0)
    kx, k1, k2, k3, k4, k5, k6 = jax.random.split(key, 7)

    x = jax.random.normal(kx, (B, C_IN, H, W), jnp.float32)

    # PyTorch-layout parameters
    conv_w = 0.1 * jax.random.normal(k1, (C_OUT, C_IN, 3, 3), jnp.float32)
    conv_b = 0.1 * jax.random.normal(k2, (C_OUT,), jnp.float32)
    fc1_w = 0.02 * jax.random.normal(k3, (HIDDEN, FLAT), jnp.float32)
    fc1_b = 0.02 * jax.random.normal(k4, (HIDDEN,), jnp.float32)
    fc2_w = 0.05 * jax.random.normal(k5, (OUTDIM, HIDDEN), jnp.float32)
    fc2_b = 0.05 * jax.random.normal(k6, (OUTDIM,), jnp.float32)

    params = prepare_params(conv_w, conv_b, fc1_w, fc1_b, fc2_w, fc2_b)

    out = policy_network_forward(x, params)
    out = jax.block_until_ready(out)

    ref = _ref_forward(x, conv_w, conv_b, fc1_w, fc1_b, fc2_w, fc2_b)
    assert out.shape == (B, OUTDIM)
    err = float(jnp.max(jnp.abs(out - ref)))
    assert jnp.allclose(out, ref, atol=2e-2, rtol=2e-2), \
        f"mismatch vs reference (max abs err {err})"

    print("KERNEL_OK")
</pallas_src>

<mosaic_0001>
module attributes {stable_mosaic.version = 11 : i64} {
  func.func @policy_kernel(%arg0: memref<32x2048xbf16, #tpu.memory_space<vmem>>, %arg1: memref<16x32xbf16, #tpu.memory_space<vmem>>, %arg2: memref<16x1xf32, #tpu.memory_space<vmem>>, %arg3: memref<4096x128xbf16, #tpu.memory_space<vmem>>, %arg4: memref<1x128xf32, #tpu.memory_space<vmem>>, %arg5: memref<128x128xf32, #tpu.memory_space<vmem>>, %arg6: memref<1x128xf32, #tpu.memory_space<vmem>>, %arg7: memref<2x128xf32, #tpu.memory_space<vmem>>, %arg8: memref<2x4096xf32, #tpu.memory_space<vmem>>) attributes {dimension_semantics = [], scalar_prefetch = 0 : i64, scratch_operands = 1 : i64, tpu.core_type = #tpu.core_type<tc>} {
    %c0 = arith.constant 0 : index
    %c0_0 = arith.constant 0 : index
    %0 = vector.load %arg1[%c0, %c0_0] : memref<16x32xbf16, #tpu.memory_space<vmem>>, vector<16x32xbf16>
    %c0_1 = arith.constant 0 : index
    %c0_2 = arith.constant 0 : index
    %1 = vector.load %arg0[%c0_1, %c0_2] : memref<32x2048xbf16, #tpu.memory_space<vmem>>, vector<32x2048xbf16>
    %cst = arith.constant dense<0.000000e+00> : vector<16x2048xf32>
    %2 = tpu.matmul %0, %1, %cst {dimension_numbers = #tpu.dot_dimension_numbers<[1], [0], [0], [1], [0, 0, 1, 1], [], []>} : vector<16x32xbf16>, vector<32x2048xbf16>, vector<16x2048xf32> -> vector<16x2048xf32>
    %c0_3 = arith.constant 0 : index
    %c0_4 = arith.constant 0 : index
    %3 = vector.load %arg2[%c0_3, %c0_4] : memref<16x1xf32, #tpu.memory_space<vmem>>, vector<16x1xf32>
    %4 = vector.extract_strided_slice %2 {offsets = [0, 0], sizes = [16, 256], strides = [1, 1]} : vector<16x2048xf32> to vector<16x256xf32>
    %5 = vector.extract_strided_slice %2 {offsets = [0, 256], sizes = [16, 256], strides = [1, 1]} : vector<16x2048xf32> to vector<16x256xf32>
    %6 = arith.maximumf %4, %5 : vector<16x256xf32>
    %7 = vector.extract_strided_slice %2 {offsets = [0, 512], sizes = [16, 256], strides = [1, 1]} : vector<16x2048xf32> to vector<16x256xf32>
    %8 = arith.maximumf %6, %7 : vector<16x256xf32>
    %9 = vector.extract_strided_slice %2 {offsets = [0, 768], sizes = [16, 256], strides = [1, 1]} : vector<16x2048xf32> to vector<16x256xf32>
    %10 = arith.maximumf %8, %9 : vector<16x256xf32>
    %11 = vector.broadcast %3 : vector<16x1xf32> to vector<16x256xf32>
    %12 = arith.addf %10, %11 : vector<16x256xf32>
    %cst_5 = arith.constant 0.000000e+00 : f32
    %13 = vector.broadcast %cst_5 : f32 to vector<16x256xf32>
    %14 = arith.maximumf %12, %13 : vector<16x256xf32>
    %15 = vector.extract_strided_slice %14 {offsets = [0, 0], sizes = [1, 256], strides = [1, 1]} : vector<16x256xf32> to vector<1x256xf32>
    %c0_6 = arith.constant 0 : index
    %c0_7 = arith.constant 0 : index
    %16 = vector.load %arg8[%c0_6, %c0_7] : memref<2x4096xf32, #tpu.memory_space<vmem>>, vector<1x256xf32>
    tpu.vector_store %arg8[%c0_6, %c0_7], %15 {strides = array<i32>} : memref<2x4096xf32, #tpu.memory_space<vmem>>, vector<1x256xf32>,
    %17 = vector.extract_strided_slice %14 {offsets = [1, 0], sizes = [1, 256], strides = [1, 1]} : vector<16x256xf32> to vector<1x256xf32>
    %c0_8 = arith.constant 0 : index
    %c256 = arith.constant 256 : index
    %18 = vector.load %arg8[%c0_8, %c256] : memref<2x4096xf32, #tpu.memory_space<vmem>>, vector<1x256xf32>
    tpu.vector_store %arg8[%c0_8, %c256], %17 {strides = array<i32>} : memref<2x4096xf32, #tpu.memory_space<vmem>>, vector<1x256xf32>,
    %19 = vector.extract_strided_slice %14 {offsets = [2, 0], sizes = [1, 256], strides = [1, 1]} : vector<16x256xf32> to vector<1x256xf32>
    %c0_9 = arith.constant 0 : index
    %c512 = arith.constant 512 : index
    %20 = vector.load %arg8[%c0_9, %c512] : memref<2x4096xf32, #tpu.memory_space<vmem>>, vector<1x256xf32>
    tpu.vector_store %arg8[%c0_9, %c512], %19 {strides = array<i32>} : memref<2x4096xf32, #tpu.memory_space<vmem>>, vector<1x256xf32>,
    %21 = vector.extract_strided_slice %14 {offsets = [3, 0], sizes = [1, 256], strides = [1, 1]} : vector<16x256xf32> to vector<1x256xf32>
    %c0_10 = arith.constant 0 : index
    %c768 = arith.constant 768 : index
    %22 = vector.load %arg8[%c0_10, %c768] : memref<2x4096xf32, #tpu.memory_space<vmem>>, vector<1x256xf32>
    tpu.vector_store %arg8[%c0_10, %c768], %21 {strides = array<i32>} : memref<2x4096xf32, #tpu.memory_space<vmem>>, vector<1x256xf32>,
    %23 = vector.extract_strided_slice %14 {offsets = [4, 0], sizes = [1, 256], strides = [1, 1]} : vector<16x256xf32> to vector<1x256xf32>
    %c0_11 = arith.constant 0 : index
    %c1024 = arith.constant 1024 : index
    %24 = vector.load %arg8[%c0_11, %c1024] : memref<2x4096xf32, #tpu.memory_space<vmem>>, vector<1x256xf32>
    tpu.vector_store %arg8[%c0_11, %c1024], %23 {strides = array<i32>} : memref<2x4096xf32, #tpu.memory_space<vmem>>, vector<1x256xf32>,
    %25 = vector.extract_strided_slice %14 {offsets = [5, 0], sizes = [1, 256], strides = [1, 1]} : vector<16x256xf32> to vector<1x256xf32>
    %c0_12 = arith.constant 0 : index
    %c1280 = arith.constant 1280 : index
    %26 = vector.load %arg8[%c0_12, %c1280] : memref<2x4096xf32, #tpu.memory_space<vmem>>, vector<1x256xf32>
    tpu.vector_store %arg8[%c0_12, %c1280], %25 {strides = array<i32>} : memref<2x4096xf32, #tpu.memory_space<vmem>>, vector<1x256xf32>,
    %27 = vector.extract_strided_slice %14 {offsets = [6, 0], sizes = [1, 256], strides = [1, 1]} : vector<16x256xf32> to vector<1x256xf32>
    %c0_13 = arith.constant 0 : index
    %c1536 = arith.constant 1536 : index
    %28 = vector.load %arg8[%c0_13, %c1536] : memref<2x4096xf32, #tpu.memory_space<vmem>>, vector<1x256xf32>
    tpu.vector_store %arg8[%c0_13, %c1536], %27 {strides = array<i32>} : memref<2x4096xf32, #tpu.memory_space<vmem>>, vector<1x256xf32>,
    %29 = vector.extract_strided_slice %14 {offsets = [7, 0], sizes = [1, 256], strides = [1, 1]} : vector<16x256xf32> to vector<1x256xf32>
    %c0_14 = arith.constant 0 : index
    %c1792 = arith.constant 1792 : index
    %30 = vector.load %arg8[%c0_14, %c1792] : memref<2x4096xf32, #tpu.memory_space<vmem>>, vector<1x256xf32>
    tpu.vector_store %arg8[%c0_14, %c1792], %29 {strides = array<i32>} : memref<2x4096xf32, #tpu.memory_space<vmem>>, vector<1x256xf32>,
    %31 = vector.extract_strided_slice %14 {offsets = [8, 0], sizes = [1, 256], strides = [1, 1]} : vector<16x256xf32> to vector<1x256xf32>
    %c0_15 = arith.constant 0 : index
    %c2048 = arith.constant 2048 : index
    %32 = vector.load %arg8[%c0_15, %c2048] : memref<2x4096xf32, #tpu.memory_space<vmem>>, vector<1x256xf32>
    tpu.vector_store %arg8[%c0_15, %c2048], %31 {strides = array<i32>} : memref<2x4096xf32, #tpu.memory_space<vmem>>, vector<1x256xf32>,
    %33 = vector.extract_strided_slice %14 {offsets = [9, 0], sizes = [1, 256], strides = [1, 1]} : vector<16x256xf32> to vector<1x256xf32>
    %c0_16 = arith.constant 0 : index
    %c2304 = arith.constant 2304 : index
    %34 = vector.load %arg8[%c0_16, %c2304] : memref<2x4096xf32, #tpu.memory_space<vmem>>, vector<1x256xf32>
    tpu.vector_store %arg8[%c0_16, %c2304], %33 {strides = array<i32>} : memref<2x4096xf32, #tpu.memory_space<vmem>>, vector<1x256xf32>,
    %35 = vector.extract_strided_slice %14 {offsets = [10, 0], sizes = [1, 256], strides = [1, 1]} : vector<16x256xf32> to vector<1x256xf32>
    %c0_17 = arith.constant 0 : index
    %c2560 = arith.constant 2560 : index
    %36 = vector.load %arg8[%c0_17, %c2560] : memref<2x4096xf32, #tpu.memory_space<vmem>>, vector<1x256xf32>
    tpu.vector_store %arg8[%c0_17, %c2560], %35 {strides = array<i32>} : memref<2x4096xf32, #tpu.memory_space<vmem>>, vector<1x256xf32>,
    %37 = vector.extract_strided_slice %14 {offsets = [11, 0], sizes = [1, 256], strides = [1, 1]} : vector<16x256xf32> to vector<1x256xf32>
    %c0_18 = arith.constant 0 : index
    %c2816 = arith.constant 2816 : index
    %38 = vector.load %arg8[%c0_18, %c2816] : memref<2x4096xf32, #tpu.memory_space<vmem>>, vector<1x256xf32>
    tpu.vector_store %arg8[%c0_18, %c2816], %37 {strides = array<i32>} : memref<2x4096xf32, #tpu.memory_space<vmem>>, vector<1x256xf32>,
    %39 = vector.extract_strided_slice %14 {offsets = [12, 0], sizes = [1, 256], strides = [1, 1]} : vector<16x256xf32> to vector<1x256xf32>
    %c0_19 = arith.constant 0 : index
    %c3072 = arith.constant 3072 : index
    %40 = vector.load %arg8[%c0_19, %c3072] : memref<2x4096xf32, #tpu.memory_space<vmem>>, vector<1x256xf32>
    tpu.vector_store %arg8[%c0_19, %c3072], %39 {strides = array<i32>} : memref<2x4096xf32, #tpu.memory_space<vmem>>, vector<1x256xf32>,
    %41 = vector.extract_strided_slice %14 {offsets = [13, 0], sizes = [1, 256], strides = [1, 1]} : vector<16x256xf32> to vector<1x256xf32>
    %c0_20 = arith.constant 0 : index
    %c3328 = arith.constant 3328 : index
    %42 = vector.load %arg8[%c0_20, %c3328] : memref<2x4096xf32, #tpu.memory_space<vmem>>, vector<1x256xf32>
    tpu.vector_store %arg8[%c0_20, %c3328], %41 {strides = array<i32>} : memref<2x4096xf32, #tpu.memory_space<vmem>>, vector<1x256xf32>,
    %43 = vector.extract_strided_slice %14 {offsets = [14, 0], sizes = [1, 256], strides = [1, 1]} : vector<16x256xf32> to vector<1x256xf32>
    %c0_21 = arith.constant 0 : index
    %c3584 = arith.constant 3584 : index
    %44 = vector.load %arg8[%c0_21, %c3584] : memref<2x4096xf32, #tpu.memory_space<vmem>>, vector<1x256xf32>
    tpu.vector_store %arg8[%c0_21, %c3584], %43 {strides = array<i32>} : memref<2x4096xf32, #tpu.memory_space<vmem>>, vector<1x256xf32>,
    %45 = vector.extract_strided_slice %14 {offsets = [15, 0], sizes = [1, 256], strides = [1, 1]} : vector<16x256xf32> to vector<1x256xf32>
    %c0_22 = arith.constant 0 : index
    %c3840 = arith.constant 3840 : index
    %46 = vector.load %arg8[%c0_22, %c3840] : memref<2x4096xf32, #tpu.memory_space<vmem>>, vector<1x256xf32>
    tpu.vector_store %arg8[%c0_22, %c3840], %45 {strides = array<i32>} : memref<2x4096xf32, #tpu.memory_space<vmem>>, vector<1x256xf32>,
    %47 = vector.extract_strided_slice %2 {offsets = [0, 1024], sizes = [16, 256], strides = [1, 1]} : vector<16x2048xf32> to vector<16x256xf32>
    %48 = vector.extract_strided_slice %2 {offsets = [0, 1280], sizes = [16, 256], strides = [1, 1]} : vector<16x2048xf32> to vector<16x256xf32>
    %49 = arith.maximumf %47, %48 : vector<16x256xf32>
    %50 = vector.extract_strided_slice %2 {offsets = [0, 1536], sizes = [16, 256], strides = [1, 1]} : vector<16x2048xf32> to vector<16x256xf32>
    %51 = arith.maximumf %49, %50 : vector<16x256xf32>
    %52 = vector.extract_strided_slice %2 {offsets = [0, 1792], sizes = [16, 256], strides = [1, 1]} : vector<16x2048xf32> to vector<16x256xf32>
    %53 = arith.maximumf %51, %52 : vector<16x256xf32>
    %54 = vector.broadcast %3 : vector<16x1xf32> to vector<16x256xf32>
    %55 = arith.addf %53, %54 : vector<16x256xf32>
    %cst_23 = arith.constant 0.000000e+00 : f32
    %56 = vector.broadcast %cst_23 : f32 to vector<16x256xf32>
    %57 = arith.maximumf %55, %56 : vector<16x256xf32>
    %58 = vector.extract_strided_slice %57 {offsets = [0, 0], sizes = [1, 256], strides = [1, 1]} : vector<16x256xf32> to vector<1x256xf32>
    %c1 = arith.constant 1 : index
    %c0_24 = arith.constant 0 : index
    %59 = vector.load %arg8[%c1, %c0_24] : memref<2x4096xf32, #tpu.memory_space<vmem>>, vector<1x256xf32>
    tpu.vector_store %arg8[%c1, %c0_24], %58 {strides = array<i32>} : memref<2x4096xf32, #tpu.memory_space<vmem>>, vector<1x256xf32>,
    %60 = vector.extract_strided_slice %57 {offsets = [1, 0], sizes = [1, 256], strides = [1, 1]} : vector<16x256xf32> to vector<1x256xf32>
    %c1_25 = arith.constant 1 : index
    %c256_26 = arith.constant 256 : index
    %61 = vector.load %arg8[%c1_25, %c256_26] : memref<2x4096xf32, #tpu.memory_space<vmem>>, vector<1x256xf32>
    tpu.vector_store %arg8[%c1_25, %c256_26], %60 {strides = array<i32>} : memref<2x4096xf32, #tpu.memory_space<vmem>>, vector<1x256xf32>,
    %62 = vector.extract_strided_slice %57 {offsets = [2, 0], sizes = [1, 256], strides = [1, 1]} : vector<16x256xf32> to vector<1x256xf32>
    %c1_27 = arith.constant 1 : index
    %c512_28 = arith.constant 512 : index
    %63 = vector.load %arg8[%c1_27, %c512_28] : memref<2x4096xf32, #tpu.memory_space<vmem>>, vector<1x256xf32>
    tpu.vector_store %arg8[%c1_27, %c512_28], %62 {strides = array<i32>} : memref<2x4096xf32, #tpu.memory_space<vmem>>, vector<1x256xf32>,
    %64 = vector.extract_strided_slice %57 {offsets = [3, 0], sizes = [1, 256], strides = [1, 1]} : vector<16x256xf32> to vector<1x256xf32>
    %c1_29 = arith.constant 1 : index
    %c768_30 = arith.constant 768 : index
    %65 = vector.load %arg8[%c1_29, %c768_30] : memref<2x4096xf32, #tpu.memory_space<vmem>>, vector<1x256xf32>
    tpu.vector_store %arg8[%c1_29, %c768_30], %64 {strides = array<i32>} : memref<2x4096xf32, #tpu.memory_space<vmem>>, vector<1x256xf32>,
    %66 = vector.extract_strided_slice %57 {offsets = [4, 0], sizes = [1, 256], strides = [1, 1]} : vector<16x256xf32> to vector<1x256xf32>
    %c1_31 = arith.constant 1 : index
    %c1024_32 = arith.constant 1024 : index
    %67 = vector.load %arg8[%c1_31, %c1024_32] : memref<2x4096xf32, #tpu.memory_space<vmem>>, vector<1x256xf32>
    tpu.vector_store %arg8[%c1_31, %c1024_32], %66 {strides = array<i32>} : memref<2x4096xf32, #tpu.memory_space<vmem>>, vector<1x256xf32>,
    %68 = vector.extract_strided_slice %57 {offsets = [5, 0], sizes = [1, 256], strides = [1, 1]} : vector<16x256xf32> to vector<1x256xf32>
    %c1_33 = arith.constant 1 : index
    %c1280_34 = arith.constant 1280 : index
    %69 = vector.load %arg8[%c1_33, %c1280_34] : memref<2x4096xf32, #tpu.memory_space<vmem>>, vector<1x256xf32>
    tpu.vector_store %arg8[%c1_33, %c1280_34], %68 {strides = array<i32>} : memref<2x4096xf32, #tpu.memory_space<vmem>>, vector<1x256xf32>,
    %70 = vector.extract_strided_slice %57 {offsets = [6, 0], sizes = [1, 256], strides = [1, 1]} : vector<16x256xf32> to vector<1x256xf32>
    %c1_35 = arith.constant 1 : index
    %c1536_36 = arith.constant 1536 : index
    %71 = vector.load %arg8[%c1_35, %c1536_36] : memref<2x4096xf32, #tpu.memory_space<vmem>>, vector<1x256xf32>
    tpu.vector_store %arg8[%c1_35, %c1536_36], %70 {strides = array<i32>} : memref<2x4096xf32, #tpu.memory_space<vmem>>, vector<1x256xf32>,
    %72 = vector.extract_strided_slice %57 {offsets = [7, 0], sizes = [1, 256], strides = [1, 1]} : vector<16x256xf32> to vector<1x256xf32>
    %c1_37 = arith.constant 1 : index
    %c1792_38 = arith.constant 1792 : index
    %73 = vector.load %arg8[%c1_37, %c1792_38] : memref<2x4096xf32, #tpu.memory_space<vmem>>, vector<1x256xf32>
    tpu.vector_store %arg8[%c1_37, %c1792_38], %72 {strides = array<i32>} : memref<2x4096xf32, #tpu.memory_space<vmem>>, vector<1x256xf32>,
    %74 = vector.extract_strided_slice %57 {offsets = [8, 0], sizes = [1, 256], strides = [1, 1]} : vector<16x256xf32> to vector<1x256xf32>
    %c1_39 = arith.constant 1 : index
    %c2048_40 = arith.constant 2048 : index
    %75 = vector.load %arg8[%c1_39, %c2048_40] : memref<2x4096xf32, #tpu.memory_space<vmem>>, vector<1x256xf32>
    tpu.vector_store %arg8[%c1_39, %c2048_40], %74 {strides = array<i32>} : memref<2x4096xf32, #tpu.memory_space<vmem>>, vector<1x256xf32>,
    %76 = vector.extract_strided_slice %57 {offsets = [9, 0], sizes = [1, 256], strides = [1, 1]} : vector<16x256xf32> to vector<1x256xf32>
    %c1_41 = arith.constant 1 : index
    %c2304_42 = arith.constant 2304 : index
    %77 = vector.load %arg8[%c1_41, %c2304_42] : memref<2x4096xf32, #tpu.memory_space<vmem>>, vector<1x256xf32>
    tpu.vector_store %arg8[%c1_41, %c2304_42], %76 {strides = array<i32>} : memref<2x4096xf32, #tpu.memory_space<vmem>>, vector<1x256xf32>,
    %78 = vector.extract_strided_slice %57 {offsets = [10, 0], sizes = [1, 256], strides = [1, 1]} : vector<16x256xf32> to vector<1x256xf32>
    %c1_43 = arith.constant 1 : index
    %c2560_44 = arith.constant 2560 : index
    %79 = vector.load %arg8[%c1_43, %c2560_44] : memref<2x4096xf32, #tpu.memory_space<vmem>>, vector<1x256xf32>
    tpu.vector_store %arg8[%c1_43, %c2560_44], %78 {strides = array<i32>} : memref<2x4096xf32, #tpu.memory_space<vmem>>, vector<1x256xf32>,
    %80 = vector.extract_strided_slice %57 {offsets = [11, 0], sizes = [1, 256], strides = [1, 1]} : vector<16x256xf32> to vector<1x256xf32>
    %c1_45 = arith.constant 1 : index
    %c2816_46 = arith.constant 2816 : index
    %81 = vector.load %arg8[%c1_45, %c2816_46] : memref<2x4096xf32, #tpu.memory_space<vmem>>, vector<1x256xf32>
    tpu.vector_store %arg8[%c1_45, %c2816_46], %80 {strides = array<i32>} : memref<2x4096xf32, #tpu.memory_space<vmem>>, vector<1x256xf32>,
    %82 = vector.extract_strided_slice %57 {offsets = [12, 0], sizes = [1, 256], strides = [1, 1]} : vector<16x256xf32> to vector<1x256xf32>
    %c1_47 = arith.constant 1 : index
    %c3072_48 = arith.constant 3072 : index
    %83 = vector.load %arg8[%c1_47, %c3072_48] : memref<2x4096xf32, #tpu.memory_space<vmem>>, vector<1x256xf32>
    tpu.vector_store %arg8[%c1_47, %c3072_48], %82 {strides = array<i32>} : memref<2x4096xf32, #tpu.memory_space<vmem>>, vector<1x256xf32>,
    %84 = vector.extract_strided_slice %57 {offsets = [13, 0], sizes = [1, 256], strides = [1, 1]} : vector<16x256xf32> to vector<1x256xf32>
    %c1_49 = arith.constant 1 : index
    %c3328_50 = arith.constant 3328 : index
    %85 = vector.load %arg8[%c1_49, %c3328_50] : memref<2x4096xf32, #tpu.memory_space<vmem>>, vector<1x256xf32>
    tpu.vector_store %arg8[%c1_49, %c3328_50], %84 {strides = array<i32>} : memref<2x4096xf32, #tpu.memory_space<vmem>>, vector<1x256xf32>,
    %86 = vector.extract_strided_slice %57 {offsets = [14, 0], sizes = [1, 256], strides = [1, 1]} : vector<16x256xf32> to vector<1x256xf32>
    %c1_51 = arith.constant 1 : index
    %c3584_52 = arith.constant 3584 : index
    %87 = vector.load %arg8[%c1_51, %c3584_52] : memref<2x4096xf32, #tpu.memory_space<vmem>>, vector<1x256xf32>
    tpu.vector_store %arg8[%c1_51, %c3584_52], %86 {strides = array<i32>} : memref<2x4096xf32, #tpu.memory_space<vmem>>, vector<1x256xf32>,
    %88 = vector.extract_strided_slice %57 {offsets = [15, 0], sizes = [1, 256], strides = [1, 1]} : vector<16x256xf32> to vector<1x256xf32>
    %c1_53 = arith.constant 1 : index
    %c3840_54 = arith.constant 3840 : index
    %89 = vector.load %arg8[%c1_53, %c3840_54] : memref<2x4096xf32, #tpu.memory_space<vmem>>, vector<1x256xf32>
    tpu.vector_store %arg8[%c1_53, %c3840_54], %88 {strides = array<i32>} : memref<2x4096xf32, #tpu.memory_space<vmem>>, vector<1x256xf32>,
    %c0_55 = arith.constant 0 : index
    %c0_56 = arith.constant 0 : index
    %90 = vector.load %arg8[%c0_55, %c0_56] : memref<2x4096xf32, #tpu.memory_space<vmem>>, vector<2x4096xf32>
    %91 = arith.truncf %90 : vector<2x4096xf32> to vector<2x4096xbf16>
    %c0_57 = arith.constant 0 : index
    %c0_58 = arith.constant 0 : index
    %92 = vector.load %arg3[%c0_57, %c0_58] : memref<4096x128xbf16, #tpu.memory_space<vmem>>, vector<4096x128xbf16>
    %cst_59 = arith.constant dense<0.000000e+00> : vector<2x128xf32>
    %93 = tpu.matmul %91, %92, %cst_59 {dimension_numbers = #tpu.dot_dimension_numbers<[1], [0], [0], [1], [0, 0, 1, 1], [], []>} : vector<2x4096xbf16>, vector<4096x128xbf16>, vector<2x128xf32> -> vector<2x128xf32>
    %c0_60 = arith.constant 0 : index
    %c0_61 = arith.constant 0 : index
    %94 = vector.load %arg4[%c0_60, %c0_61] : memref<1x128xf32, #tpu.memory_space<vmem>>, vector<1x128xf32>
    %95 = vector.broadcast %94 : vector<1x128xf32> to vector<2x128xf32>
    %96 = arith.addf %93, %95 : vector<2x128xf32>
    %cst_62 = arith.constant 0.000000e+00 : f32
    %97 = vector.broadcast %cst_62 : f32 to vector<2x128xf32>
    %98 = arith.maximumf %96, %97 : vector<2x128xf32>
    %c0_63 = arith.constant 0 : index
    %c0_64 = arith.constant 0 : index
    %99 = vector.load %arg5[%c0_63, %c0_64] : memref<128x128xf32, #tpu.memory_space<vmem>>, vector<128x128xf32>
    %cst_65 = arith.constant dense<0.000000e+00> : vector<2x128xf32>
    %100 = tpu.matmul %98, %99, %cst_65 {dimension_numbers = #tpu.dot_dimension_numbers<[1], [0], [0], [1], [0, 0, 1, 1], [], []>} : vector<2x128xf32>, vector<128x128xf32>, vector<2x128xf32> -> vector<2x128xf32>
    %c0_66 = arith.constant 0 : index
    %c0_67 = arith.constant 0 : index
    %101 = vector.load %arg6[%c0_66, %c0_67] : memref<1x128xf32, #tpu.memory_space<vmem>>, vector<1x128xf32>
    %102 = vector.broadcast %101 : vector<1x128xf32> to vector<2x128xf32>
    %103 = arith.addf %100, %102 : vector<2x128xf32>
    %c0_68 = arith.constant 0 : index
    %c0_69 = arith.constant 0 : index
    %104 = vector.load %arg7[%c0_68, %c0_69] : memref<2x128xf32, #tpu.memory_space<vmem>>, vector<2x128xf32>
    tpu.vector_store %arg7[%c0_68, %c0_69], %103 {strides = array<i32>} : memref<2x128xf32, #tpu.memory_space<vmem>>, vector<2x128xf32>,
    return
  }
}

</mosaic_0001>

<llo_original>
// kernel: policy_network_forward.1
$region0: #{policy_network_forward.1}
  #allocation0 [shape = 'u32[]', space=smem, size = 0x4, offset = 0x4, fixed_abs, tag = 'smem constant byte address 0x4 - core index']
  #allocation1 [shape = 'u32[144,128]{1,0:T(1,128)}', space=vmem, size = 0x12000, scoped, tag = 'internal scratch']
  #allocation2 [shape = 'f32[2,4096]{1,0:T(2,128)}', space=vmem, size = 0x8000, scoped, tag = 'scratch operand']
  %s0 = inlined_call_operand.vmem [shape: bf16[32,2048], index: 0, kind: input, shape index: {}]
  %s1 = inlined_call_operand.vmem [shape: bf16[16,32], index: 1, kind: input, shape index: {}]
  %s2 = inlined_call_operand.vmem [shape: f32[16,1], index: 2, kind: input, shape index: {}]
  %s3 = inlined_call_operand.vmem [shape: bf16[4096,128], index: 3, kind: input, shape index: {}]
  %s4 = inlined_call_operand.vmem [shape: f32[1,128], index: 4, kind: input, shape index: {}]
  %s5 = inlined_call_operand.vmem [shape: f32[128,128], index: 5, kind: input, shape index: {}]
  %s6 = inlined_call_operand.vmem [shape: f32[1,128], index: 6, kind: input, shape index: {}]
  %s7 = inlined_call_operand.hbm [shape: f32[2,128], index: 7, kind: output, shape index: {}]
  %s8 = sld [smem:[#allocation0]]
  $region38: #{policy_network_forward.1} parent=0
    _
  %s10 = ssub.s32 1, %s8
  %s11 = scalar_select 0, %s10, %s8
  $region1: #{policy_network_forward.1} parent=0
    #allocation3 [shape = 'u8[1024]{0}', space=vmem, size = 0x400, scoped, tag = 'output window, operand 0, single buffered']
    #allocation4 [shape = 's32[1]{0}', space=sflag, size = 0x4, scoped, tag = 'scoped memory for policy_network_forward.1']
    %12 = vsyncpa [#allocation4], 0
    // Predicated region
    $region2: #{policy_network_forward.1} parent=1 // pred_check
      _
    $region3: #{policy_network_forward.1} parent=1 // pred_check_branch
      %14 = sbr.rel (0) target = $region5
    $region4: #{policy_network_forward.1} parent=1 // pred_region
      _
    $region5: #{policy_network_forward.1} parent=1 // pred_fallthru
      _
    // Predicated region
    $region6: #{policy_network_forward.1} parent=1 // pred_check
      _
    $region7: #{policy_network_forward.1} parent=1 // pred_check_branch
      %16 = sbr.rel (0) target = $region9
    $region8: #{policy_network_forward.1} parent=1 // pred_region
      _
    $region9: #{policy_network_forward.1} parent=1 // pred_fallthru
      _
    // Predicated region
    $region10: #{policy_network_forward.1} parent=1 // pred_check
      _
    $region11: #{policy_network_forward.1} parent=1 // pred_check_branch
      %18 = sbr.rel (0) target = $region13
    $region12: #{policy_network_forward.1} parent=1 // pred_region
      _
    $region13: #{policy_network_forward.1} parent=1 // pred_fallthru
      _
    // Predicated region
    $region14: #{policy_network_forward.1} parent=1 // pred_check
      _
    $region15: #{policy_network_forward.1} parent=1 // pred_check_branch
      %20 = sbr.rel (0) target = $region17
    $region16: #{policy_network_forward.1} parent=1 // pred_region
      _
    $region17: #{policy_network_forward.1} parent=1 // pred_fallthru
      _
    // Predicated region
    $region18: #{policy_network_forward.1} parent=1 // pred_check
      _
    $region19: #{policy_network_forward.1} parent=1 // pred_check_branch
      %22 = sbr.rel (0) target = $region21
    $region20: #{policy_network_forward.1} parent=1 // pred_region
      _
    $region21: #{policy_network_forward.1} parent=1 // pred_fallthru
      _
    // Predicated region
    $region22: #{policy_network_forward.1} parent=1 // pred_check
      _
    $region23: #{policy_network_forward.1} parent=1 // pred_check_branch
      %24 = sbr.rel (0) target = $region25
    $region24: #{policy_network_forward.1} parent=1 // pred_region
      _
    $region25: #{policy_network_forward.1} parent=1 // pred_fallthru
      _
    // Predicated region
    $region26: #{policy_network_forward.1} parent=1 // pred_check
      _
    $region27: #{policy_network_forward.1} parent=1 // pred_check_branch
      %26 = sbr.rel (0) target = $region29
    $region28: #{policy_network_forward.1} parent=1 // pred_region
      _
    $region29: #{policy_network_forward.1} parent=1 // pred_fallthru
      _
    %v28 = vld [vmem:[%s1] sm:$0xf]
    %v29 = vld [vmem:[%s1 + $0x4] sm:$0xf]
    %v30 = vld [vmem:[%s0] sm:$0xff]
    %v31 = vld [vmem:[%s0 + $0x8] sm:$0xff]
    %v32 = vld [vmem:[%s0 + $0x10] sm:$0xff]
    %v33 = vld [vmem:[%s0 + $0x18] sm:$0xff]
    %v34 = vld [vmem:[%s0 + $0x20] sm:$0xff]
    %v35 = vld [vmem:[%s0 + $0x28] sm:$0xff]
    %v36 = vld [vmem:[%s0 + $0x30] sm:$0xff]
    %v37 = vld [vmem:[%s0 + $0x38] sm:$0xff]
    %v38 = vld [vmem:[%s0 + $0x40] sm:$0xff]
    %v39 = vld [vmem:[%s0 + $0x48] sm:$0xff]
    %v40 = vld [vmem:[%s0 + $0x50] sm:$0xff]
    %v41 = vld [vmem:[%s0 + $0x58] sm:$0xff]
    %v42 = vld [vmem:[%s0 + $0x60] sm:$0xff]
    %v43 = vld [vmem:[%s0 + $0x68] sm:$0xff]
    %v44 = vld [vmem:[%s0 + $0x70] sm:$0xff]
    %v45 = vld [vmem:[%s0 + $0x78] sm:$0xff]
    %v46 = vld [vmem:[%s0 + $0x80] sm:$0xff]
    %v47 = vld [vmem:[%s0 + $0x88] sm:$0xff]
    %v48 = vld [vmem:[%s0 + $0x90] sm:$0xff]
    %v49 = vld [vmem:[%s0 + $0x98] sm:$0xff]
    %v50 = vld [vmem:[%s0 + $0xa0] sm:$0xff]
    %v51 = vld [vmem:[%s0 + $0xa8] sm:$0xff]
    %v52 = vld [vmem:[%s0 + $0xb0] sm:$0xff]
    %v53 = vld [vmem:[%s0 + $0xb8] sm:$0xff]
    %v54 = vld [vmem:[%s0 + $0xc0] sm:$0xff]
    %v55 = vld [vmem:[%s0 + $0xc8] sm:$0xff]
    %v56 = vld [vmem:[%s0 + $0xd0] sm:$0xff]
    %v57 = vld [vmem:[%s0 + $0xd8] sm:$0xff]
    %v58 = vld [vmem:[%s0 + $0xe0] sm:$0xff]
    %v59 = vld [vmem:[%s0 + $0xe8] sm:$0xff]
    %v60 = vld [vmem:[%s0 + $0xf0] sm:$0xff]
    %v61 = vld [vmem:[%s0 + $0xf8] sm:$0xff]
    %v64 = vunpack.c.l.b16 %v28
    %v65 = vunpack.c.l.b16 %v29
    %v66 = vpack.c.b16 %v65, %v64
    %v99 = vunpack.c.l.b16 %v30
    %v100 = vunpack.c.h.b16 %v30
    %v101 = vunpack.c.l.b16 %v31
    %v102 = vunpack.c.h.b16 %v31
    %v103 = vunpack.c.l.b16 %v32
    %v104 = vunpack.c.h.b16 %v32
    %v105 = vunpack.c.l.b16 %v33
    %v106 = vunpack.c.h.b16 %v33
    %v107 = vunpack.c.l.b16 %v34
    %v108 = vunpack.c.h.b16 %v34
    %v109 = vunpack.c.l.b16 %v35
    %v110 = vunpack.c.h.b16 %v35
    %v111 = vunpack.c.l.b16 %v36
    %v112 = vunpack.c.h.b16 %v36
    %v113 = vunpack.c.l.b16 %v37
    %v114 = vunpack.c.h.b16 %v37
    %v115 = vunpack.c.l.b16 %v38
    %v116 = vunpack.c.h.b16 %v38
    %v117 = vunpack.c.l.b16 %v39
    %v118 = vunpack.c.h.b16 %v39
    %v119 = vunpack.c.l.b16 %v40
    %v120 = vunpack.c.h.b16 %v40
    %v121 = vunpack.c.l.b16 %v41
    %v122 = vunpack.c.h.b16 %v41
    %v123 = vunpack.c.l.b16 %v42
    %v124 = vunpack.c.h.b16 %v42
    %v125 = vunpack.c.l.b16 %v43
    %v126 = vunpack.c.h.b16 %v43
    %v127 = vunpack.c.l.b16 %v44
    %v128 = vunpack.c.h.b16 %v44
    %v129 = vunpack.c.l.b16 %v45
    %v130 = vunpack.c.h.b16 %v45
    %v131 = vunpack.c.l.b16 %v46
    %v132 = vunpack.c.h.b16 %v46
    %v133 = vunpack.c.l.b16 %v47
    %v134 = vunpack.c.h.b16 %v47
    %v135 = vunpack.c.l.b16 %v48
    %v136 = vunpack.c.h.b16 %v48
    %v137 = vunpack.c.l.b16 %v49
    %v138 = vunpack.c.h.b16 %v49
    %v139 = vunpack.c.l.b16 %v50
    %v140 = vunpack.c.h.b16 %v50
    %v141 = vunpack.c.l.b16 %v51
    %v142 = vunpack.c.h.b16 %v51
    %v143 = vunpack.c.l.b16 %v52
    %v144 = vunpack.c.h.b16 %v52
    %v145 = vunpack.c.l.b16 %v53
    %v146 = vunpack.c.h.b16 %v53
    %v147 = vunpack.c.l.b16 %v54
    %v148 = vunpack.c.h.b16 %v54
    %v149 = vunpack.c.l.b16 %v55
    %v150 = vunpack.c.h.b16 %v55
    %v151 = vunpack.c.l.b16 %v56
    %v152 = vunpack.c.h.b16 %v56
    %v153 = vunpack.c.l.b16 %v57
    %v154 = vunpack.c.h.b16 %v57
    %v155 = vunpack.c.l.b16 %v58
    %v156 = vunpack.c.h.b16 %v58
    %v157 = vunpack.c.l.b16 %v59
    %v158 = vunpack.c.h.b16 %v59
    %v159 = vunpack.c.l.b16 %v60
    %v160 = vunpack.c.h.b16 %v60
    %v161 = vunpack.c.l.b16 %v61
    %v162 = vunpack.c.h.b16 %v61
    %v163 = vpack.c.b16 %v115, %v99
    %v164 = vpack.c.b16 %v116, %v100
    %v165 = vpack.c.b16 %v117, %v101
    %v166 = vpack.c.b16 %v118, %v102
    %v167 = vpack.c.b16 %v119, %v103
    %v168 = vpack.c.b16 %v120, %v104
    %v169 = vpack.c.b16 %v121, %v105
    %v170 = vpack.c.b16 %v122, %v106
    %v171 = vpack.c.b16 %v123, %v107
    %v172 = vpack.c.b16 %v124, %v108
    %v173 = vpack.c.b16 %v125, %v109
    %v174 = vpack.c.b16 %v126, %v110
    %v175 = vpack.c.b16 %v127, %v111
    %v176 = vpack.c.b16 %v128, %v112
    %v177 = vpack.c.b16 %v129, %v113
    %v178 = vpack.c.b16 %v130, %v114
    %v179 = vpack.c.b16 %v147, %v131
    %v180 = vpack.c.b16 %v148, %v132
    %v181 = vpack.c.b16 %v149, %v133
    %v182 = vpack.c.b16 %v150, %v134
    %v183 = vpack.c.b16 %v151, %v135
    %v184 = vpack.c.b16 %v152, %v136
    %v185 = vpack.c.b16 %v153, %v137
    %v186 = vpack.c.b16 %v154, %v138
    %v187 = vpack.c.b16 %v155, %v139
    %v188 = vpack.c.b16 %v156, %v140
    %v189 = vpack.c.b16 %v157, %v141
    %v190 = vpack.c.b16 %v158, %v142
    %v191 = vpack.c.b16 %v159, %v143
    %v192 = vpack.c.b16 %v160, %v144
    %v193 = vpack.c.b16 %v161, %v145
    %v194 = vpack.c.b16 %v162, %v146
    %vm227 = vcmask 261120
    %v229 = vsel %vm227, %v66, 0
    %231 = vmatprep.subr.bf16.mxu0 %v164
    %232 = vmatpush1.bf16.msra.mxu0 %v163
    %233 = vmatprep.subr.bf16.mxu0 %v180
    %234 = vmatpush1.bf16.msra.mxu0 %v179
    %235 = vmatprep.subr.bf16.mxu0 0
    %236 = vmatpush1.bf16.msra.mxu0 0
    %237 = vmatprep.subr.bf16.mxu0 0
    %238 = vmatpush1.bf16.msra.mxu0 0
    %239 = vmatprep.subr.bf16.mxu0 0
    %240 = vmatpush1.bf16.msra.mxu0 0
    %241 = vmatprep.subr.bf16.mxu0 0
    %242 = vmatpush1.bf16.msra.mxu0 0
    %243 = vmatprep.subr.bf16.mxu0 0
    %244 = vmatpush1.bf16.msra.mxu0 0
    %245 = vmatprep.subr.bf16.mxu0 0
    %246 = vmatpush1.bf16.msra.mxu0 0
    %247 = vmatprep.subr.bf16.mxu0 0
    %248 = vmatpush1.bf16.msra.mxu0 0
    %249 = vmatprep.subr.bf16.mxu0 0
    %250 = vmatpush1.bf16.msra.mxu0 0
    %251 = vmatprep.subr.bf16.mxu0 0
    %252 = vmatpush1.bf16.msra.mxu0 0
    %253 = vmatprep.subr.bf16.mxu0 0
    %254 = vmatpush1.bf16.msra.mxu0 0
    %255 = vmatprep.subr.bf16.mxu0 0
    %256 = vmatpush1.bf16.msra.mxu0 0
    %257 = vmatprep.subr.bf16.mxu0 0
    %258 = vmatpush1.bf16.msra.mxu0 0
    %259 = vmatprep.subr.bf16.mxu0 0
    %260 = vmatpush1.bf16.msra.mxu0 0
    %261 = vmatprep.subr.bf16.mxu0 0
    %262 = vmatpush1.bf16.msra.mxu0 0
    %263 = vmatprep.mubr.bf16.mxu0 0
    %264 = vmatmul.mubr.bf16.gmra.mrb[0].mxu0 %v229
    %v265 = vpop.f32.mrb[0].mxu0
    %v266 = vadd.f32 0.0, %v265
    %v267 = vpop.f32.mrb[0].mxu0
    %v268 = vadd.f32 0.0, %v267
    %v269 = vpop.f32.mrb[0].mxu0
    %v270 = vadd.f32 0.0, %v269
    %v271 = vpop.f32.mrb[0].mxu0
    %v272 = vadd.f32 0.0, %v271
    %273 = vdwg.mxu0
    %274 = vmatprep.subr.bf16.mxu0 %v166
    %275 = vmatpush1.bf16.msra.mxu0 %v165
    %276 = vmatprep.subr.bf16.mxu0 %v182
    %277 = vmatpush1.bf16.msra.mxu0 %v181
    %278 = vmatprep.subr.bf16.mxu0 0
    %279 = vmatpush1.bf16.msra.mxu0 0
    %280 = vmatprep.subr.bf16.mxu0 0
    %281 = vmatpush1.bf16.msra.mxu0 0
    %282 = vmatprep.subr.bf16.mxu0 0
    %283 = vmatpush1.bf16.msra.mxu0 0
    %284 = vmatprep.subr.bf16.mxu0 0
    %285 = vmatpush1.bf16.msra.mxu0 0
    %286 = vmatprep.subr.bf16.mxu0 0
    %287 = vmatpush1.bf16.msra.mxu0 0
    %288 = vmatprep.subr.bf16.mxu0 0
    %289 = vmatpush1.bf16.msra.mxu0 0
    %290 = vmatprep.subr.bf16.mxu0 0
    %291 = vmatpush1.bf16.msra.mxu0 0
    %292 = vmatprep.subr.bf16.mxu0 0
    %293 = vmatpush1.bf16.msra.mxu0 0
    %294 = vmatprep.subr.bf16.mxu0 0
    %295 = vmatpush1.bf16.msra.mxu0 0
    %296 = vmatprep.subr.bf16.mxu0 0
    %297 = vmatpush1.bf16.msra.mxu0 0
    %298 = vmatprep.subr.bf16.mxu0 0
    %299 = vmatpush1.bf16.msra.mxu0 0
    %300 = vmatprep.subr.bf16.mxu0 0
    %301 = vmatpush1.bf16.msra.mxu0 0
    %302 = vmatprep.subr.bf16.mxu0 0
    %303 = vmatpush1.bf16.msra.mxu0 0
    %304 = vmatprep.subr.bf16.mxu0 0
    %305 = vmatpush1.bf16.msra.mxu0 0
    %306 = vmatprep.mubr.bf16.mxu0 0
    %307 = vmatmul.mubr.bf16.gmra.mrb[0].mxu0 %v229
    %v308 = vpop.f32.mrb[0].mxu0
    %v309 = vadd.f32 0.0, %v308
    %v310 = vpop.f32.mrb[0].mxu0
    %v311 = vadd.f32 0.0, %v310
    %v312 = vpop.f32.mrb[0].mxu0
    %v313 = vadd.f32 0.0, %v312
    %v314 = vpop.f32.mrb[0].mxu0
    %v315 = vadd.f32 0.0, %v314
    %316 = vdwg.mxu0
    %317 = vmatprep.subr.bf16.mxu0 %v168
    %318 = vmatpush1.bf16.msra.mxu0 %v167
    %319 = vmatprep.subr.bf16.mxu0 %v184
    %320 = vmatpush1.bf16.msra.mxu0 %v183
    %321 = vmatprep.subr.bf16.mxu0 0
    %322 = vmatpush1.bf16.msra.mxu0 0
    %323 = vmatprep.subr.bf16.mxu0 0
    %324 = vmatpush1.bf16.msra.mxu0 0
    %325 = vmatprep.subr.bf16.mxu0 0
    %326 = vmatpush1.bf16.msra.mxu0 0
    %327 = vmatprep.subr.bf16.mxu0 0
    %328 = vmatpush1.bf16.msra.mxu0 0
    %329 = vmatprep.subr.bf16.mxu0 0
    %330 = vmatpush1.bf16.msra.mxu0 0
    %331 = vmatprep.subr.bf16.mxu0 0
    %332 = vmatpush1.bf16.msra.mxu0 0
    %333 = vmatprep.subr.bf16.mxu0 0
    %334 = vmatpush1.bf16.msra.mxu0 0
    %335 = vmatprep.subr.bf16.mxu0 0
    %336 = vmatpush1.bf16.msra.mxu0 0
    %337 = vmatprep.subr.bf16.mxu0 0
    %338 = vmatpush1.bf16.msra.mxu0 0
    %339 = vmatprep.subr.bf16.mxu0 0
    %340 = vmatpush1.bf16.msra.mxu0 0
    %341 = vmatprep.subr.bf16.mxu0 0
    %342 = vmatpush1.bf16.msra.mxu0 0
    %343 = vmatprep.subr.bf16.mxu0 0
    %344 = vmatpush1.bf16.msra.mxu0 0
    %345 = vmatprep.subr.bf16.mxu0 0
    %346 = vmatpush1.bf16.msra.mxu0 0
    %347 = vmatprep.subr.bf16.mxu0 0
    %348 = vmatpush1.bf16.msra.mxu0 0
    %349 = vmatprep.mubr.bf16.mxu0 0
    %350 = vmatmul.mubr.bf16.gmra.mrb[0].mxu0 %v229
    %v351 = vpop.f32.mrb[0].mxu0
    %v352 = vadd.f32 0.0, %v351
    %v353 = vpop.f32.mrb[0].mxu0
    %v354 = vadd.f32 0.0, %v353
    %v355 = vpop.f32.mrb[0].mxu0
    %v356 = vadd.f32 0.0, %v355
    %v357 = vpop.f32.mrb[0].mxu0
    %v358 = vadd.f32 0.0, %v357
    %359 = vdwg.mxu0
    %360 = vmatprep.subr.bf16.mxu0 %v170
    %361 = vmatpush1.bf16.msra.mxu0 %v169
    %362 = vmatprep.subr.bf16.mxu0 %v186
    %363 = vmatpush1.bf16.msra.mxu0 %v185
    %364 = vmatprep.subr.bf16.mxu0 0
    %365 = vmatpush1.bf16.msra.mxu0 0
    %366 = vmatprep.subr.bf16.mxu0 0
    %367 = vmatpush1.bf16.msra.mxu0 0
    %368 = vmatprep.subr.bf16.mxu0 0
    %369 = vmatpush1.bf16.msra.mxu0 0
    %370 = vmatprep.subr.bf16.mxu0 0
    %371 = vmatpush1.bf16.msra.mxu0 0
    %372 = vmatprep.subr.bf16.mxu0 0
    %373 = vmatpush1.bf16.msra.mxu0 0
    %374 = vmatprep.subr.bf16.mxu0 0
    %375 = vmatpush1.bf16.msra.mxu0 0
    %376 = vmatprep.subr.bf16.mxu0 0
    %377 = vmatpush1.bf16.msra.mxu0 0
    %378 = vmatprep.subr.bf16.mxu0 0
    %379 = vmatpush1.bf16.msra.mxu0 0
    %380 = vmatprep.subr.bf16.mxu0 0
    %381 = vmatpush1.bf16.msra.mxu0 0
    %382 = vmatprep.subr.bf16.mxu0 0
    %383 = vmatpush1.bf16.msra.mxu0 0
    %384 = vmatprep.subr.bf16.mxu0 0
    %385 = vmatpush1.bf16.msra.mxu0 0
    %386 = vmatprep.subr.bf16.mxu0 0
    %387 = vmatpush1.bf16.msra.mxu0 0
    %388 = vmatprep.subr.bf16.mxu0 0
    %389 = vmatpush1.bf16.msra.mxu0 0
    %390 = vmatprep.subr.bf16.mxu0 0
    %391 = vmatpush1.bf16.msra.mxu0 0
    %392 = vmatprep.mubr.bf16.mxu0 0
    %393 = vmatmul.mubr.bf16.gmra.mrb[0].mxu0 %v229
    %v394 = vpop.f32.mrb[0].mxu0
    %v395 = vadd.f32 0.0, %v394
    %v396 = vpop.f32.mrb[0].mxu0
    %v397 = vadd.f32 0.0, %v396
    %v398 = vpop.f32.mrb[0].mxu0
    %v399 = vadd.f32 0.0, %v398
    %v400 = vpop.f32.mrb[0].mxu0
    %v401 = vadd.f32 0.0, %v400
    %402 = vdwg.mxu0
    %403 = vmatprep.subr.bf16.mxu0 %v172
    %404 = vmatpush1.bf16.msra.mxu0 %v171
    %405 = vmatprep.subr.bf16.mxu0 %v188
    %406 = vmatpush1.bf16.msra.mxu0 %v187
    %407 = vmatprep.subr.bf16.mxu0 0
    %408 = vmatpush1.bf16.msra.mxu0 0
    %409 = vmatprep.subr.bf16.mxu0 0
    %410 = vmatpush1.bf16.msra.mxu0 0
    %411 = vmatprep.subr.bf16.mxu0 0
    %412 = vmatpush1.bf16.msra.mxu0 0
    %413 = vmatprep.subr.bf16.mxu0 0
    %414 = vmatpush1.bf16.msra.mxu0 0
    %415 = vmatprep.subr.bf16.mxu0 0
    %416 = vmatpush1.bf16.msra.mxu0 0
    %417 = vmatprep.subr.bf16.mxu0 0
    %418 = vmatpush1.bf16.msra.mxu0 0
    %419 = vmatprep.subr.bf16.mxu0 0
    %420 = vmatpush1.bf16.msra.mxu0 0
    %421 = vmatprep.subr.bf16.mxu0 0
    %422 = vmatpush1.bf16.msra.mxu0 0
    %423 = vmatprep.subr.bf16.mxu0 0
    %424 = vmatpush1.bf16.msra.mxu0 0
    %425 = vmatprep.subr.bf16.mxu0 0
    %426 = vmatpush1.bf16.msra.mxu0 0
    %427 = vmatprep.subr.bf16.mxu0 0
    %428 = vmatpush1.bf16.msra.mxu0 0
    %429 = vmatprep.subr.bf16.mxu0 0
    %430 = vmatpush1.bf16.msra.mxu0 0
    %431 = vmatprep.subr.bf16.mxu0 0
    %432 = vmatpush1.bf16.msra.mxu0 0
    %433 = vmatprep.subr.bf16.mxu0 0
    %434 = vmatpush1.bf16.msra.mxu0 0
    %435 = vmatprep.mubr.bf16.mxu0 0
    %436 = vmatmul.mubr.bf16.gmra.mrb[0].mxu0 %v229
    %v437 = vpop.f32.mrb[0].mxu0
    %v438 = vadd.f32 0.0, %v437
    %v439 = vpop.f32.mrb[0].mxu0
    %v440 = vadd.f32 0.0, %v439
    %v441 = vpop.f32.mrb[0].mxu0
    %v442 = vadd.f32 0.0, %v441
    %v443 = vpop.f32.mrb[0].mxu0
    %v444 = vadd.f32 0.0, %v443
    %445 = vdwg.mxu0
    %446 = vmatprep.subr.bf16.mxu0 %v174
    %447 = vmatpush1.bf16.msra.mxu0 %v173
    %448 = vmatprep.subr.bf16.mxu0 %v190
    %449 = vmatpush1.bf16.msra.mxu0 %v189
    %450 = vmatprep.subr.bf16.mxu0 0
    %451 = vmatpush1.bf16.msra.mxu0 0
    %452 = vmatprep.subr.bf16.mxu0 0
    %453 = vmatpush1.bf16.msra.mxu0 0
    %454 = vmatprep.subr.bf16.mxu0 0
    %455 = vmatpush1.bf16.msra.mxu0 0
    %456 = vmatprep.subr.bf16.mxu0 0
    %457 = vmatpush1.bf16.msra.mxu0 0
    %458 = vmatprep.subr.bf16.mxu0 0
    %459 = vmatpush1.bf16.msra.mxu0 0
    %460 = vmatprep.subr.bf16.mxu0 0
    %461 = vmatpush1.bf16.msra.mxu0 0
    %462 = vmatprep.subr.bf16.mxu0 0
    %463 = vmatpush1.bf16.msra.mxu0 0
    %464 = vmatprep.subr.bf16.mxu0 0
    %465 = vmatpush1.bf16.msra.mxu0 0
    %466 = vmatprep.subr.bf16.mxu0 0
    %467 = vmatpush1.bf16.msra.mxu0 0
    %468 = vmatprep.subr.bf16.mxu0 0
    %469 = vmatpush1.bf16.msra.mxu0 0
    %470 = vmatprep.subr.bf16.mxu0 0
    %471 = vmatpush1.bf16.msra.mxu0 0
    %472 = vmatprep.subr.bf16.mxu0 0
    %473 = vmatpush1.bf16.msra.mxu0 0
    %474 = vmatprep.subr.bf16.mxu0 0
    %475 = vmatpush1.bf16.msra.mxu0 0
    %476 = vmatprep.subr.bf16.mxu0 0
    %477 = vmatpush1.bf16.msra.mxu0 0
    %478 = vmatprep.mubr.bf16.mxu0 0
    %479 = vmatmul.mubr.bf16.gmra.mrb[0].mxu0 %v229
    %v480 = vpop.f32.mrb[0].mxu0
    %v481 = vadd.f32 0.0, %v480
    %v482 = vpop.f32.mrb[0].mxu0
    %v483 = vadd.f32 0.0, %v482
    %v484 = vpop.f32.mrb[0].mxu0
    %v485 = vadd.f32 0.0, %v484
    %v486 = vpop.f32.mrb[0].mxu0
    %v487 = vadd.f32 0.0, %v486
    %488 = vdwg.mxu0
    %489 = vmatprep.subr.bf16.mxu0 %v176
    %490 = vmatpush1.bf16.msra.mxu0 %v175
    %491 = vmatprep.subr.bf16.mxu0 %v192
    %492 = vmatpush1.bf16.msra.mxu0 %v191
    %493 = vmatprep.subr.bf16.mxu0 0
    %494 = vmatpush1.bf16.msra.mxu0 0
    %495 = vmatprep.subr.bf16.mxu0 0
    %496 = vmatpush1.bf16.msra.mxu0 0
    %497 = vmatprep.subr.bf16.mxu0 0
    %498 = vmatpush1.bf16.msra.mxu0 0
    %499 = vmatprep.subr.bf16.mxu0 0
    %500 = vmatpush1.bf16.msra.mxu0 0
    %501 = vmatprep.subr.bf16.mxu0 0
    %502 = vmatpush1.bf16.msra.mxu0 0
    %503 = vmatprep.subr.bf16.mxu0 0
    %504 = vmatpush1.bf16.msra.mxu0 0
    %505 = vmatprep.subr.bf16.mxu0 0
    %506 = vmatpush1.bf16.msra.mxu0 0
    %507 = vmatprep.subr.bf16.mxu0 0
    %508 = vmatpush1.bf16.msra.mxu0 0
    %509 = vmatprep.subr.bf16.mxu0 0
    %510 = vmatpush1.bf16.msra.mxu0 0
    %511 = vmatprep.subr.bf16.mxu0 0
    %512 = vmatpush1.bf16.msra.mxu0 0
    %513 = vmatprep.subr.bf16.mxu0 0
    %514 = vmatpush1.bf16.msra.mxu0 0
    %515 = vmatprep.subr.bf16.mxu0 0
    %516 = vmatpush1.bf16.msra.mxu0 0
    %517 = vmatprep.subr.bf16.mxu0 0
    %518 = vmatpush1.bf16.msra.mxu0 0
    %519 = vmatprep.subr.bf16.mxu0 0
    %520 = vmatpush1.bf16.msra.mxu0 0
    %521 = vmatprep.mubr.bf16.mxu0 0
    %522 = vmatmul.mubr.bf16.gmra.mrb[0].mxu0 %v229
    %v523 = vpop.f32.mrb[0].mxu0
    %v524 = vadd.f32 0.0, %v523
    %v525 = vpop.f32.mrb[0].mxu0
    %v526 = vadd.f32 0.0, %v525
    %v527 = vpop.f32.mrb[0].mxu0
    %v528 = vadd.f32 0.0, %v527
    %v529 = vpop.f32.mrb[0].mxu0
    %v530 = vadd.f32 0.0, %v529
    %531 = vdwg.mxu0
    %532 = vmatprep.subr.bf16.mxu0 %v178
    %533 = vmatpush1.bf16.msra.mxu0 %v177
    %534 = vmatprep.subr.bf16.mxu0 %v194
    %535 = vmatpush1.bf16.msra.mxu0 %v193
    %536 = vmatprep.subr.bf16.mxu0 0
    %537 = vmatpush1.bf16.msra.mxu0 0
    %538 = vmatprep.subr.bf16.mxu0 0
    %539 = vmatpush1.bf16.msra.mxu0 0
    %540 = vmatprep.subr.bf16.mxu0 0
    %541 = vmatpush1.bf16.msra.mxu0 0
    %542 = vmatprep.subr.bf16.mxu0 0
    %543 = vmatpush1.bf16.msra.mxu0 0
    %544 = vmatprep.subr.bf16.mxu0 0
    %545 = vmatpush1.bf16.msra.mxu0 0
    %546 = vmatprep.subr.bf16.mxu0 0
    %547 = vmatpush1.bf16.msra.mxu0 0
    %548 = vmatprep.subr.bf16.mxu0 0
    %549 = vmatpush1.bf16.msra.mxu0 0
    %550 = vmatprep.subr.bf16.mxu0 0
    %551 = vmatpush1.bf16.msra.mxu0 0
    %552 = vmatprep.subr.bf16.mxu0 0
    %553 = vmatpush1.bf16.msra.mxu0 0
    %554 = vmatprep.subr.bf16.mxu0 0
    %555 = vmatpush1.bf16.msra.mxu0 0
    %556 = vmatprep.subr.bf16.mxu0 0
    %557 = vmatpush1.bf16.msra.mxu0 0
    %558 = vmatprep.subr.bf16.mxu0 0
    %559 = vmatpush1.bf16.msra.mxu0 0
    %560 = vmatprep.subr.bf16.mxu0 0
    %561 = vmatpush1.bf16.msra.mxu0 0
    %562 = vmatprep.subr.bf16.mxu0 0
    %563 = vmatpush1.bf16.msra.mxu0 0
    %564 = vmatprep.mubr.bf16.mxu0 0
    %565 = vmatmul.mubr.bf16.gmra.mrb[0].mxu0 %v229
    %v566 = vpop.f32.mrb[0].mxu0
    %v567 = vadd.f32 0.0, %v566
    %v568 = vpop.f32.mrb[0].mxu0
    %v569 = vadd.f32 0.0, %v568
    %v570 = vpop.f32.mrb[0].mxu0
    %v571 = vadd.f32 0.0, %v570
    %v572 = vpop.f32.mrb[0].mxu0
    %v573 = vadd.f32 0.0, %v572
    %574 = vdwg.mxu0
    %v575 = vld [vmem:[%s2] sm:$0xff]
    %v576 = vld [vmem:[%s2 + $0x8] sm:$0xff]
    %v577 = vmax.f32 %v266, %v309
    %v578 = vmax.f32 %v268, %v311
    %v579 = vmax.f32 %v270, %v313
    %v580 = vmax.f32 %v272, %v315
    %v581 = vmax.f32 %v577, %v352
    %v582 = vmax.f32 %v578, %v354
    %v583 = vmax.f32 %v579, %v356
    %v584 = vmax.f32 %v580, %v358
    %v585 = vmax.f32 %v581, %v395
    %v586 = vmax.f32 %v582, %v397
    %v587 = vmax.f32 %v583, %v399
    %v588 = vmax.f32 %v584, %v401
    %590 = vset.pattern.permute.xlu0 0
    %591 = vperm.xlu0 %590, %v575
    %v592 = vpop.permute.xlu0 %591
    %595 = vset.pattern.permute.xlu0 0
    %596 = vperm.xlu0 %595, %v576
    %v597 = vpop.permute.xlu0 %596
    %v599 = vadd.f32 %v585, %v592
    %v600 = vadd.f32 %v586, %v592
    %v601 = vadd.f32 %v587, %v597
    %v602 = vadd.f32 %v588, %v597
    %v603 = vmax.f32 %v599, 0.0
    %v604 = vmax.f32 %v600, 0.0
    %v605 = vmax.f32 %v601, 0.0
    %v606 = vmax.f32 %v602, 0.0
    %v609 = vcombine.low %v603, %v604
    %v611 = vunpack.c.l.s4 1966171168
    %v612 = vunpack.c.0.s8 %v611
    %v613 = vlaneseq
    %v614 = vshrl.u32 %v613, 7
    %v615 = vsub.s32 %v612, %v614
    %v616 = vrot.slane %v609, %v615
    %v618 = vunpack.c.l.s4 1966171168
    %v619 = vunpack.c.0.s8 %v618
    %v620 = vlaneseq
    %v621 = vshrl.u32 %v620, 7
    %v622 = vsub.s32 %v619, %v621
    %v623 = vrot.slane %v616, %v622
    %v625 = vlaneseq
    %vm626 = vcmp.ge.s32.totalorder %v625, 0
    %vm627 = vcmp.lt.s32.totalorder %v625, 256
    %vm628 = vmand %vm626, %vm627
    %629 = vst.msk [vmem:[#allocation2] ss:$2 sm:$0x3] %vm628, %v623
    %v630 = vcombine.high %v616, %v616
    %v632 = vunpack.c.l.s4 1966171168
    %v633 = vunpack.c.0.s8 %v632
    %v634 = vlaneseq
    %v635 = vshrl.u32 %v634, 7
    %v636 = vsub.s32 %v633, %v635
    %v637 = vrot.slane %v630, %v636
    %s639 = scalar_lea.vmem [#allocation2], 4
    %640 = vst.msk [vmem:[%s639] ss:$2 sm:$0x3] %vm628, %v637
    %v641 = vcombine.high %v623, %v623
    %s643 = scalar_lea.vmem [#allocation2], 8
    %644 = vst.msk [vmem:[%s643] ss:$2 sm:$0x3] %vm628, %v641
    %v645 = vcombine.high %v637, %v637
    %s647 = scalar_lea.vmem [#allocation2], 12
    %648 = vst.msk [vmem:[%s647] ss:$2 sm:$0x3] %vm628, %v645
    %v649 = vcombine.high %v603, %v604
    %v651 = vunpack.c.l.s4 1966171168
    %v652 = vunpack.c.0.s8 %v651
    %v653 = vlaneseq
    %v654 = vshrl.u32 %v653, 7
    %v655 = vsub.s32 %v652, %v654
    %v656 = vrot.slane %v649, %v655
    %v658 = vunpack.c.l.s4 1966171168
    %v659 = vunpack.c.0.s8 %v658
    %v660 = vlaneseq
    %v661 = vshrl.u32 %v660, 7
    %v662 = vsub.s32 %v659, %v661
    %v663 = vrot.slane %v656, %v662
    %s665 = scalar_lea.vmem [#allocation2], 16
    %666 = vst.msk [vmem:[%s665] ss:$2 sm:$0x3] %vm628, %v663
    %v667 = vcombine.high %v656, %v656
    %v669 = vunpack.c.l.s4 1966171168
    %v670 = vunpack.c.0.s8 %v669
    %v671 = vlaneseq
    %v672 = vshrl.u32 %v671, 7
    %v673 = vsub.s32 %v670, %v672
    %v674 = vrot.slane %v667, %v673
    %s676 = scalar_lea.vmem [#allocation2], 20
    %677 = vst.msk [vmem:[%s676] ss:$2 sm:$0x3] %vm628, %v674
    %v678 = vcombine.high %v663, %v663
    %s680 = scalar_lea.vmem [#allocation2], 24
    %681 = vst.msk [vmem:[%s680] ss:$2 sm:$0x3] %vm628, %v678
    %v682 = vcombine.high %v674, %v674
    %s684 = scalar_lea.vmem [#allocation2], 28
    %685 = vst.msk [vmem:[%s684] ss:$2 sm:$0x3] %vm628, %v682
    %v688 = vcombine.low %v605, %v606
    %v690 = vunpack.c.l.s4 1966171168
    %v691 = vunpack.c.0.s8 %v690
    %v692 = vlaneseq
    %v693 = vshrl.u32 %v692, 7
    %v694 = vsub.s32 %v691, %v693
    %v695 = vrot.slane %v688, %v694
    %v697 = vunpack.c.l.s4 1966171168
    %v698 = vunpack.c.0.s8 %v697
    %v699 = vlaneseq
    %v700 = vshrl.u32 %v699, 7
    %v701 = vsub.s32 %v698, %v700
    %v702 = vrot.slane %v695, %v701
    %s704 = scalar_lea.vmem [#allocation2], 32
    %705 = vst.msk [vmem:[%s704] ss:$2 sm:$0x3] %vm628, %v702
    %v706 = vcombine.high %v695, %v695
    %v708 = vunpack.c.l.s4 1966171168
    %v709 = vunpack.c.0.s8 %v708
    %v710 = vlaneseq
    %v711 = vshrl.u32 %v710, 7
    %v712 = vsub.s32 %v709, %v711
    %v713 = vrot.slane %v706, %v712
    %s715 = scalar_lea.vmem [#allocation2], 36
    %716 = vst.msk [vmem:[%s715] ss:$2 sm:$0x3] %vm628, %v713
    %v717 = vcombine.high %v702, %v702
    %s719 = scalar_lea.vmem [#allocation2], 40
    %720 = vst.msk [vmem:[%s719] ss:$2 sm:$0x3] %vm628, %v717
    %v721 = vcombine.high %v713, %v713
    %s723 = scalar_lea.vmem [#allocation2], 44
    %724 = vst.msk [vmem:[%s723] ss:$2 sm:$0x3] %vm628, %v721
    %v725 = vcombine.high %v605, %v606
    %v727 = vunpack.c.l.s4 1966171168
    %v728 = vunpack.c.0.s8 %v727
    %v729 = vlaneseq
    %v730 = vshrl.u32 %v729, 7
    %v731 = vsub.s32 %v728, %v730
    %v732 = vrot.slane %v725, %v731
    %v734 = vunpack.c.l.s4 1966171168
    %v735 = vunpack.c.0.s8 %v734
    %v736 = vlaneseq
    %v737 = vshrl.u32 %v736, 7
    %v738 = vsub.s32 %v735, %v737
    %v739 = vrot.slane %v732, %v738
    %s741 = scalar_lea.vmem [#allocation2], 48
    %742 = vst.msk [vmem:[%s741] ss:$2 sm:$0x3] %vm628, %v739
    %v743 = vcombine.high %v732, %v732
    %v745 = vunpack.c.l.s4 1966171168
    %v746 = vunpack.c.0.s8 %v745
    %v747 = vlaneseq
    %v748 = vshrl.u32 %v747, 7
    %v749 = vsub.s32 %v746, %v748
    %v750 = vrot.slane %v743, %v749
    %s752 = scalar_lea.vmem [#allocation2], 52
    %753 = vst.msk [vmem:[%s752] ss:$2 sm:$0x3] %vm628, %v750
    %v754 = vcombine.high %v739, %v739
    %s756 = scalar_lea.vmem [#allocation2], 56
    %757 = vst.msk [vmem:[%s756] ss:$2 sm:$0x3] %vm628, %v754
    %v758 = vcombine.high %v750, %v750
    %s760 = scalar_lea.vmem [#allocation2], 60
    %761 = vst.msk [vmem:[%s760] ss:$2 sm:$0x3] %vm628, %v758
    %v762 = vmax.f32 %v438, %v481
    %v763 = vmax.f32 %v440, %v483
    %v764 = vmax.f32 %v442, %v485
    %v765 = vmax.f32 %v444, %v487
    %v766 = vmax.f32 %v762, %v524
    %v767 = vmax.f32 %v763, %v526
    %v768 = vmax.f32 %v764, %v528
    %v769 = vmax.f32 %v765, %v530
    %v770 = vmax.f32 %v766, %v567
    %v771 = vmax.f32 %v767, %v569
    %v772 = vmax.f32 %v768, %v571
    %v773 = vmax.f32 %v769, %v573
    %v774 = vadd.f32 %v770, %v592
    %v775 = vadd.f32 %v771, %v592
    %v776 = vadd.f32 %v772, %v597
    %v777 = vadd.f32 %v773, %v597
    %v778 = vmax.f32 %v774, 0.0
    %v779 = vmax.f32 %v775, 0.0
    %v780 = vmax.f32 %v776, 0.0
    %v781 = vmax.f32 %v777, 0.0
    %v784 = vcombine.low %v778, %v779
    %v786 = vunpack.c.l.s4 1966171168
    %v787 = vunpack.c.0.s8 %v786
    %v788 = vlaneseq
    %v789 = vshrl.u32 %v788, 7
    %v790 = vsub.s32 %v787, %v789
    %v791 = vrot.slane %v784, %v790
    %v793 = vunpack.c.l.s4 1966171168
    %v794 = vunpack.c.0.s8 %v793
    %v795 = vlaneseq
    %v796 = vshrl.u32 %v795, 7
    %v797 = vsub.s32 %v794, %v796
    %v798 = vrot.slane %v791, %v797
    %s800 = scalar_lea.vmem [#allocation2], 1
    %801 = vst.msk [vmem:[%s800] ss:$2 sm:$0x3] %vm628, %v798
    %v802 = vcombine.high %v791, %v791
    %v804 = vunpack.c.l.s4 1966171168
    %v805 = vunpack.c.0.s8 %v804
    %v806 = vlaneseq
    %v807 = vshrl.u32 %v806, 7
    %v808 = vsub.s32 %v805, %v807
    %v809 = vrot.slane %v802, %v808
    %s811 = scalar_lea.vmem [#allocation2], 5
    %812 = vst.msk [vmem:[%s811] ss:$2 sm:$0x3] %vm628, %v809
    %v813 = vcombine.high %v798, %v798
    %s815 = scalar_lea.vmem [#allocation2], 9
    %816 = vst.msk [vmem:[%s815] ss:$2 sm:$0x3] %vm628, %v813
    %v817 = vcombine.high %v809, %v809
    %s819 = scalar_lea.vmem [#allocation2], 13
    %820 = vst.msk [vmem:[%s819] ss:$2 sm:$0x3] %vm628, %v817
    %v821 = vcombine.high %v778, %v779
    %v823 = vunpack.c.l.s4 1966171168
    %v824 = vunpack.c.0.s8 %v823
    %v825 = vlaneseq
    %v826 = vshrl.u32 %v825, 7
    %v827 = vsub.s32 %v824, %v826
    %v828 = vrot.slane %v821, %v827
    %v830 = vunpack.c.l.s4 1966171168
    %v831 = vunpack.c.0.s8 %v830
    %v832 = vlaneseq
    %v833 = vshrl.u32 %v832, 7
    %v834 = vsub.s32 %v831, %v833
    %v835 = vrot.slane %v828, %v834
    %s837 = scalar_lea.vmem [#allocation2], 17
    %838 = vst.msk [vmem:[%s837] ss:$2 sm:$0x3] %vm628, %v835
    %v839 = vcombine.high %v828, %v828
    %v841 = vunpack.c.l.s4 1966171168
    %v842 = vunpack.c.0.s8 %v841
    %v843 = vlaneseq
    %v844 = vshrl.u32 %v843, 7
    %v845 = vsub.s32 %v842, %v844
    %v846 = vrot.slane %v839, %v845
    %s848 = scalar_lea.vmem [#allocation2], 21
    %849 = vst.msk [vmem:[%s848] ss:$2 sm:$0x3] %vm628, %v846
    %v850 = vcombine.high %v835, %v835
    %s852 = scalar_lea.vmem [#allocation2], 25
    %853 = vst.msk [vmem:[%s852] ss:$2 sm:$0x3] %vm628, %v850
    %v854 = vcombine.high %v846, %v846
    %s856 = scalar_lea.vmem [#allocation2], 29
    %857 = vst.msk [vmem:[%s856] ss:$2 sm:$0x3] %vm628, %v854
    %v860 = vcombine.low %v780, %v781
    %v862 = vunpack.c.l.s4 1966171168
    %v863 = vunpack.c.0.s8 %v862
    %v864 = vlaneseq
    %v865 = vshrl.u32 %v864, 7
    %v866 = vsub.s32 %v863, %v865
    %v867 = vrot.slane %v860, %v866
    %v869 = vunpack.c.l.s4 1966171168
    %v870 = vunpack.c.0.s8 %v869
    %v871 = vlaneseq
    %v872 = vshrl.u32 %v871, 7
    %v873 = vsub.s32 %v870, %v872
    %v874 = vrot.slane %v867, %v873
    %s876 = scalar_lea.vmem [#allocation2], 33
    %877 = vst.msk [vmem:[%s876] ss:$2 sm:$0x3] %vm628, %v874
    %v878 = vcombine.high %v867, %v867
    %v880 = vunpack.c.l.s4 1966171168
    %v881 = vunpack.c.0.s8 %v880
    %v882 = vlaneseq
    %v883 = vshrl.u32 %v882, 7
    %v884 = vsub.s32 %v881, %v883
    %v885 = vrot.slane %v878, %v884
    %s887 = scalar_lea.vmem [#allocation2], 37
    %888 = vst.msk [vmem:[%s887] ss:$2 sm:$0x3] %vm628, %v885
    %v889 = vcombine.high %v874, %v874
    %s891 = scalar_lea.vmem [#allocation2], 41
    %892 = vst.msk [vmem:[%s891] ss:$2 sm:$0x3] %vm628, %v889
    %v893 = vcombine.high %v885, %v885
    %s895 = scalar_lea.vmem [#allocation2], 45
    %896 = vst.msk [vmem:[%s895] ss:$2 sm:$0x3] %vm628, %v893
    %v897 = vcombine.high %v780, %v781
    %v899 = vunpack.c.l.s4 1966171168
    %v900 = vunpack.c.0.s8 %v899
    %v901 = vlaneseq
    %v902 = vshrl.u32 %v901, 7
    %v903 = vsub.s32 %v900, %v902
    %v904 = vrot.slane %v897, %v903
    %v906 = vunpack.c.l.s4 1966171168
    %v907 = vunpack.c.0.s8 %v906
    %v908 = vlaneseq
    %v909 = vshrl.u32 %v908, 7
    %v910 = vsub.s32 %v907, %v909
    %v911 = vrot.slane %v904, %v910
    %s913 = scalar_lea.vmem [#allocation2], 49
    %914 = vst.msk [vmem:[%s913] ss:$2 sm:$0x3] %vm628, %v911
    %v915 = vcombine.high %v904, %v904
    %v917 = vunpack.c.l.s4 1966171168
    %v918 = vunpack.c.0.s8 %v917
    %v919 = vlaneseq
    %v920 = vshrl.u32 %v919, 7
    %v921 = vsub.s32 %v918, %v920
    %v922 = vrot.slane %v915, %v921
    %s924 = scalar_lea.vmem [#allocation2], 53
    %925 = vst.msk [vmem:[%s924] ss:$2 sm:$0x3] %vm628, %v922
    %v926 = vcombine.high %v911, %v911
    %s928 = scalar_lea.vmem [#allocation2], 57
    %929 = vst.msk [vmem:[%s928] ss:$2 sm:$0x3] %vm628, %v926
    %v930 = vcombine.high %v922, %v922
    %s932 = scalar_lea.vmem [#allocation2], 61
    %933 = vst.msk [vmem:[%s932] ss:$2 sm:$0x3] %vm628, %v930
    %v934 = vld [vmem:[#allocation2] sm:$0xff]
    %v935 = vld [vmem:[#allocation2 + $0x8] sm:$0xff]
    %v936 = vld [vmem:[#allocation2 + $0x10] sm:$0xff]
    %v937 = vld [vmem:[#allocation2 + $0x18] sm:$0xff]
    %v938 = vld [vmem:[#allocation2 + $0x20] sm:$0xff]
    %v939 = vld [vmem:[#allocation2 + $0x28] sm:$0xff]
    %v940 = vld [vmem:[#allocation2 + $0x30] sm:$0xff]
    %v941 = vld [vmem:[#allocation2 + $0x38] sm:$0xff]
    %v950 = vcombine.high %v934, %v934
    %v952 = vunpack.c.l.s4 1983009808
    %v953 = vunpack.c.0.s8 %v952
    %v954 = vlaneseq
    %v955 = vshrl.u32 %v954, 7
    %v956 = vsub.s32 %v953, %v955
    %v957 = vrot.slane %v934, %v956
    %v959 = vunpack.c.l.s4 1983009808
    %v960 = vunpack.c.0.s8 %v959
    %v961 = vlaneseq
    %v962 = vshrl.u32 %v961, 7
    %v963 = vsub.s32 %v960, %v962
    %v964 = vrot.slane %v950, %v963
    %v965 = vcombine.high %v957, %v957
    %v966 = vcombine.high %v964, %v964
    %v967 = vcombine.high %v935, %v935
    %v969 = vunpack.c.l.s4 1983009808
    %v970 = vunpack.c.0.s8 %v969
    %v971 = vlaneseq
    %v972 = vshrl.u32 %v971, 7
    %v973 = vsub.s32 %v970, %v972
    %v974 = vrot.slane %v935, %v973
    %v976 = vunpack.c.l.s4 1983009808
    %v977 = vunpack.c.0.s8 %v976
    %v978 = vlaneseq
    %v979 = vshrl.u32 %v978, 7
    %v980 = vsub.s32 %v977, %v979
    %v981 = vrot.slane %v967, %v980
    %v982 = vcombine.high %v974, %v974
    %v983 = vcombine.high %v981, %v981
    %v984 = vcombine.high %v936, %v936
    %v986 = vunpack.c.l.s4 1983009808
    %v987 = vunpack.c.0.s8 %v986
    %v988 = vlaneseq
    %v989 = vshrl.u32 %v988, 7
    %v990 = vsub.s32 %v987, %v989
    %v991 = vrot.slane %v936, %v990
    %v993 = vunpack.c.l.s4 1983009808
    %v994 = vunpack.c.0.s8 %v993
    %v995 = vlaneseq
    %v996 = vshrl.u32 %v995, 7
    %v997 = vsub.s32 %v994, %v996
    %v998 = vrot.slane %v984, %v997
    %v999 = vcombine.high %v991, %v991
    %v1000 = vcombine.high %v998, %v998
    %v1001 = vcombine.high %v937, %v937
    %v1003 = vunpack.c.l.s4 1983009808
    %v1004 = vunpack.c.0.s8 %v1003
    %v1005 = vlaneseq
    %v1006 = vshrl.u32 %v1005, 7
    %v1007 = vsub.s32 %v1004, %v1006
    %v1008 = vrot.slane %v937, %v1007
    %v1010 = vunpack.c.l.s4 1983009808
    %v1011 = vunpack.c.0.s8 %v1010
    %v1012 = vlaneseq
    %v1013 = vshrl.u32 %v1012, 7
    %v1014 = vsub.s32 %v1011, %v1013
    %v1015 = vrot.slane %v1001, %v1014
    %v1016 = vcombine.high %v1008, %v1008
    %v1017 = vcombine.high %v1015, %v1015
    %v1018 = vcombine.high %v938, %v938
    %v1020 = vunpack.c.l.s4 1983009808
    %v1021 = vunpack.c.0.s8 %v1020
    %v1022 = vlaneseq
    %v1023 = vshrl.u32 %v1022, 7
    %v1024 = vsub.s32 %v1021, %v1023
    %v1025 = vrot.slane %v938, %v1024
    %v1027 = vunpack.c.l.s4 1983009808
    %v1028 = vunpack.c.0.s8 %v1027
    %v1029 = vlaneseq
    %v1030 = vshrl.u32 %v1029, 7
    %v1031 = vsub.s32 %v1028, %v1030
    %v1032 = vrot.slane %v1018, %v1031
    %v1033 = vcombine.high %v1025, %v1025
    %v1034 = vcombine.high %v1032, %v1032
    %v1035 = vcombine.high %v939, %v939
    %v1037 = vunpack.c.l.s4 1983009808
    %v1038 = vunpack.c.0.s8 %v1037
    %v1039 = vlaneseq
    %v1040 = vshrl.u32 %v1039, 7
    %v1041 = vsub.s32 %v1038, %v1040
    %v1042 = vrot.slane %v939, %v1041
    %v1044 = vunpack.c.l.s4 1983009808
    %v1045 = vunpack.c.0.s8 %v1044
    %v1046 = vlaneseq
    %v1047 = vshrl.u32 %v1046, 7
    %v1048 = vsub.s32 %v1045, %v1047
    %v1049 = vrot.slane %v1035, %v1048
    %v1050 = vcombine.high %v1042, %v1042
    %v1051 = vcombine.high %v1049, %v1049
    %v1052 = vcombine.high %v940, %v940
    %v1054 = vunpack.c.l.s4 1983009808
    %v1055 = vunpack.c.0.s8 %v1054
    %v1056 = vlaneseq
    %v1057 = vshrl.u32 %v1056, 7
    %v1058 = vsub.s32 %v1055, %v1057
    %v1059 = vrot.slane %v940, %v1058
    %v1061 = vunpack.c.l.s4 1983009808
    %v1062 = vunpack.c.0.s8 %v1061
    %v1063 = vlaneseq
    %v1064 = vshrl.u32 %v1063, 7
    %v1065 = vsub.s32 %v1062, %v1064
    %v1066 = vrot.slane %v1052, %v1065
    %v1067 = vcombine.high %v1059, %v1059
    %v1068 = vcombine.high %v1066, %v1066
    %v1069 = vcombine.high %v941, %v941
    %v1071 = vunpack.c.l.s4 1983009808
    %v1072 = vunpack.c.0.s8 %v1071
    %v1073 = vlaneseq
    %v1074 = vshrl.u32 %v1073, 7
    %v1075 = vsub.s32 %v1072, %v1074
    %v1076 = vrot.slane %v941, %v1075
    %v1078 = vunpack.c.l.s4 1983009808
    %v1079 = vunpack.c.0.s8 %v1078
    %v1080 = vlaneseq
    %v1081 = vshrl.u32 %v1080, 7
    %v1082 = vsub.s32 %v1079, %v1081
    %v1083 = vrot.slane %v1069, %v1082
    %v1084 = vcombine.high %v1076, %v1076
    %v1085 = vcombine.high %v1083, %v1083
    %v1118 = vpack.c.bf16 %v957, %v957
    %v1119 = vpack.c.bf16 %v965, %v965
    %v1120 = vpack.c.bf16 %v964, %v964
    %v1121 = vpack.c.bf16 %v966, %v966
    %v1122 = vpack.c.bf16 %v974, %v974
    %v1123 = vpack.c.bf16 %v982, %v982
    %v1124 = vpack.c.bf16 %v981, %v981
    %v1125 = vpack.c.bf16 %v983, %v983
    %v1126 = vpack.c.bf16 %v991, %v991
    %v1127 = vpack.c.bf16 %v999, %v999
    %v1128 = vpack.c.bf16 %v998, %v998
    %v1129 = vpack.c.bf16 %v1000, %v1000
    %v1130 = vpack.c.bf16 %v1008, %v1008
    %v1131 = vpack.c.bf16 %v1016, %v1016
    %v1132 = vpack.c.bf16 %v1015, %v1015
    %v1133 = vpack.c.bf16 %v1017, %v1017
    %v1134 = vpack.c.bf16 %v1025, %v1025
    %v1135 = vpack.c.bf16 %v1033, %v1033
    %v1136 = vpack.c.bf16 %v1032, %v1032
    %v1137 = vpack.c.bf16 %v1034, %v1034
    %v1138 = vpack.c.bf16 %v1042, %v1042
    %v1139 = vpack.c.bf16 %v1050, %v1050
    %v1140 = vpack.c.bf16 %v1049, %v1049
    %v1141 = vpack.c.bf16 %v1051, %v1051
    %v1142 = vpack.c.bf16 %v1059, %v1059
    %v1143 = vpack.c.bf16 %v1067, %v1067
    %v1144 = vpack.c.bf16 %v1066, %v1066
    %v1145 = vpack.c.bf16 %v1068, %v1068
    %v1146 = vpack.c.bf16 %v1076, %v1076
    %v1147 = vpack.c.bf16 %v1084, %v1084
    %v1148 = vpack.c.bf16 %v1083, %v1083
    %v1149 = vpack.c.bf16 %v1085, %v1085
    %v1150 = vld [vmem:[%s3] sm:$0xf]
    %v1151 = vld [vmem:[%s3 + $0x4] sm:$0xf]
    %v1152 = vld [vmem:[%s3 + $0x8] sm:$0xf]
    %v1153 = vld [vmem:[%s3 + $0xc] sm:$0xf]
    %v1154 = vld [vmem:[%s3 + $0x10] sm:$0xf]
    %v1155 = vld [vmem:[%s3 + $0x14] sm:$0xf]
    %v1156 = vld [vmem:[%s3 + $0x18] sm:$0xf]
    %v1157 = vld [vmem:[%s3 + $0x1c] sm:$0xf]
    %v1158 = vld [vmem:[%s3 + $0x20] sm:$0xf]
    %v1159 = vld [vmem:[%s3 + $0x24] sm:$0xf]
    %v1160 = vld [vmem:[%s3 + $0x28] sm:$0xf]
    %v1161 = vld [vmem:[%s3 + $0x2c] sm:$0xf]
    %v1162 = vld [vmem:[%s3 + $0x30] sm:$0xf]
    %v1163 = vld [vmem:[%s3 + $0x34] sm:$0xf]
    %v1164 = vld [vmem:[%s3 + $0x38] sm:$0xf]
    %v1165 = vld [vmem:[%s3 + $0x3c] sm:$0xf]
    %v1166 = vld [vmem:[%s3 + $0x40] sm:$0xf]
    %v1167 = vld [vmem:[%s3 + $0x44] sm:$0xf]
    %v1168 = vld [vmem:[%s3 + $0x48] sm:$0xf]
    %v1169 = vld [vmem:[%s3 + $0x4c] sm:$0xf]
    %v1170 = vld [vmem:[%s3 + $0x50] sm:$0xf]
    %v1171 = vld [vmem:[%s3 + $0x54] sm:$0xf]
    %v1172 = vld [vmem:[%s3 + $0x58] sm:$0xf]
    %v1173 = vld [vmem:[%s3 + $0x5c] sm:$0xf]
    %v1174 = vld [vmem:[%s3 + $0x60] sm:$0xf]
    %v1175 = vld [vmem:[%s3 + $0x64] sm:$0xf]
    %v1176 = vld [vmem:[%s3 + $0x68] sm:$0xf]
    %v1177 = vld [vmem:[%s3 + $0x6c] sm:$0xf]
    %v1178 = vld [vmem:[%s3 + $0x70] sm:$0xf]
    %v1179 = vld [vmem:[%s3 + $0x74] sm:$0xf]
    %v1180 = vld [vmem:[%s3 + $0x78] sm:$0xf]
    %v1181 = vld [vmem:[%s3 + $0x7c] sm:$0xf]
    %v1182 = vld [vmem:[%s3 + $0x80] sm:$0xf]
    %v1183 = vld [vmem:[%s3 + $0x84] sm:$0xf]
    %v1184 = vld [vmem:[%s3 + $0x88] sm:$0xf]
    %v1185 = vld [vmem:[%s3 + $0x8c] sm:$0xf]
    %v1186 = vld [vmem:[%s3 + $0x90] sm:$0xf]
    %v1187 = vld [vmem:[%s3 + $0x94] sm:$0xf]
    %v1188 = vld [vmem:[%s3 + $0x98] sm:$0xf]
    %v1189 = vld [vmem:[%s3 + $0x9c] sm:$0xf]
    %v1190 = vld [vmem:[%s3 + $0xa0] sm:$0xf]
    %v1191 = vld [vmem:[%s3 + $0xa4] sm:$0xf]
    %v1192 = vld [vmem:[%s3 + $0xa8] sm:$0xf]
    %v1193 = vld [vmem:[%s3 + $0xac] sm:$0xf]
    %v1194 = vld [vmem:[%s3 + $0xb0] sm:$0xf]
    %v1195 = vld [vmem:[%s3 + $0xb4] sm:$0xf]
    %v1196 = vld [vmem:[%s3 + $0xb8] sm:$0xf]
    %v1197 = vld [vmem:[%s3 + $0xbc] sm:$0xf]
    %v1198 = vld [vmem:[%s3 + $0xc0] sm:$0xf]
    %v1199 = vld [vmem:[%s3 + $0xc4] sm:$0xf]
    %v1200 = vld [vmem:[%s3 + $0xc8] sm:$0xf]
    %v1201 = vld [vmem:[%s3 + $0xcc] sm:$0xf]
    %v1202 = vld [vmem:[%s3 + $0xd0] sm:$0xf]
    %v1203 = vld [vmem:[%s3 + $0xd4] sm:$0xf]
    %v1204 = vld [vmem:[%s3 + $0xd8] sm:$0xf]
    %v1205 = vld [vmem:[%s3 + $0xdc] sm:$0xf]
    %v1206 = vld [vmem:[%s3 + $0xe0] sm:$0xf]
    %v1207 = vld [vmem:[%s3 + $0xe4] sm:$0xf]
    %v1208 = vld [vmem:[%s3 + $0xe8] sm:$0xf]
    %v1209 = vld [vmem:[%s3 + $0xec] sm:$0xf]
    %v1210 = vld [vmem:[%s3 + $0xf0] sm:$0xf]
    %v1211 = vld [vmem:[%s3 + $0xf4] sm:$0xf]
    %v1212 = vld [vmem:[%s3 + $0xf8] sm:$0xf]
    %v1213 = vld [vmem:[%s3 + $0xfc] sm:$0xf]
    %v1214 = vld [vmem:[%s3 + $0x100] sm:$0xf]
    %v1215 = vld [vmem:[%s3 + $0x104] sm:$0xf]
    %v1216 = vld [vmem:[%s3 + $0x108] sm:$0xf]
    %v1217 = vld [vmem:[%s3 + $0x10c] sm:$0xf]
    %v1218 = vld [vmem:[%s3 + $0x110] sm:$0xf]
    %v1219 = vld [vmem:[%s3 + $0x114] sm:$0xf]
    %v1220 = vld [vmem:[%s3 + $0x118] sm:$0xf]
    %v1221 = vld [vmem:[%s3 + $0x11c] sm:$0xf]
    %v1222 = vld [vmem:[%s3 + $0x120] sm:$0xf]
    %v1223 = vld [vmem:[%s3 + $0x124] sm:$0xf]
    %v1224 = vld [vmem:[%s3 + $0x128] sm:$0xf]
    %v1225 = vld [vmem:[%s3 + $0x12c] sm:$0xf]
    %v1226 = vld [vmem:[%s3 + $0x130] sm:$0xf]
    %v1227 = vld [vmem:[%s3 + $0x134] sm:$0xf]
    %v1228 = vld [vmem:[%s3 + $0x138] sm:$0xf]
    %v1229 = vld [vmem:[%s3 + $0x13c] sm:$0xf]
    %v1230 = vld [vmem:[%s3 + $0x140] sm:$0xf]
    %v1231 = vld [vmem:[%s3 + $0x144] sm:$0xf]
    %v1232 = vld [vmem:[%s3 + $0x148] sm:$0xf]
    %v1233 = vld [vmem:[%s3 + $0x14c] sm:$0xf]
    %v1234 = vld [vmem:[%s3 + $0x150] sm:$0xf]
    %v1235 = vld [vmem:[%s3 + $0x154] sm:$0xf]
    %v1236 = vld [vmem:[%s3 + $0x158] sm:$0xf]
    %v1237 = vld [vmem:[%s3 + $0x15c] sm:$0xf]
    %v1238 = vld [vmem:[%s3 + $0x160] sm:$0xf]
    %v1239 = vld [vmem:[%s3 + $0x164] sm:$0xf]
    %v1240 = vld [vmem:[%s3 + $0x168] sm:$0xf]
    %v1241 = vld [vmem:[%s3 + $0x16c] sm:$0xf]
    %v1242 = vld [vmem:[%s3 + $0x170] sm:$0xf]
    %v1243 = vld [vmem:[%s3 + $0x174] sm:$0xf]
    %v1244 = vld [vmem:[%s3 + $0x178] sm:$0xf]
    %v1245 = vld [vmem:[%s3 + $0x17c] sm:$0xf]
    %v1246 = vld [vmem:[%s3 + $0x180] sm:$0xf]
    %v1247 = vld [vmem:[%s3 + $0x184] sm:$0xf]
    %v1248 = vld [vmem:[%s3 + $0x188] sm:$0xf]
    %v1249 = vld [vmem:[%s3 + $0x18c] sm:$0xf]
    %v1250 = vld [vmem:[%s3 + $0x190] sm:$0xf]
    %v1251 = vld [vmem:[%s3 + $0x194] sm:$0xf]
    %v1252 = vld [vmem:[%s3 + $0x198] sm:$0xf]
    %v1253 = vld [vmem:[%s3 + $0x19c] sm:$0xf]
    %v1254 = vld [vmem:[%s3 + $0x1a0] sm:$0xf]
    %v1255 = vld [vmem:[%s3 + $0x1a4] sm:$0xf]
    %v1256 = vld [vmem:[%s3 + $0x1a8] sm:$0xf]
    %v1257 = vld [vmem:[%s3 + $0x1ac] sm:$0xf]
    %v1258 = vld [vmem:[%s3 + $0x1b0] sm:$0xf]
    %v1259 = vld [vmem:[%s3 + $0x1b4] sm:$0xf]
    %v1260 = vld [vmem:[%s3 + $0x1b8] sm:$0xf]
    %v1261 = vld [vmem:[%s3 + $0x1bc] sm:$0xf]
    %v1262 = vld [vmem:[%s3 + $0x1c0] sm:$0xf]
    %v1263 = vld [vmem:[%s3 + $0x1c4] sm:$0xf]
    %v1264 = vld [vmem:[%s3 + $0x1c8] sm:$0xf]
    %v1265 = vld [vmem:[%s3 + $0x1cc] sm:$0xf]
    %v1266 = vld [vmem:[%s3 + $0x1d0] sm:$0xf]
    %v1267 = vld [vmem:[%s3 + $0x1d4] sm:$0xf]
    %v1268 = vld [vmem:[%s3 + $0x1d8] sm:$0xf]
    %v1269 = vld [vmem:[%s3 + $0x1dc] sm:$0xf]
    %v1270 = vld [vmem:[%s3 + $0x1e0] sm:$0xf]
    %v1271 = vld [vmem:[%s3 + $0x1e4] sm:$0xf]
    %v1272 = vld [vmem:[%s3 + $0x1e8] sm:$0xf]
    %v1273 = vld [vmem:[%s3 + $0x1ec] sm:$0xf]
    %v1274 = vld [vmem:[%s3 + $0x1f0] sm:$0xf]
    %v1275 = vld [vmem:[%s3 + $0x1f4] sm:$0xf]
    %v1276 = vld [vmem:[%s3 + $0x1f8] sm:$0xf]
    %v1277 = vld [vmem:[%s3 + $0x1fc] sm:$0xf]
    %v1278 = vld [vmem:[%s3 + $0x200] sm:$0xf]
    %v1279 = vld [vmem:[%s3 + $0x204] sm:$0xf]
    %v1280 = vld [vmem:[%s3 + $0x208] sm:$0xf]
    %v1281 = vld [vmem:[%s3 + $0x20c] sm:$0xf]
    %v1282 = vld [vmem:[%s3 + $0x210] sm:$0xf]
    %v1283 = vld [vmem:[%s3 + $0x214] sm:$0xf]
    %v1284 = vld [vmem:[%s3 + $0x218] sm:$0xf]
    %v1285 = vld [vmem:[%s3 + $0x21c] sm:$0xf]
    %v1286 = vld [vmem:[%s3 + $0x220] sm:$0xf]
    %v1287 = vld [vmem:[%s3 + $0x224] sm:$0xf]
    %v1288 = vld [vmem:[%s3 + $0x228] sm:$0xf]
    %v1289 = vld [vmem:[%s3 + $0x22c] sm:$0xf]
    %v1290 = vld [vmem:[%s3 + $0x230] sm:$0xf]
    %v1291 = vld [vmem:[%s3 + $0x234] sm:$0xf]
    %v1292 = vld [vmem:[%s3 + $0x238] sm:$0xf]
    %v1293 = vld [vmem:[%s3 + $0x23c] sm:$0xf]
    %v1294 = vld [vmem:[%s3 + $0x240] sm:$0xf]
    %v1295 = vld [vmem:[%s3 + $0x244] sm:$0xf]
    %v1296 = vld [vmem:[%s3 + $0x248] sm:$0xf]
    %v1297 = vld [vmem:[%s3 + $0x24c] sm:$0xf]
    %v1298 = vld [vmem:[%s3 + $0x250] sm:$0xf]
    %v1299 = vld [vmem:[%s3 + $0x254] sm:$0xf]
    %v1300 = vld [vmem:[%s3 + $0x258] sm:$0xf]
    %v1301 = vld [vmem:[%s3 + $0x25c] sm:$0xf]
    %v1302 = vld [vmem:[%s3 + $0x260] sm:$0xf]
    %v1303 = vld [vmem:[%s3 + $0x264] sm:$0xf]
    %v1304 = vld [vmem:[%s3 + $0x268] sm:$0xf]
    %v1305 = vld [vmem:[%s3 + $0x26c] sm:$0xf]
    %v1306 = vld [vmem:[%s3 + $0x270] sm:$0xf]
    %v1307 = vld [vmem:[%s3 + $0x274] sm:$0xf]
    %v1308 = vld [vmem:[%s3 + $0x278] sm:$0xf]
    %v1309 = vld [vmem:[%s3 + $0x27c] sm:$0xf]
    %v1310 = vld [vmem:[%s3 + $0x280] sm:$0xf]
    %v1311 = vld [vmem:[%s3 + $0x284] sm:$0xf]
    %v1312 = vld [vmem:[%s3 + $0x288] sm:$0xf]
    %v1313 = vld [vmem:[%s3 + $0x28c] sm:$0xf]
    %v1314 = vld [vmem:[%s3 + $0x290] sm:$0xf]
    %v1315 = vld [vmem:[%s3 + $0x294] sm:$0xf]
    %v1316 = vld [vmem:[%s3 + $0x298] sm:$0xf]
    %v1317 = vld [vmem:[%s3 + $0x29c] sm:$0xf]
    %v1318 = vld [vmem:[%s3 + $0x2a0] sm:$0xf]
    %v1319 = vld [vmem:[%s3 + $0x2a4] sm:$0xf]
    %v1320 = vld [vmem:[%s3 + $0x2a8] sm:$0xf]
    %v1321 = vld [vmem:[%s3 + $0x2ac] sm:$0xf]
    %v1322 = vld [vmem:[%s3 + $0x2b0] sm:$0xf]
    %v1323 = vld [vmem:[%s3 + $0x2b4] sm:$0xf]
    %v1324 = vld [vmem:[%s3 + $0x2b8] sm:$0xf]
    %v1325 = vld [vmem:[%s3 + $0x2bc] sm:$0xf]
    %v1326 = vld [vmem:[%s3 + $0x2c0] sm:$0xf]
    %v1327 = vld [vmem:[%s3 + $0x2c4] sm:$0xf]
    %v1328 = vld [vmem:[%s3 + $0x2c8] sm:$0xf]
    %v1329 = vld [vmem:[%s3 + $0x2cc] sm:$0xf]
    %v1330 = vld [vmem:[%s3 + $0x2d0] sm:$0xf]
    %v1331 = vld [vmem:[%s3 + $0x2d4] sm:$0xf]
    %v1332 = vld [vmem:[%s3 + $0x2d8] sm:$0xf]
    %v1333 = vld [vmem:[%s3 + $0x2dc] sm:$0xf]
    %v1334 = vld [vmem:[%s3 + $0x2e0] sm:$0xf]
    %v1335 = vld [vmem:[%s3 + $0x2e4] sm:$0xf]
    %v1336 = vld [vmem:[%s3 + $0x2e8] sm:$0xf]
    %v1337 = vld [vmem:[%s3 + $0x2ec] sm:$0xf]
    %v1338 = vld [vmem:[%s3 + $0x2f0] sm:$0xf]
    %v1339 = vld [vmem:[%s3 + $0x2f4] sm:$0xf]
    %v1340 = vld [vmem:[%s3 + $0x2f8] sm:$0xf]
    %v1341 = vld [vmem:[%s3 + $0x2fc] sm:$0xf]
    %v1342 = vld [vmem:[%s3 + $0x300] sm:$0xf]
    %v1343 = vld [vmem:[%s3 + $0x304] sm:$0xf]
    %v1344 = vld [vmem:[%s3 + $0x308] sm:$0xf]
    %v1345 = vld [vmem:[%s3 + $0x30c] sm:$0xf]
    %v1346 = vld [vmem:[%s3 + $0x310] sm:$0xf]
    %v1347 = vld [vmem:[%s3 + $0x314] sm:$0xf]
    %v1348 = vld [vmem:[%s3 + $0x318] sm:$0xf]
    %v1349 = vld [vmem:[%s3 + $0x31c] sm:$0xf]
    %v1350 = vld [vmem:[%s3 + $0x320] sm:$0xf]
    %v1351 = vld [vmem:[%s3 + $0x324] sm:$0xf]
    %v1352 = vld [vmem:[%s3 + $0x328] sm:$0xf]
    %v1353 = vld [vmem:[%s3 + $0x32c] sm:$0xf]
    %v1354 = vld [vmem:[%s3 + $0x330] sm:$0xf]
    %v1355 = vld [vmem:[%s3 + $0x334] sm:$0xf]
    %v1356 = vld [vmem:[%s3 + $0x338] sm:$0xf]
    %v1357 = vld [vmem:[%s3 + $0x33c] sm:$0xf]
    %v1358 = vld [vmem:[%s3 + $0x340] sm:$0xf]
    %v1359 = vld [vmem:[%s3 + $0x344] sm:$0xf]
    %v1360 = vld [vmem:[%s3 + $0x348] sm:$0xf]
    %v1361 = vld [vmem:[%s3 + $0x34c] sm:$0xf]
    %v1362 = vld [vmem:[%s3 + $0x350] sm:$0xf]
    %v1363 = vld [vmem:[%s3 + $0x354] sm:$0xf]
    %v1364 = vld [vmem:[%s3 + $0x358] sm:$0xf]
    %v1365 = vld [vmem:[%s3 + $0x35c] sm:$0xf]
    %v1366 = vld [vmem:[%s3 + $0x360] sm:$0xf]
    %v1367 = vld [vmem:[%s3 + $0x364] sm:$0xf]
    %v1368 = vld [vmem:[%s3 + $0x368] sm:$0xf]
    %v1369 = vld [vmem:[%s3 + $0x36c] sm:$0xf]
    %v1370 = vld [vmem:[%s3 + $0x370] sm:$0xf]
    %v1371 = vld [vmem:[%s3 + $0x374] sm:$0xf]
    %v1372 = vld [vmem:[%s3 + $0x378] sm:$0xf]
    %v1373 = vld [vmem:[%s3 + $0x37c] sm:$0xf]
    %v1374 = vld [vmem:[%s3 + $0x380] sm:$0xf]
    %v1375 = vld [vmem:[%s3 + $0x384] sm:$0xf]
    %v1376 = vld [vmem:[%s3 + $0x388] sm:$0xf]
    %v1377 = vld [vmem:[%s3 + $0x38c] sm:$0xf]
    %v1378 = vld [vmem:[%s3 + $0x390] sm:$0xf]
    %v1379 = vld [vmem:[%s3 + $0x394] sm:$0xf]
    %v1380 = vld [vmem:[%s3 + $0x398] sm:$0xf]
    %v1381 = vld [vmem:[%s3 + $0x39c] sm:$0xf]
    %v1382 = vld [vmem:[%s3 + $0x3a0] sm:$0xf]
    %v1383 = vld [vmem:[%s3 + $0x3a4] sm:$0xf]
    %v1384 = vld [vmem:[%s3 + $0x3a8] sm:$0xf]
    %v1385 = vld [vmem:[%s3 + $0x3ac] sm:$0xf]
    %v1386 = vld [vmem:[%s3 + $0x3b0] sm:$0xf]
    %v1387 = vld [vmem:[%s3 + $0x3b4] sm:$0xf]
    %v1388 = vld [vmem:[%s3 + $0x3b8] sm:$0xf]
    %v1389 = vld [vmem:[%s3 + $0x3bc] sm:$0xf]
    %v1390 = vld [vmem:[%s3 + $0x3c0] sm:$0xf]
    %v1391 = vld [vmem:[%s3 + $0x3c4] sm:$0xf]
    %v1392 = vld [vmem:[%s3 + $0x3c8] sm:$0xf]
    %v1393 = vld [vmem:[%s3 + $0x3cc] sm:$0xf]
    %v1394 = vld [vmem:[%s3 + $0x3d0] sm:$0xf]
    %v1395 = vld [vmem:[%s3 + $0x3d4] sm:$0xf]
    %v1396 = vld [vmem:[%s3 + $0x3d8] sm:$0xf]
    %v1397 = vld [vmem:[%s3 + $0x3dc] sm:$0xf]
    %v1398 = vld [vmem:[%s3 + $0x3e0] sm:$0xf]
    %v1399 = vld [vmem:[%s3 + $0x3e4] sm:$0xf]
    %v1400 = vld [vmem:[%s3 + $0x3e8] sm:$0xf]
    %v1401 = vld [vmem:[%s3 + $0x3ec] sm:$0xf]
    %v1402 = vld [vmem:[%s3 + $0x3f0] sm:$0xf]
    %v1403 = vld [vmem:[%s3 + $0x3f4] sm:$0xf]
    %v1404 = vld [vmem:[%s3 + $0x3f8] sm:$0xf]
    %v1405 = vld [vmem:[%s3 + $0x3fc] sm:$0xf]
    %v1406 = vld [vmem:[%s3 + $0x400] sm:$0xf]
    %v1407 = vld [vmem:[%s3 + $0x404] sm:$0xf]
    %v1408 = vld [vmem:[%s3 + $0x408] sm:$0xf]
    %v1409 = vld [vmem:[%s3 + $0x40c] sm:$0xf]
    %v1410 = vld [vmem:[%s3 + $0x410] sm:$0xf]
    %v1411 = vld [vmem:[%s3 + $0x414] sm:$0xf]
    %v1412 = vld [vmem:[%s3 + $0x418] sm:$0xf]
    %v1413 = vld [vmem:[%s3 + $0x41c] sm:$0xf]
    %v1414 = vld [vmem:[%s3 + $0x420] sm:$0xf]
    %v1415 = vld [vmem:[%s3 + $0x424] sm:$0xf]
    %v1416 = vld [vmem:[%s3 + $0x428] sm:$0xf]
    %v1417 = vld [vmem:[%s3 + $0x42c] sm:$0xf]
    %v1418 = vld [vmem:[%s3 + $0x430] sm:$0xf]
    %v1419 = vld [vmem:[%s3 + $0x434] sm:$0xf]
    %v1420 = vld [vmem:[%s3 + $0x438] sm:$0xf]
    %v1421 = vld [vmem:[%s3 + $0x43c] sm:$0xf]
    %v1422 = vld [vmem:[%s3 + $0x440] sm:$0xf]
    %v1423 = vld [vmem:[%s3 + $0x444] sm:$0xf]
    %v1424 = vld [vmem:[%s3 + $0x448] sm:$0xf]
    %v1425 = vld [vmem:[%s3 + $0x44c] sm:$0xf]
    %v1426 = vld [vmem:[%s3 + $0x450] sm:$0xf]
    %v1427 = vld [vmem:[%s3 + $0x454] sm:$0xf]
    %v1428 = vld [vmem:[%s3 + $0x458] sm:$0xf]
    %v1429 = vld [vmem:[%s3 + $0x45c] sm:$0xf]
    %v1430 = vld [vmem:[%s3 + $0x460] sm:$0xf]
    %v1431 = vld [vmem:[%s3 + $0x464] sm:$0xf]
    %v1432 = vld [vmem:[%s3 + $0x468] sm:$0xf]
    %v1433 = vld [vmem:[%s3 + $0x46c] sm:$0xf]
    %v1434 = vld [vmem:[%s3 + $0x470] sm:$0xf]
    %v1435 = vld [vmem:[%s3 + $0x474] sm:$0xf]
    %v1436 = vld [vmem:[%s3 + $0x478] sm:$0xf]
    %v1437 = vld [vmem:[%s3 + $0x47c] sm:$0xf]
    %v1438 = vld [vmem:[%s3 + $0x480] sm:$0xf]
    %v1439 = vld [vmem:[%s3 + $0x484] sm:$0xf]
    %v1440 = vld [vmem:[%s3 + $0x488] sm:$0xf]
    %v1441 = vld [vmem:[%s3 + $0x48c] sm:$0xf]
    %v1442 = vld [vmem:[%s3 + $0x490] sm:$0xf]
    %v1443 = vld [vmem:[%s3 + $0x494] sm:$0xf]
    %v1444 = vld [vmem:[%s3 + $0x498] sm:$0xf]
    %v1445 = vld [vmem:[%s3 + $0x49c] sm:$0xf]
    %v1446 = vld [vmem:[%s3 + $0x4a0] sm:$0xf]
    %v1447 = vld [vmem:[%s3 + $0x4a4] sm:$0xf]
    %v1448 = vld [vmem:[%s3 + $0x4a8] sm:$0xf]
    %v1449 = vld [vmem:[%s3 + $0x4ac] sm:$0xf]
    %v1450 = vld [vmem:[%s3 + $0x4b0] sm:$0xf]
    %v1451 = vld [vmem:[%s3 + $0x4b4] sm:$0xf]
    %v1452 = vld [vmem:[%s3 + $0x4b8] sm:$0xf]
    %v1453 = vld [vmem:[%s3 + $0x4bc] sm:$0xf]
    %v1454 = vld [vmem:[%s3 + $0x4c0] sm:$0xf]
    %v1455 = vld [vmem:[%s3 + $0x4c4] sm:$0xf]
    %v1456 = vld [vmem:[%s3 + $0x4c8] sm:$0xf]
    %v1457 = vld [vmem:[%s3 + $0x4cc] sm:$0xf]
    %v1458 = vld [vmem:[%s3 + $0x4d0] sm:$0xf]
    %v1459 = vld [vmem:[%s3 + $0x4d4] sm:$0xf]
    %v1460 = vld [vmem:[%s3 + $0x4d8] sm:$0xf]
    %v1461 = vld [vmem:[%s3 + $0x4dc] sm:$0xf]
    %v1462 = vld [vmem:[%s3 + $0x4e0] sm:$0xf]
    %v1463 = vld [vmem:[%s3 + $0x4e4] sm:$0xf]
    %v1464 = vld [vmem:[%s3 + $0x4e8] sm:$0xf]
    %v1465 = vld [vmem:[%s3 + $0x4ec] sm:$0xf]
    %v1466 = vld [vmem:[%s3 + $0x4f0] sm:$0xf]
    %v1467 = vld [vmem:[%s3 + $0x4f4] sm:$0xf]
    %v1468 = vld [vmem:[%s3 + $0x4f8] sm:$0xf]
    %v1469 = vld [vmem:[%s3 + $0x4fc] sm:$0xf]
    %v1470 = vld [vmem:[%s3 + $0x500] sm:$0xf]
    %v1471 = vld [vmem:[%s3 + $0x504] sm:$0xf]
    %v1472 = vld [vmem:[%s3 + $0x508] sm:$0xf]
    %v1473 = vld [vmem:[%s3 + $0x50c] sm:$0xf]
    %v1474 = vld [vmem:[%s3 + $0x510] sm:$0xf]
    %v1475 = vld [vmem:[%s3 + $0x514] sm:$0xf]
    %v1476 = vld [vmem:[%s3 + $0x518] sm:$0xf]
    %v1477 = vld [vmem:[%s3 + $0x51c] sm:$0xf]
    %v1478 = vld [vmem:[%s3 + $0x520] sm:$0xf]
    %v1479 = vld [vmem:[%s3 + $0x524] sm:$0xf]
    %v1480 = vld [vmem:[%s3 + $0x528] sm:$0xf]
    %v1481 = vld [vmem:[%s3 + $0x52c] sm:$0xf]
    %v1482 = vld [vmem:[%s3 + $0x530] sm:$0xf]
    %v1483 = vld [vmem:[%s3 + $0x534] sm:$0xf]
    %v1484 = vld [vmem:[%s3 + $0x538] sm:$0xf]
    %v1485 = vld [vmem:[%s3 + $0x53c] sm:$0xf]
    %v1486 = vld [vmem:[%s3 + $0x540] sm:$0xf]
    %v1487 = vld [vmem:[%s3 + $0x544] sm:$0xf]
    %v1488 = vld [vmem:[%s3 + $0x548] sm:$0xf]
    %v1489 = vld [vmem:[%s3 + $0x54c] sm:$0xf]
    %v1490 = vld [vmem:[%s3 + $0x550] sm:$0xf]
    %v1491 = vld [vmem:[%s3 + $0x554] sm:$0xf]
    %v1492 = vld [vmem:[%s3 + $0x558] sm:$0xf]
    %v1493 = vld [vmem:[%s3 + $0x55c] sm:$0xf]
    %v1494 = vld [vmem:[%s3 + $0x560] sm:$0xf]
    %v1495 = vld [vmem:[%s3 + $0x564] sm:$0xf]
    %v1496 = vld [vmem:[%s3 + $0x568] sm:$0xf]
    %v1497 = vld [vmem:[%s3 + $0x56c] sm:$0xf]
    %v1498 = vld [vmem:[%s3 + $0x570] sm:$0xf]
    %v1499 = vld [vmem:[%s3 + $0x574] sm:$0xf]
    %v1500 = vld [vmem:[%s3 + $0x578] sm:$0xf]
    %v1501 = vld [vmem:[%s3 + $0x57c] sm:$0xf]
    %v1502 = vld [vmem:[%s3 + $0x580] sm:$0xf]
    %v1503 = vld [vmem:[%s3 + $0x584] sm:$0xf]
    %v1504 = vld [vmem:[%s3 + $0x588] sm:$0xf]
    %v1505 = vld [vmem:[%s3 + $0x58c] sm:$0xf]
    %v1506 = vld [vmem:[%s3 + $0x590] sm:$0xf]
    %v1507 = vld [vmem:[%s3 + $0x594] sm:$0xf]
    %v1508 = vld [vmem:[%s3 + $0x598] sm:$0xf]
    %v1509 = vld [vmem:[%s3 + $0x59c] sm:$0xf]
    %v1510 = vld [vmem:[%s3 + $0x5a0] sm:$0xf]
    %v1511 = vld [vmem:[%s3 + $0x5a4] sm:$0xf]
    %v1512 = vld [vmem:[%s3 + $0x5a8] sm:$0xf]
    %v1513 = vld [vmem:[%s3 + $0x5ac] sm:$0xf]
    %v1514 = vld [vmem:[%s3 + $0x5b0] sm:$0xf]
    %v1515 = vld [vmem:[%s3 + $0x5b4] sm:$0xf]
    %v1516 = vld [vmem:[%s3 + $0x5b8] sm:$0xf]
    %v1517 = vld [vmem:[%s3 + $0x5bc] sm:$0xf]
    %v1518 = vld [vmem:[%s3 + $0x5c0] sm:$0xf]
    %v1519 = vld [vmem:[%s3 + $0x5c4] sm:$0xf]
    %v1520 = vld [vmem:[%s3 + $0x5c8] sm:$0xf]
    %v1521 = vld [vmem:[%s3 + $0x5cc] sm:$0xf]
    %v1522 = vld [vmem:[%s3 + $0x5d0] sm:$0xf]
    %v1523 = vld [vmem:[%s3 + $0x5d4] sm:$0xf]
    %v1524 = vld [vmem:[%s3 + $0x5d8] sm:$0xf]
    %v1525 = vld [vmem:[%s3 + $0x5dc] sm:$0xf]
    %v1526 = vld [vmem:[%s3 + $0x5e0] sm:$0xf]
    %v1527 = vld [vmem:[%s3 + $0x5e4] sm:$0xf]
    %v1528 = vld [vmem:[%s3 + $0x5e8] sm:$0xf]
    %v1529 = vld [vmem:[%s3 + $0x5ec] sm:$0xf]
    %v1530 = vld [vmem:[%s3 + $0x5f0] sm:$0xf]
    %v1531 = vld [vmem:[%s3 + $0x5f4] sm:$0xf]
    %v1532 = vld [vmem:[%s3 + $0x5f8] sm:$0xf]
    %v1533 = vld [vmem:[%s3 + $0x5fc] sm:$0xf]
    %v1534 = vld [vmem:[%s3 + $0x600] sm:$0xf]
    %v1535 = vld [vmem:[%s3 + $0x604] sm:$0xf]
    %v1536 = vld [vmem:[%s3 + $0x608] sm:$0xf]
    %v1537 = vld [vmem:[%s3 + $0x60c] sm:$0xf]
    %v1538 = vld [vmem:[%s3 + $0x610] sm:$0xf]
    %v1539 = vld [vmem:[%s3 + $0x614] sm:$0xf]
    %v1540 = vld [vmem:[%s3 + $0x618] sm:$0xf]
    %v1541 = vld [vmem:[%s3 + $0x61c] sm:$0xf]
    %v1542 = vld [vmem:[%s3 + $0x620] sm:$0xf]
    %v1543 = vld [vmem:[%s3 + $0x624] sm:$0xf]
    %v1544 = vld [vmem:[%s3 + $0x628] sm:$0xf]
    %v1545 = vld [vmem:[%s3 + $0x62c] sm:$0xf]
    %v1546 = vld [vmem:[%s3 + $0x630] sm:$0xf]
    %v1547 = vld [vmem:[%s3 + $0x634] sm:$0xf]
    %v1548 = vld [vmem:[%s3 + $0x638] sm:$0xf]
    %v1549 = vld [vmem:[%s3 + $0x63c] sm:$0xf]
    %v1550 = vld [vmem:[%s3 + $0x640] sm:$0xf]
    %v1551 = vld [vmem:[%s3 + $0x644] sm:$0xf]
    %v1552 = vld [vmem:[%s3 + $0x648] sm:$0xf]
    %v1553 = vld [vmem:[%s3 + $0x64c] sm:$0xf]
    %v1554 = vld [vmem:[%s3 + $0x650] sm:$0xf]
    %v1555 = vld [vmem:[%s3 + $0x654] sm:$0xf]
    %v1556 = vld [vmem:[%s3 + $0x658] sm:$0xf]
    %v1557 = vld [vmem:[%s3 + $0x65c] sm:$0xf]
    %v1558 = vld [vmem:[%s3 + $0x660] sm:$0xf]
    %v1559 = vld [vmem:[%s3 + $0x664] sm:$0xf]
    %v1560 = vld [vmem:[%s3 + $0x668] sm:$0xf]
    %v1561 = vld [vmem:[%s3 + $0x66c] sm:$0xf]
    %v1562 = vld [vmem:[%s3 + $0x670] sm:$0xf]
    %v1563 = vld [vmem:[%s3 + $0x674] sm:$0xf]
    %v1564 = vld [vmem:[%s3 + $0x678] sm:$0xf]
    %v1565 = vld [vmem:[%s3 + $0x67c] sm:$0xf]
    %v1566 = vld [vmem:[%s3 + $0x680] sm:$0xf]
    %v1567 = vld [vmem:[%s3 + $0x684] sm:$0xf]
    %v1568 = vld [vmem:[%s3 + $0x688] sm:$0xf]
    %v1569 = vld [vmem:[%s3 + $0x68c] sm:$0xf]
    %v1570 = vld [vmem:[%s3 + $0x690] sm:$0xf]
    %v1571 = vld [vmem:[%s3 + $0x694] sm:$0xf]
    %v1572 = vld [vmem:[%s3 + $0x698] sm:$0xf]
    %v1573 = vld [vmem:[%s3 + $0x69c] sm:$0xf]
    %v1574 = vld [vmem:[%s3 + $0x6a0] sm:$0xf]
    %v1575 = vld [vmem:[%s3 + $0x6a4] sm:$0xf]
    %v1576 = vld [vmem:[%s3 + $0x6a8] sm:$0xf]
    %v1577 = vld [vmem:[%s3 + $0x6ac] sm:$0xf]
    %v1578 = vld [vmem:[%s3 + $0x6b0] sm:$0xf]
    %v1579 = vld [vmem:[%s3 + $0x6b4] sm:$0xf]
    %v1580 = vld [vmem:[%s3 + $0x6b8] sm:$0xf]
    %v1581 = vld [vmem:[%s3 + $0x6bc] sm:$0xf]
    %v1582 = vld [vmem:[%s3 + $0x6c0] sm:$0xf]
    %v1583 = vld [vmem:[%s3 + $0x6c4] sm:$0xf]
    %v1584 = vld [vmem:[%s3 + $0x6c8] sm:$0xf]
    %v1585 = vld [vmem:[%s3 + $0x6cc] sm:$0xf]
    %v1586 = vld [vmem:[%s3 + $0x6d0] sm:$0xf]
    %v1587 = vld [vmem:[%s3 + $0x6d4] sm:$0xf]
    %v1588 = vld [vmem:[%s3 + $0x6d8] sm:$0xf]
    %v1589 = vld [vmem:[%s3 + $0x6dc] sm:$0xf]
    %v1590 = vld [vmem:[%s3 + $0x6e0] sm:$0xf]
    %v1591 = vld [vmem:[%s3 + $0x6e4] sm:$0xf]
    %v1592 = vld [vmem:[%s3 + $0x6e8] sm:$0xf]
    %v1593 = vld [vmem:[%s3 + $0x6ec] sm:$0xf]
    %v1594 = vld [vmem:[%s3 + $0x6f0] sm:$0xf]
    %v1595 = vld [vmem:[%s3 + $0x6f4] sm:$0xf]
    %v1596 = vld [vmem:[%s3 + $0x6f8] sm:$0xf]
    %v1597 = vld [vmem:[%s3 + $0x6fc] sm:$0xf]
    %v1598 = vld [vmem:[%s3 + $0x700] sm:$0xf]
    %v1599 = vld [vmem:[%s3 + $0x704] sm:$0xf]
    %v1600 = vld [vmem:[%s3 + $0x708] sm:$0xf]
    %v1601 = vld [vmem:[%s3 + $0x70c] sm:$0xf]
    %v1602 = vld [vmem:[%s3 + $0x710] sm:$0xf]
    %v1603 = vld [vmem:[%s3 + $0x714] sm:$0xf]
    %v1604 = vld [vmem:[%s3 + $0x718] sm:$0xf]
    %v1605 = vld [vmem:[%s3 + $0x71c] sm:$0xf]
    %v1606 = vld [vmem:[%s3 + $0x720] sm:$0xf]
    %v1607 = vld [vmem:[%s3 + $0x724] sm:$0xf]
    %v1608 = vld [vmem:[%s3 + $0x728] sm:$0xf]
    %v1609 = vld [vmem:[%s3 + $0x72c] sm:$0xf]
    %v1610 = vld [vmem:[%s3 + $0x730] sm:$0xf]
    %v1611 = vld [vmem:[%s3 + $0x734] sm:$0xf]
    %v1612 = vld [vmem:[%s3 + $0x738] sm:$0xf]
    %v1613 = vld [vmem:[%s3 + $0x73c] sm:$0xf]
    %v1614 = vld [vmem:[%s3 + $0x740] sm:$0xf]
    %v1615 = vld [vmem:[%s3 + $0x744] sm:$0xf]
    %v1616 = vld [vmem:[%s3 + $0x748] sm:$0xf]
    %v1617 = vld [vmem:[%s3 + $0x74c] sm:$0xf]
    %v1618 = vld [vmem:[%s3 + $0x750] sm:$0xf]
    %v1619 = vld [vmem:[%s3 + $0x754] sm:$0xf]
    %v1620 = vld [vmem:[%s3 + $0x758] sm:$0xf]
    %v1621 = vld [vmem:[%s3 + $0x75c] sm:$0xf]
    %v1622 = vld [vmem:[%s3 + $0x760] sm:$0xf]
    %v1623 = vld [vmem:[%s3 + $0x764] sm:$0xf]
    %v1624 = vld [vmem:[%s3 + $0x768] sm:$0xf]
    %v1625 = vld [vmem:[%s3 + $0x76c] sm:$0xf]
    %v1626 = vld [vmem:[%s3 + $0x770] sm:$0xf]
    %v1627 = vld [vmem:[%s3 + $0x774] sm:$0xf]
    %v1628 = vld [vmem:[%s3 + $0x778] sm:$0xf]
    %v1629 = vld [vmem:[%s3 + $0x77c] sm:$0xf]
    %v1630 = vld [vmem:[%s3 + $0x780] sm:$0xf]
    %v1631 = vld [vmem:[%s3 + $0x784] sm:$0xf]
    %v1632 = vld [vmem:[%s3 + $0x788] sm:$0xf]
    %v1633 = vld [vmem:[%s3 + $0x78c] sm:$0xf]
    %v1634 = vld [vmem:[%s3 + $0x790] sm:$0xf]
    %v1635 = vld [vmem:[%s3 + $0x794] sm:$0xf]
    %v1636 = vld [vmem:[%s3 + $0x798] sm:$0xf]
    %v1637 = vld [vmem:[%s3 + $0x79c] sm:$0xf]
    %v1638 = vld [vmem:[%s3 + $0x7a0] sm:$0xf]
    %v1639 = vld [vmem:[%s3 + $0x7a4] sm:$0xf]
    %v1640 = vld [vmem:[%s3 + $0x7a8] sm:$0xf]
    %v1641 = vld [vmem:[%s3 + $0x7ac] sm:$0xf]
    %v1642 = vld [vmem:[%s3 + $0x7b0] sm:$0xf]
    %v1643 = vld [vmem:[%s3 + $0x7b4] sm:$0xf]
    %v1644 = vld [vmem:[%s3 + $0x7b8] sm:$0xf]
    %v1645 = vld [vmem:[%s3 + $0x7bc] sm:$0xf]
    %v1646 = vld [vmem:[%s3 + $0x7c0] sm:$0xf]
    %v1647 = vld [vmem:[%s3 + $0x7c4] sm:$0xf]
    %v1648 = vld [vmem:[%s3 + $0x7c8] sm:$0xf]
    %v1649 = vld [vmem:[%s3 + $0x7cc] sm:$0xf]
    %v1650 = vld [vmem:[%s3 + $0x7d0] sm:$0xf]
    %v1651 = vld [vmem:[%s3 + $0x7d4] sm:$0xf]
    %v1652 = vld [vmem:[%s3 + $0x7d8] sm:$0xf]
    %v1653 = vld [vmem:[%s3 + $0x7dc] sm:$0xf]
    %v1654 = vld [vmem:[%s3 + $0x7e0] sm:$0xf]
    %v1655 = vld [vmem:[%s3 + $0x7e4] sm:$0xf]
    %v1656 = vld [vmem:[%s3 + $0x7e8] sm:$0xf]
    %v1657 = vld [vmem:[%s3 + $0x7ec] sm:$0xf]
    %v1658 = vld [vmem:[%s3 + $0x7f0] sm:$0xf]
    %v1659 = vld [vmem:[%s3 + $0x7f4] sm:$0xf]
    %v1660 = vld [vmem:[%s3 + $0x7f8] sm:$0xf]
    %v1661 = vld [vmem:[%s3 + $0x7fc] sm:$0xf]
    %v1662 = vld [vmem:[%s4] sm:$0x1]
    %v1664 = vlaneseq
    %v1665 = vshrl.u32 %v1664, 7
    %v1666 = vsub.s32 0, %v1665
    %v1667 = vrot.slane %v1662, %v1666
    %v2181 = vunpack.c.l.b16 %v1150
    %v2182 = vunpack.c.l.b16 %v1151
    %v2183 = vunpack.c.l.b16 %v1152
    %v2184 = vunpack.c.l.b16 %v1153
    %v2185 = vunpack.c.l.b16 %v1154
    %v2186 = vunpack.c.l.b16 %v1155
    %v2187 = vunpack.c.l.b16 %v1156
    %v2188 = vunpack.c.l.b16 %v1157
    %v2189 = vunpack.c.l.b16 %v1158
    %v2190 = vunpack.c.l.b16 %v1159
    %v2191 = vunpack.c.l.b16 %v1160
    %v2192 = vunpack.c.l.b16 %v1161
    %v2193 = vunpack.c.l.b16 %v1162
    %v2194 = vunpack.c.l.b16 %v1163
    %v2195 = vunpack.c.l.b16 %v1164
    %v2196 = vunpack.c.l.b16 %v1165
    %v2197 = vunpack.c.l.b16 %v1166
    %v2198 = vunpack.c.l.b16 %v1167
    %v2199 = vunpack.c.l.b16 %v1168
    %v2200 = vunpack.c.l.b16 %v1169
    %v2201 = vunpack.c.l.b16 %v1170
    %v2202 = vunpack.c.l.b16 %v1171
    %v2203 = vunpack.c.l.b16 %v1172
    %v2204 = vunpack.c.l.b16 %v1173
    %v2205 = vunpack.c.l.b16 %v1174
    %v2206 = vunpack.c.l.b16 %v1175
    %v2207 = vunpack.c.l.b16 %v1176
    %v2208 = vunpack.c.l.b16 %v1177
    %v2209 = vunpack.c.l.b16 %v1178
    %v2210 = vunpack.c.l.b16 %v1179
    %v2211 = vunpack.c.l.b16 %v1180
    %v2212 = vunpack.c.l.b16 %v1181
    %v2213 = vunpack.c.l.b16 %v1182
    %v2214 = vunpack.c.l.b16 %v1183
    %v2215 = vunpack.c.l.b16 %v1184
    %v2216 = vunpack.c.l.b16 %v1185
    %v2217 = vunpack.c.l.b16 %v1186
    %v2218 = vunpack.c.l.b16 %v1187
    %v2219 = vunpack.c.l.b16 %v1188
    %v2220 = vunpack.c.l.b16 %v1189
    %v2221 = vunpack.c.l.b16 %v1190
    %v2222 = vunpack.c.l.b16 %v1191
    %v2223 = vunpack.c.l.b16 %v1192
    %v2224 = vunpack.c.l.b16 %v1193
    %v2225 = vunpack.c.l.b16 %v1194
    %v2226 = vunpack.c.l.b16 %v1195
    %v2227 = vunpack.c.l.b16 %v1196
    %v2228 = vunpack.c.l.b16 %v1197
    %v2229 = vunpack.c.l.b16 %v1198
    %v2230 = vunpack.c.l.b16 %v1199
    %v2231 = vunpack.c.l.b16 %v1200
    %v2232 = vunpack.c.l.b16 %v1201
    %v2233 = vunpack.c.l.b16 %v1202
    %v2234 = vunpack.c.l.b16 %v1203
    %v2235 = vunpack.c.l.b16 %v1204
    %v2236 = vunpack.c.l.b16 %v1205
    %v2237 = vunpack.c.l.b16 %v1206
    %v2238 = vunpack.c.l.b16 %v1207
    %v2239 = vunpack.c.l.b16 %v1208
    %v2240 = vunpack.c.l.b16 %v1209
    %v2241 = vunpack.c.l.b16 %v1210
    %v2242 = vunpack.c.l.b16 %v1211
    %v2243 = vunpack.c.l.b16 %v1212
    %v2244 = vunpack.c.l.b16 %v1213
    %v2245 = vunpack.c.l.b16 %v1214
    %v2246 = vunpack.c.l.b16 %v1215
    %v2247 = vunpack.c.l.b16 %v1216
    %v2248 = vunpack.c.l.b16 %v1217
    %v2249 = vunpack.c.l.b16 %v1218
    %v2250 = vunpack.c.l.b16 %v1219
    %v2251 = vunpack.c.l.b16 %v1220
    %v2252 = vunpack.c.l.b16 %v1221
    %v2253 = vunpack.c.l.b16 %v1222
    %v2254 = vunpack.c.l.b16 %v1223
    %v2255 = vunpack.c.l.b16 %v1224
    %v2256 = vunpack.c.l.b16 %v1225
    %v2257 = vunpack.c.l.b16 %v1226
    %v2258 = vunpack.c.l.b16 %v1227
    %v2259 = vunpack.c.l.b16 %v1228
    %v2260 = vunpack.c.l.b16 %v1229
    %v2261 = vunpack.c.l.b16 %v1230
    %v2262 = vunpack.c.l.b16 %v1231
    %v2263 = vunpack.c.l.b16 %v1232
    %v2264 = vunpack.c.l.b16 %v1233
    %v2265 = vunpack.c.l.b16 %v1234
    %v2266 = vunpack.c.l.b16 %v1235
    %v2267 = vunpack.c.l.b16 %v1236
    %v2268 = vunpack.c.l.b16 %v1237
    %v2269 = vunpack.c.l.b16 %v1238
    %v2270 = vunpack.c.l.b16 %v1239
    %v2271 = vunpack.c.l.b16 %v1240
    %v2272 = vunpack.c.l.b16 %v1241
    %v2273 = vunpack.c.l.b16 %v1242
    %v2274 = vunpack.c.l.b16 %v1243
    %v2275 = vunpack.c.l.b16 %v1244
    %v2276 = vunpack.c.l.b16 %v1245
    %v2277 = vunpack.c.l.b16 %v1246
    %v2278 = vunpack.c.l.b16 %v1247
    %v2279 = vunpack.c.l.b16 %v1248
    %v2280 = vunpack.c.l.b16 %v1249
    %v2281 = vunpack.c.l.b16 %v1250
    %v2282 = vunpack.c.l.b16 %v1251
    %v2283 = vunpack.c.l.b16 %v1252
    %v2284 = vunpack.c.l.b16 %v1253
    %v2285 = vunpack.c.l.b16 %v1254
    %v2286 = vunpack.c.l.b16 %v1255
    %v2287 = vunpack.c.l.b16 %v1256
    %v2288 = vunpack.c.l.b16 %v1257
    %v2289 = vunpack.c.l.b16 %v1258
    %v2290 = vunpack.c.l.b16 %v1259
    %v2291 = vunpack.c.l.b16 %v1260
    %v2292 = vunpack.c.l.b16 %v1261
    %v2293 = vunpack.c.l.b16 %v1262
    %v2294 = vunpack.c.l.b16 %v1263
    %v2295 = vunpack.c.l.b16 %v1264
    %v2296 = vunpack.c.l.b16 %v1265
    %v2297 = vunpack.c.l.b16 %v1266
    %v2298 = vunpack.c.l.b16 %v1267
    %v2299 = vunpack.c.l.b16 %v1268
    %v2300 = vunpack.c.l.b16 %v1269
    %v2301 = vunpack.c.l.b16 %v1270
    %v2302 = vunpack.c.l.b16 %v1271
    %v2303 = vunpack.c.l.b16 %v1272
    %v2304 = vunpack.c.l.b16 %v1273
    %v2305 = vunpack.c.l.b16 %v1274
    %v2306 = vunpack.c.l.b16 %v1275
    %v2307 = vunpack.c.l.b16 %v1276
    %v2308 = vunpack.c.l.b16 %v1277
    %v2309 = vunpack.c.l.b16 %v1278
    %v2310 = vunpack.c.l.b16 %v1279
    %v2311 = vunpack.c.l.b16 %v1280
    %v2312 = vunpack.c.l.b16 %v1281
    %v2313 = vunpack.c.l.b16 %v1282
    %v2314 = vunpack.c.l.b16 %v1283
    %v2315 = vunpack.c.l.b16 %v1284
    %v2316 = vunpack.c.l.b16 %v1285
    %v2317 = vunpack.c.l.b16 %v1286
    %v2318 = vunpack.c.l.b16 %v1287
    %v2319 = vunpack.c.l.b16 %v1288
    %v2320 = vunpack.c.l.b16 %v1289
    %v2321 = vunpack.c.l.b16 %v1290
    %v2322 = vunpack.c.l.b16 %v1291
    %v2323 = vunpack.c.l.b16 %v1292
    %v2324 = vunpack.c.l.b16 %v1293
    %v2325 = vunpack.c.l.b16 %v1294
    %v2326 = vunpack.c.l.b16 %v1295
    %v2327 = vunpack.c.l.b16 %v1296
    %v2328 = vunpack.c.l.b16 %v1297
    %v2329 = vunpack.c.l.b16 %v1298
    %v2330 = vunpack.c.l.b16 %v1299
    %v2331 = vunpack.c.l.b16 %v1300
    %v2332 = vunpack.c.l.b16 %v1301
    %v2333 = vunpack.c.l.b16 %v1302
    %v2334 = vunpack.c.l.b16 %v1303
    %v2335 = vunpack.c.l.b16 %v1304
    %v2336 = vunpack.c.l.b16 %v1305
    %v2337 = vunpack.c.l.b16 %v1306
    %v2338 = vunpack.c.l.b16 %v1307
    %v2339 = vunpack.c.l.b16 %v1308
    %v2340 = vunpack.c.l.b16 %v1309
    %v2341 = vunpack.c.l.b16 %v1310
    %v2342 = vunpack.c.l.b16 %v1311
    %v2343 = vunpack.c.l.b16 %v1312
    %v2344 = vunpack.c.l.b16 %v1313
    %v2345 = vunpack.c.l.b16 %v1314
    %v2346 = vunpack.c.l.b16 %v1315
    %v2347 = vunpack.c.l.b16 %v1316
    %v2348 = vunpack.c.l.b16 %v1317
    %v2349 = vunpack.c.l.b16 %v1318
    %v2350 = vunpack.c.l.b16 %v1319
    %v2351 = vunpack.c.l.b16 %v1320
    %v2352 = vunpack.c.l.b16 %v1321
    %v2353 = vunpack.c.l.b16 %v1322
    %v2354 = vunpack.c.l.b16 %v1323
    %v2355 = vunpack.c.l.b16 %v1324
    %v2356 = vunpack.c.l.b16 %v1325
    %v2357 = vunpack.c.l.b16 %v1326
    %v2358 = vunpack.c.l.b16 %v1327
    %v2359 = vunpack.c.l.b16 %v1328
    %v2360 = vunpack.c.l.b16 %v1329
    %v2361 = vunpack.c.l.b16 %v1330
    %v2362 = vunpack.c.l.b16 %v1331
    %v2363 = vunpack.c.l.b16 %v1332
    %v2364 = vunpack.c.l.b16 %v1333
    %v2365 = vunpack.c.l.b16 %v1334
    %v2366 = vunpack.c.l.b16 %v1335
    %v2367 = vunpack.c.l.b16 %v1336
    %v2368 = vunpack.c.l.b16 %v1337
    %v2369 = vunpack.c.l.b16 %v1338
    %v2370 = vunpack.c.l.b16 %v1339
    %v2371 = vunpack.c.l.b16 %v1340
    %v2372 = vunpack.c.l.b16 %v1341
    %v2373 = vunpack.c.l.b16 %v1342
    %v2374 = vunpack.c.l.b16 %v1343
    %v2375 = vunpack.c.l.b16 %v1344
    %v2376 = vunpack.c.l.b16 %v1345
    %v2377 = vunpack.c.l.b16 %v1346
    %v2378 = vunpack.c.l.b16 %v1347
    %v2379 = vunpack.c.l.b16 %v1348
    %v2380 = vunpack.c.l.b16 %v1349
    %v2381 = vunpack.c.l.b16 %v1350
    %v2382 = vunpack.c.l.b16 %v1351
    %v2383 = vunpack.c.l.b16 %v1352
    %v2384 = vunpack.c.l.b16 %v1353
    %v2385 = vunpack.c.l.b16 %v1354
    %v2386 = vunpack.c.l.b16 %v1355
    %v2387 = vunpack.c.l.b16 %v1356
    %v2388 = vunpack.c.l.b16 %v1357
    %v2389 = vunpack.c.l.b16 %v1358
    %v2390 = vunpack.c.l.b16 %v1359
    %v2391 = vunpack.c.l.b16 %v1360
    %v2392 = vunpack.c.l.b16 %v1361
    %v2393 = vunpack.c.l.b16 %v1362
    %v2394 = vunpack.c.l.b16 %v1363
    %v2395 = vunpack.c.l.b16 %v1364
    %v2396 = vunpack.c.l.b16 %v1365
    %v2397 = vunpack.c.l.b16 %v1366
    %v2398 = vunpack.c.l.b16 %v1367
    %v2399 = vunpack.c.l.b16 %v1368
    %v2400 = vunpack.c.l.b16 %v1369
    %v2401 = vunpack.c.l.b16 %v1370
    %v2402 = vunpack.c.l.b16 %v1371
    %v2403 = vunpack.c.l.b16 %v1372
    %v2404 = vunpack.c.l.b16 %v1373
    %v2405 = vunpack.c.l.b16 %v1374
    %v2406 = vunpack.c.l.b16 %v1375
    %v2407 = vunpack.c.l.b16 %v1376
    %v2408 = vunpack.c.l.b16 %v1377
    %v2409 = vunpack.c.l.b16 %v1378
    %v2410 = vunpack.c.l.b16 %v1379
    %v2411 = vunpack.c.l.b16 %v1380
    %v2412 = vunpack.c.l.b16 %v1381
    %v2413 = vunpack.c.l.b16 %v1382
    %v2414 = vunpack.c.l.b16 %v1383
    %v2415 = vunpack.c.l.b16 %v1384
    %v2416 = vunpack.c.l.b16 %v1385
    %v2417 = vunpack.c.l.b16 %v1386
    %v2418 = vunpack.c.l.b16 %v1387
    %v2419 = vunpack.c.l.b16 %v1388
    %v2420 = vunpack.c.l.b16 %v1389
    %v2421 = vunpack.c.l.b16 %v1390
    %v2422 = vunpack.c.l.b16 %v1391
    %v2423 = vunpack.c.l.b16 %v1392
    %v2424 = vunpack.c.l.b16 %v1393
    %v2425 = vunpack.c.l.b16 %v1394
    %v2426 = vunpack.c.l.b16 %v1395
    %v2427 = vunpack.c.l.b16 %v1396
    %v2428 = vunpack.c.l.b16 %v1397
    %v2429 = vunpack.c.l.b16 %v1398
    %v2430 = vunpack.c.l.b16 %v1399
    %v2431 = vunpack.c.l.b16 %v1400
    %v2432 = vunpack.c.l.b16 %v1401
    %v2433 = vunpack.c.l.b16 %v1402
    %v2434 = vunpack.c.l.b16 %v1403
    %v2435 = vunpack.c.l.b16 %v1404
    %v2436 = vunpack.c.l.b16 %v1405
    %v2437 = vunpack.c.l.b16 %v1406
    %v2438 = vunpack.c.l.b16 %v1407
    %v2439 = vunpack.c.l.b16 %v1408
    %v2440 = vunpack.c.l.b16 %v1409
    %v2441 = vunpack.c.l.b16 %v1410
    %v2442 = vunpack.c.l.b16 %v1411
    %v2443 = vunpack.c.l.b16 %v1412
    %v2444 = vunpack.c.l.b16 %v1413
    %v2445 = vunpack.c.l.b16 %v1414
    %v2446 = vunpack.c.l.b16 %v1415
    %v2447 = vunpack.c.l.b16 %v1416
    %v2448 = vunpack.c.l.b16 %v1417
    %v2449 = vunpack.c.l.b16 %v1418
    %v2450 = vunpack.c.l.b16 %v1419
    %v2451 = vunpack.c.l.b16 %v1420
    %v2452 = vunpack.c.l.b16 %v1421
    %v2453 = vunpack.c.l.b16 %v1422
    %v2454 = vunpack.c.l.b16 %v1423
    %v2455 = vunpack.c.l.b16 %v1424
    %v2456 = vunpack.c.l.b16 %v1425
    %v2457 = vunpack.c.l.b16 %v1426
    %v2458 = vunpack.c.l.b16 %v1427
    %v2459 = vunpack.c.l.b16 %v1428
    %v2460 = vunpack.c.l.b16 %v1429
    %v2461 = vunpack.c.l.b16 %v1430
    %v2462 = vunpack.c.l.b16 %v1431
    %v2463 = vunpack.c.l.b16 %v1432
    %v2464 = vunpack.c.l.b16 %v1433
    %v2465 = vunpack.c.l.b16 %v1434
    %v2466 = vunpack.c.l.b16 %v1435
    %v2467 = vunpack.c.l.b16 %v1436
    %v2468 = vunpack.c.l.b16 %v1437
    %v2469 = vunpack.c.l.b16 %v1438
    %v2470 = vunpack.c.l.b16 %v1439
    %v2471 = vunpack.c.l.b16 %v1440
    %v2472 = vunpack.c.l.b16 %v1441
    %v2473 = vunpack.c.l.b16 %v1442
    %v2474 = vunpack.c.l.b16 %v1443
    %v2475 = vunpack.c.l.b16 %v1444
    %v2476 = vunpack.c.l.b16 %v1445
    %v2477 = vunpack.c.l.b16 %v1446
    %v2478 = vunpack.c.l.b16 %v1447
    %v2479 = vunpack.c.l.b16 %v1448
    %v2480 = vunpack.c.l.b16 %v1449
    %v2481 = vunpack.c.l.b16 %v1450
    %v2482 = vunpack.c.l.b16 %v1451
    %v2483 = vunpack.c.l.b16 %v1452
    %v2484 = vunpack.c.l.b16 %v1453
    %v2485 = vunpack.c.l.b16 %v1454
    %v2486 = vunpack.c.l.b16 %v1455
    %v2487 = vunpack.c.l.b16 %v1456
    %v2488 = vunpack.c.l.b16 %v1457
    %v2489 = vunpack.c.l.b16 %v1458
    %v2490 = vunpack.c.l.b16 %v1459
    %v2491 = vunpack.c.l.b16 %v1460
    %v2492 = vunpack.c.l.b16 %v1461
    %v2493 = vunpack.c.l.b16 %v1462
    %v2494 = vunpack.c.l.b16 %v1463
    %v2495 = vunpack.c.l.b16 %v1464
    %v2496 = vunpack.c.l.b16 %v1465
    %v2497 = vunpack.c.l.b16 %v1466
    %v2498 = vunpack.c.l.b16 %v1467
    %v2499 = vunpack.c.l.b16 %v1468
    %v2500 = vunpack.c.l.b16 %v1469
    %v2501 = vunpack.c.l.b16 %v1470
    %v2502 = vunpack.c.l.b16 %v1471
    %v2503 = vunpack.c.l.b16 %v1472
    %v2504 = vunpack.c.l.b16 %v1473
    %v2505 = vunpack.c.l.b16 %v1474
    %v2506 = vunpack.c.l.b16 %v1475
    %v2507 = vunpack.c.l.b16 %v1476
    %v2508 = vunpack.c.l.b16 %v1477
    %v2509 = vunpack.c.l.b16 %v1478
    %v2510 = vunpack.c.l.b16 %v1479
    %v2511 = vunpack.c.l.b16 %v1480
    %v2512 = vunpack.c.l.b16 %v1481
    %v2513 = vunpack.c.l.b16 %v1482
    %v2514 = vunpack.c.l.b16 %v1483
    %v2515 = vunpack.c.l.b16 %v1484
    %v2516 = vunpack.c.l.b16 %v1485
    %v2517 = vunpack.c.l.b16 %v1486
    %v2518 = vunpack.c.l.b16 %v1487
    %v2519 = vunpack.c.l.b16 %v1488
    %v2520 = vunpack.c.l.b16 %v1489
    %v2521 = vunpack.c.l.b16 %v1490
    %v2522 = vunpack.c.l.b16 %v1491
    %v2523 = vunpack.c.l.b16 %v1492
    %v2524 = vunpack.c.l.b16 %v1493
    %v2525 = vunpack.c.l.b16 %v1494
    %v2526 = vunpack.c.l.b16 %v1495
    %v2527 = vunpack.c.l.b16 %v1496
    %v2528 = vunpack.c.l.b16 %v1497
    %v2529 = vunpack.c.l.b16 %v1498
    %v2530 = vunpack.c.l.b16 %v1499
    %v2531 = vunpack.c.l.b16 %v1500
    %v2532 = vunpack.c.l.b16 %v1501
    %v2533 = vunpack.c.l.b16 %v1502
    %v2534 = vunpack.c.l.b16 %v1503
    %v2535 = vunpack.c.l.b16 %v1504
    %v2536 = vunpack.c.l.b16 %v1505
    %v2537 = vunpack.c.l.b16 %v1506
    %v2538 = vunpack.c.l.b16 %v1507
    %v2539 = vunpack.c.l.b16 %v1508
    %v2540 = vunpack.c.l.b16 %v1509
    %v2541 = vunpack.c.l.b16 %v1510
    %v2542 = vunpack.c.l.b16 %v1511
    %v2543 = vunpack.c.l.b16 %v1512
    %v2544 = vunpack.c.l.b16 %v1513
    %v2545 = vunpack.c.l.b16 %v1514
    %v2546 = vunpack.c.l.b16 %v1515
    %v2547 = vunpack.c.l.b16 %v1516
    %v2548 = vunpack.c.l.b16 %v1517
    %v2549 = vunpack.c.l.b16 %v1518
    %v2550 = vunpack.c.l.b16 %v1519
    %v2551 = vunpack.c.l.b16 %v1520
    %v2552 = vunpack.c.l.b16 %v1521
    %v2553 = vunpack.c.l.b16 %v1522
    %v2554 = vunpack.c.l.b16 %v1523
    %v2555 = vunpack.c.l.b16 %v1524
    %v2556 = vunpack.c.l.b16 %v1525
    %v2557 = vunpack.c.l.b16 %v1526
    %v2558 = vunpack.c.l.b16 %v1527
    %v2559 = vunpack.c.l.b16 %v1528
    %v2560 = vunpack.c.l.b16 %v1529
    %v2561 = vunpack.c.l.b16 %v1530
    %v2562 = vunpack.c.l.b16 %v1531
    %v2563 = vunpack.c.l.b16 %v1532
    %v2564 = vunpack.c.l.b16 %v1533
    %v2565 = vunpack.c.l.b16 %v1534
    %v2566 = vunpack.c.l.b16 %v1535
    %v2567 = vunpack.c.l.b16 %v1536
    %v2568 = vunpack.c.l.b16 %v1537
    %v2569 = vunpack.c.l.b16 %v1538
    %v2570 = vunpack.c.l.b16 %v1539
    %v2571 = vunpack.c.l.b16 %v1540
    %v2572 = vunpack.c.l.b16 %v1541
    %v2573 = vunpack.c.l.b16 %v1542
    %v2574 = vunpack.c.l.b16 %v1543
    %v2575 = vunpack.c.l.b16 %v1544
    %v2576 = vunpack.c.l.b16 %v1545
    %v2577 = vunpack.c.l.b16 %v1546
    %v2578 = vunpack.c.l.b16 %v1547
    %v2579 = vunpack.c.l.b16 %v1548
    %v2580 = vunpack.c.l.b16 %v1549
    %v2581 = vunpack.c.l.b16 %v1550
    %v2582 = vunpack.c.l.b16 %v1551
    %v2583 = vunpack.c.l.b16 %v1552
    %v2584 = vunpack.c.l.b16 %v1553
    %v2585 = vunpack.c.l.b16 %v1554
    %v2586 = vunpack.c.l.b16 %v1555
    %v2587 = vunpack.c.l.b16 %v1556
    %v2588 = vunpack.c.l.b16 %v1557
    %v2589 = vunpack.c.l.b16 %v1558
    %v2590 = vunpack.c.l.b16 %v1559
    %v2591 = vunpack.c.l.b16 %v1560
    %v2592 = vunpack.c.l.b16 %v1561
    %v2593 = vunpack.c.l.b16 %v1562
    %v2594 = vunpack.c.l.b16 %v1563
    %v2595 = vunpack.c.l.b16 %v1564
    %v2596 = vunpack.c.l.b16 %v1565
    %v2597 = vunpack.c.l.b16 %v1566
    %v2598 = vunpack.c.l.b16 %v1567
    %v2599 = vunpack.c.l.b16 %v1568
    %v2600 = vunpack.c.l.b16 %v1569
    %v2601 = vunpack.c.l.b16 %v1570
    %v2602 = vunpack.c.l.b16 %v1571
    %v2603 = vunpack.c.l.b16 %v1572
    %v2604 = vunpack.c.l.b16 %v1573
    %v2605 = vunpack.c.l.b16 %v1574
    %v2606 = vunpack.c.l.b16 %v1575
    %v2607 = vunpack.c.l.b16 %v1576
    %v2608 = vunpack.c.l.b16 %v1577
    %v2609 = vunpack.c.l.b16 %v1578
    %v2610 = vunpack.c.l.b16 %v1579
    %v2611 = vunpack.c.l.b16 %v1580
    %v2612 = vunpack.c.l.b16 %v1581
    %v2613 = vunpack.c.l.b16 %v1582
    %v2614 = vunpack.c.l.b16 %v1583
    %v2615 = vunpack.c.l.b16 %v1584
    %v2616 = vunpack.c.l.b16 %v1585
    %v2617 = vunpack.c.l.b16 %v1586
    %v2618 = vunpack.c.l.b16 %v1587
    %v2619 = vunpack.c.l.b16 %v1588
    %v2620 = vunpack.c.l.b16 %v1589
    %v2621 = vunpack.c.l.b16 %v1590
    %v2622 = vunpack.c.l.b16 %v1591
    %v2623 = vunpack.c.l.b16 %v1592
    %v2624 = vunpack.c.l.b16 %v1593
    %v2625 = vunpack.c.l.b16 %v1594
    %v2626 = vunpack.c.l.b16 %v1595
    %v2627 = vunpack.c.l.b16 %v1596
    %v2628 = vunpack.c.l.b16 %v1597
    %v2629 = vunpack.c.l.b16 %v1598
    %v2630 = vunpack.c.l.b16 %v1599
    %v2631 = vunpack.c.l.b16 %v1600
    %v2632 = vunpack.c.l.b16 %v1601
    %v2633 = vunpack.c.l.b16 %v1602
    %v2634 = vunpack.c.l.b16 %v1603
    %v2635 = vunpack.c.l.b16 %v1604
    %v2636 = vunpack.c.l.b16 %v1605
    %v2637 = vunpack.c.l.b16 %v1606
    %v2638 = vunpack.c.l.b16 %v1607
    %v2639 = vunpack.c.l.b16 %v1608
    %v2640 = vunpack.c.l.b16 %v1609
    %v2641 = vunpack.c.l.b16 %v1610
    %v2642 = vunpack.c.l.b16 %v1611
    %v2643 = vunpack.c.l.b16 %v1612
    %v2644 = vunpack.c.l.b16 %v1613
    %v2645 = vunpack.c.l.b16 %v1614
    %v2646 = vunpack.c.l.b16 %v1615
    %v2647 = vunpack.c.l.b16 %v1616
    %v2648 = vunpack.c.l.b16 %v1617
    %v2649 = vunpack.c.l.b16 %v1618
    %v2650 = vunpack.c.l.b16 %v1619
    %v2651 = vunpack.c.l.b16 %v1620
    %v2652 = vunpack.c.l.b16 %v1621
    %v2653 = vunpack.c.l.b16 %v1622
    %v2654 = vunpack.c.l.b16 %v1623
    %v2655 = vunpack.c.l.b16 %v1624
    %v2656 = vunpack.c.l.b16 %v1625
    %v2657 = vunpack.c.l.b16 %v1626
    %v2658 = vunpack.c.l.b16 %v1627
    %v2659 = vunpack.c.l.b16 %v1628
    %v2660 = vunpack.c.l.b16 %v1629
    %v2661 = vunpack.c.l.b16 %v1630
    %v2662 = vunpack.c.l.b16 %v1631
    %v2663 = vunpack.c.l.b16 %v1632
    %v2664 = vunpack.c.l.b16 %v1633
    %v2665 = vunpack.c.l.b16 %v1634
    %v2666 = vunpack.c.l.b16 %v1635
    %v2667 = vunpack.c.l.b16 %v1636
    %v2668 = vunpack.c.l.b16 %v1637
    %v2669 = vunpack.c.l.b16 %v1638
    %v2670 = vunpack.c.l.b16 %v1639
    %v2671 = vunpack.c.l.b16 %v1640
    %v2672 = vunpack.c.l.b16 %v1641
    %v2673 = vunpack.c.l.b16 %v1642
    %v2674 = vunpack.c.l.b16 %v1643
    %v2675 = vunpack.c.l.b16 %v1644
    %v2676 = vunpack.c.l.b16 %v1645
    %v2677 = vunpack.c.l.b16 %v1646
    %v2678 = vunpack.c.l.b16 %v1647
    %v2679 = vunpack.c.l.b16 %v1648
    %v2680 = vunpack.c.l.b16 %v1649
    %v2681 = vunpack.c.l.b16 %v1650
    %v2682 = vunpack.c.l.b16 %v1651
    %v2683 = vunpack.c.l.b16 %v1652
    %v2684 = vunpack.c.l.b16 %v1653
    %v2685 = vunpack.c.l.b16 %v1654
    %v2686 = vunpack.c.l.b16 %v1655
    %v2687 = vunpack.c.l.b16 %v1656
    %v2688 = vunpack.c.l.b16 %v1657
    %v2689 = vunpack.c.l.b16 %v1658
    %v2690 = vunpack.c.l.b16 %v1659
    %v2691 = vunpack.c.l.b16 %v1660
    %v2692 = vunpack.c.l.b16 %v1661
    %v2693 = vpack.c.b16 %v2182, %v2181
    %v2694 = vpack.c.b16 %v2184, %v2183
    %v2695 = vpack.c.b16 %v2186, %v2185
    %v2696 = vpack.c.b16 %v2188, %v2187
    %v2697 = vpack.c.b16 %v2190, %v2189
    %v2698 = vpack.c.b16 %v2192, %v2191
    %v2699 = vpack.c.b16 %v2194, %v2193
    %v2700 = vpack.c.b16 %v2196, %v2195
    %v2701 = vpack.c.b16 %v2198, %v2197
    %v2702 = vpack.c.b16 %v2200, %v2199
    %v2703 = vpack.c.b16 %v2202, %v2201
    %v2704 = vpack.c.b16 %v2204, %v2203
    %v2705 = vpack.c.b16 %v2206, %v2205
    %v2706 = vpack.c.b16 %v2208, %v2207
    %v2707 = vpack.c.b16 %v2210, %v2209
    %v2708 = vpack.c.b16 %v2212, %v2211
    %v2709 = vpack.c.b16 %v2214, %v2213
    %v2710 = vpack.c.b16 %v2216, %v2215
    %v2711 = vpack.c.b16 %v2218, %v2217
    %v2712 = vpack.c.b16 %v2220, %v2219
    %v2713 = vpack.c.b16 %v2222, %v2221
    %v2714 = vpack.c.b16 %v2224, %v2223
    %v2715 = vpack.c.b16 %v2226, %v2225
    %v2716 = vpack.c.b16 %v2228, %v2227
    %v2717 = vpack.c.b16 %v2230, %v2229
    %v2718 = vpack.c.b16 %v2232, %v2231
    %v2719 = vpack.c.b16 %v2234, %v2233
    %v2720 = vpack.c.b16 %v2236, %v2235
    %v2721 = vpack.c.b16 %v2238, %v2237
    %v2722 = vpack.c.b16 %v2240, %v2239
    %v2723 = vpack.c.b16 %v2242, %v2241
    %v2724 = vpack.c.b16 %v2244, %v2243
    %v2725 = vpack.c.b16 %v2246, %v2245
    %v2726 = vpack.c.b16 %v2248, %v2247
    %v2727 = vpack.c.b16 %v2250, %v2249
    %v2728 = vpack.c.b16 %v2252, %v2251
    %v2729 = vpack.c.b16 %v2254, %v2253
    %v2730 = vpack.c.b16 %v2256, %v2255
    %v2731 = vpack.c.b16 %v2258, %v2257
    %v2732 = vpack.c.b16 %v2260, %v2259
    %v2733 = vpack.c.b16 %v2262, %v2261
    %v2734 = vpack.c.b16 %v2264, %v2263
    %v2735 = vpack.c.b16 %v2266, %v2265
    %v2736 = vpack.c.b16 %v2268, %v2267
    %v2737 = vpack.c.b16 %v2270, %v2269
    %v2738 = vpack.c.b16 %v2272, %v2271
    %v2739 = vpack.c.b16 %v2274, %v2273
    %v2740 = vpack.c.b16 %v2276, %v2275
    %v2741 = vpack.c.b16 %v2278, %v2277
    %v2742 = vpack.c.b16 %v2280, %v2279
    %v2743 = vpack.c.b16 %v2282, %v2281
    %v2744 = vpack.c.b16 %v2284, %v2283
    %v2745 = vpack.c.b16 %v2286, %v2285
    %v2746 = vpack.c.b16 %v2288, %v2287
    %v2747 = vpack.c.b16 %v2290, %v2289
    %v2748 = vpack.c.b16 %v2292, %v2291
    %v2749 = vpack.c.b16 %v2294, %v2293
    %v2750 = vpack.c.b16 %v2296, %v2295
    %v2751 = vpack.c.b16 %v2298, %v2297
    %v2752 = vpack.c.b16 %v2300, %v2299
    %v2753 = vpack.c.b16 %v2302, %v2301
    %v2754 = vpack.c.b16 %v2304, %v2303
    %v2755 = vpack.c.b16 %v2306, %v2305
    %v2756 = vpack.c.b16 %v2308, %v2307
    %v2757 = vpack.c.b16 %v2310, %v2309
    %v2758 = vpack.c.b16 %v2312, %v2311
    %v2759 = vpack.c.b16 %v2314, %v2313
    %v2760 = vpack.c.b16 %v2316, %v2315
    %v2761 = vpack.c.b16 %v2318, %v2317
    %v2762 = vpack.c.b16 %v2320, %v2319
    %v2763 = vpack.c.b16 %v2322, %v2321
    %v2764 = vpack.c.b16 %v2324, %v2323
    %v2765 = vpack.c.b16 %v2326, %v2325
    %v2766 = vpack.c.b16 %v2328, %v2327
    %v2767 = vpack.c.b16 %v2330, %v2329
    %v2768 = vpack.c.b16 %v2332, %v2331
    %v2769 = vpack.c.b16 %v2334, %v2333
    %v2770 = vpack.c.b16 %v2336, %v2335
    %v2771 = vpack.c.b16 %v2338, %v2337
    %v2772 = vpack.c.b16 %v2340, %v2339
    %v2773 = vpack.c.b16 %v2342, %v2341
    %v2774 = vpack.c.b16 %v2344, %v2343
    %v2775 = vpack.c.b16 %v2346, %v2345
    %v2776 = vpack.c.b16 %v2348, %v2347
    %v2777 = vpack.c.b16 %v2350, %v2349
    %v2778 = vpack.c.b16 %v2352, %v2351
    %v2779 = vpack.c.b16 %v2354, %v2353
    %v2780 = vpack.c.b16 %v2356, %v2355
    %v2781 = vpack.c.b16 %v2358, %v2357
    %v2782 = vpack.c.b16 %v2360, %v2359
    %v2783 = vpack.c.b16 %v2362, %v2361
    %v2784 = vpack.c.b16 %v2364, %v2363
    %v2785 = vpack.c.b16 %v2366, %v2365
    %v2786 = vpack.c.b16 %v2368, %v2367
    %v2787 = vpack.c.b16 %v2370, %v2369
    %v2788 = vpack.c.b16 %v2372, %v2371
    %v2789 = vpack.c.b16 %v2374, %v2373
    %v2790 = vpack.c.b16 %v2376, %v2375
    %v2791 = vpack.c.b16 %v2378, %v2377
    %v2792 = vpack.c.b16 %v2380, %v2379
    %v2793 = vpack.c.b16 %v2382, %v2381
    %v2794 = vpack.c.b16 %v2384, %v2383
    %v2795 = vpack.c.b16 %v2386, %v2385
    %v2796 = vpack.c.b16 %v2388, %v2387
    %v2797 = vpack.c.b16 %v2390, %v2389
    %v2798 = vpack.c.b16 %v2392, %v2391
    %v2799 = vpack.c.b16 %v2394, %v2393
    %v2800 = vpack.c.b16 %v2396, %v2395
    %v2801 = vpack.c.b16 %v2398, %v2397
    %v2802 = vpack.c.b16 %v2400, %v2399
    %v2803 = vpack.c.b16 %v2402, %v2401
    %v2804 = vpack.c.b16 %v2404, %v2403
    %v2805 = vpack.c.b16 %v2406, %v2405
    %v2806 = vpack.c.b16 %v2408, %v2407
    %v2807 = vpack.c.b16 %v2410, %v2409
    %v2808 = vpack.c.b16 %v2412, %v2411
    %v2809 = vpack.c.b16 %v2414, %v2413
    %v2810 = vpack.c.b16 %v2416, %v2415
    %v2811 = vpack.c.b16 %v2418, %v2417
    %v2812 = vpack.c.b16 %v2420, %v2419
    %v2813 = vpack.c.b16 %v2422, %v2421
    %v2814 = vpack.c.b16 %v2424, %v2423
    %v2815 = vpack.c.b16 %v2426, %v2425
    %v2816 = vpack.c.b16 %v2428, %v2427
    %v2817 = vpack.c.b16 %v2430, %v2429
    %v2818 = vpack.c.b16 %v2432, %v2431
    %v2819 = vpack.c.b16 %v2434, %v2433
    %v2820 = vpack.c.b16 %v2436, %v2435
    %v2821 = vpack.c.b16 %v2438, %v2437
    %v2822 = vpack.c.b16 %v2440, %v2439
    %v2823 = vpack.c.b16 %v2442, %v2441
    %v2824 = vpack.c.b16 %v2444, %v2443
    %v2825 = vpack.c.b16 %v2446, %v2445
    %v2826 = vpack.c.b16 %v2448, %v2447
    %v2827 = vpack.c.b16 %v2450, %v2449
    %v2828 = vpack.c.b16 %v2452, %v2451
    %v2829 = vpack.c.b16 %v2454, %v2453
    %v2830 = vpack.c.b16 %v2456, %v2455
    %v2831 = vpack.c.b16 %v2458, %v2457
    %v2832 = vpack.c.b16 %v2460, %v2459
    %v2833 = vpack.c.b16 %v2462, %v2461
    %v2834 = vpack.c.b16 %v2464, %v2463
    %v2835 = vpack.c.b16 %v2466, %v2465
    %v2836 = vpack.c.b16 %v2468, %v2467
    %v2837 = vpack.c.b16 %v2470, %v2469
    %v2838 = vpack.c.b16 %v2472, %v2471
    %v2839 = vpack.c.b16 %v2474, %v2473
    %v2840 = vpack.c.b16 %v2476, %v2475
    %v2841 = vpack.c.b16 %v2478, %v2477
    %v2842 = vpack.c.b16 %v2480, %v2479
    %v2843 = vpack.c.b16 %v2482, %v2481
    %v2844 = vpack.c.b16 %v2484, %v2483
    %v2845 = vpack.c.b16 %v2486, %v2485
    %v2846 = vpack.c.b16 %v2488, %v2487
    %v2847 = vpack.c.b16 %v2490, %v2489
    %v2848 = vpack.c.b16 %v2492, %v2491
    %v2849 = vpack.c.b16 %v2494, %v2493
    %v2850 = vpack.c.b16 %v2496, %v2495
    %v2851 = vpack.c.b16 %v2498, %v2497
    %v2852 = vpack.c.b16 %v2500, %v2499
    %v2853 = vpack.c.b16 %v2502, %v2501
    %v2854 = vpack.c.b16 %v2504, %v2503
    %v2855 = vpack.c.b16 %v2506, %v2505
    %v2856 = vpack.c.b16 %v2508, %v2507
    %v2857 = vpack.c.b16 %v2510, %v2509
    %v2858 = vpack.c.b16 %v2512, %v2511
    %v2859 = vpack.c.b16 %v2514, %v2513
    %v2860 = vpack.c.b16 %v2516, %v2515
    %v2861 = vpack.c.b16 %v2518, %v2517
    %v2862 = vpack.c.b16 %v2520, %v2519
    %v2863 = vpack.c.b16 %v2522, %v2521
    %v2864 = vpack.c.b16 %v2524, %v2523
    %v2865 = vpack.c.b16 %v2526, %v2525
    %v2866 = vpack.c.b16 %v2528, %v2527
    %v2867 = vpack.c.b16 %v2530, %v2529
    %v2868 = vpack.c.b16 %v2532, %v2531
    %v2869 = vpack.c.b16 %v2534, %v2533
    %v2870 = vpack.c.b16 %v2536, %v2535
    %v2871 = vpack.c.b16 %v2538, %v2537
    %v2872 = vpack.c.b16 %v2540, %v2539
    %v2873 = vpack.c.b16 %v2542, %v2541
    %v2874 = vpack.c.b16 %v2544, %v2543
    %v2875 = vpack.c.b16 %v2546, %v2545
    %v2876 = vpack.c.b16 %v2548, %v2547
    %v2877 = vpack.c.b16 %v2550, %v2549
    %v2878 = vpack.c.b16 %v2552, %v2551
    %v2879 = vpack.c.b16 %v2554, %v2553
    %v2880 = vpack.c.b16 %v2556, %v2555
    %v2881 = vpack.c.b16 %v2558, %v2557
    %v2882 = vpack.c.b16 %v2560, %v2559
    %v2883 = vpack.c.b16 %v2562, %v2561
    %v2884 = vpack.c.b16 %v2564, %v2563
    %v2885 = vpack.c.b16 %v2566, %v2565
    %v2886 = vpack.c.b16 %v2568, %v2567
    %v2887 = vpack.c.b16 %v2570, %v2569
    %v2888 = vpack.c.b16 %v2572, %v2571
    %v2889 = vpack.c.b16 %v2574, %v2573
    %v2890 = vpack.c.b16 %v2576, %v2575
    %v2891 = vpack.c.b16 %v2578, %v2577
    %v2892 = vpack.c.b16 %v2580, %v2579
    %v2893 = vpack.c.b16 %v2582, %v2581
    %v2894 = vpack.c.b16 %v2584, %v2583
    %v2895 = vpack.c.b16 %v2586, %v2585
    %v2896 = vpack.c.b16 %v2588, %v2587
    %v2897 = vpack.c.b16 %v2590, %v2589
    %v2898 = vpack.c.b16 %v2592, %v2591
    %v2899 = vpack.c.b16 %v2594, %v2593
    %v2900 = vpack.c.b16 %v2596, %v2595
    %v2901 = vpack.c.b16 %v2598, %v2597
    %v2902 = vpack.c.b16 %v2600, %v2599
    %v2903 = vpack.c.b16 %v2602, %v2601
    %v2904 = vpack.c.b16 %v2604, %v2603
    %v2905 = vpack.c.b16 %v2606, %v2605
    %v2906 = vpack.c.b16 %v2608, %v2607
    %v2907 = vpack.c.b16 %v2610, %v2609
    %v2908 = vpack.c.b16 %v2612, %v2611
    %v2909 = vpack.c.b16 %v2614, %v2613
    %v2910 = vpack.c.b16 %v2616, %v2615
    %v2911 = vpack.c.b16 %v2618, %v2617
    %v2912 = vpack.c.b16 %v2620, %v2619
    %v2913 = vpack.c.b16 %v2622, %v2621
    %v2914 = vpack.c.b16 %v2624, %v2623
    %v2915 = vpack.c.b16 %v2626, %v2625
    %v2916 = vpack.c.b16 %v2628, %v2627
    %v2917 = vpack.c.b16 %v2630, %v2629
    %v2918 = vpack.c.b16 %v2632, %v2631
    %v2919 = vpack.c.b16 %v2634, %v2633
    %v2920 = vpack.c.b16 %v2636, %v2635
    %v2921 = vpack.c.b16 %v2638, %v2637
    %v2922 = vpack.c.b16 %v2640, %v2639
    %v2923 = vpack.c.b16 %v2642, %v2641
    %v2924 = vpack.c.b16 %v2644, %v2643
    %v2925 = vpack.c.b16 %v2646, %v2645
    %v2926 = vpack.c.b16 %v2648, %v2647
    %v2927 = vpack.c.b16 %v2650, %v2649
    %v2928 = vpack.c.b16 %v2652, %v2651
    %v2929 = vpack.c.b16 %v2654, %v2653
    %v2930 = vpack.c.b16 %v2656, %v2655
    %v2931 = vpack.c.b16 %v2658, %v2657
    %v2932 = vpack.c.b16 %v2660, %v2659
    %v2933 = vpack.c.b16 %v2662, %v2661
    %v2934 = vpack.c.b16 %v2664, %v2663
    %v2935 = vpack.c.b16 %v2666, %v2665
    %v2936 = vpack.c.b16 %v2668, %v2667
    %v2937 = vpack.c.b16 %v2670, %v2669
    %v2938 = vpack.c.b16 %v2672, %v2671
    %v2939 = vpack.c.b16 %v2674, %v2673
    %v2940 = vpack.c.b16 %v2676, %v2675
    %v2941 = vpack.c.b16 %v2678, %v2677
    %v2942 = vpack.c.b16 %v2680, %v2679
    %v2943 = vpack.c.b16 %v2682, %v2681
    %v2944 = vpack.c.b16 %v2684, %v2683
    %v2945 = vpack.c.b16 %v2686, %v2685
    %v2946 = vpack.c.b16 %v2688, %v2687
    %v2947 = vpack.c.b16 %v2690, %v2689
    %v2948 = vpack.c.b16 %v2692, %v2691
    %3205 = vmatprep.subr.bf16.mxu0 0
    %3206 = vmatpush1.bf16.msra.mxu0 %v2693
    %3207 = vmatprep.subr.bf16.mxu0 0
    %3208 = vmatpush1.bf16.msra.mxu0 %v2694
    %3209 = vmatprep.subr.bf16.mxu0 0
    %3210 = vmatpush1.bf16.msra.mxu0 %v2695
    %3211 = vmatprep.subr.bf16.mxu0 0
    %3212 = vmatpush1.bf16.msra.mxu0 %v2696
    %3213 = vmatprep.subr.bf16.mxu0 0
    %3214 = vmatpush1.bf16.msra.mxu0 %v2697
    %3215 = vmatprep.subr.bf16.mxu0 0
    %3216 = vmatpush1.bf16.msra.mxu0 %v2698
    %3217 = vmatprep.subr.bf16.mxu0 0
    %3218 = vmatpush1.bf16.msra.mxu0 %v2699
    %3219 = vmatprep.subr.bf16.mxu0 0
    %3220 = vmatpush1.bf16.msra.mxu0 %v2700
    %3221 = vmatprep.subr.bf16.mxu0 0
    %3222 = vmatpush1.bf16.msra.mxu0 %v2701
    %3223 = vmatprep.subr.bf16.mxu0 0
    %3224 = vmatpush1.bf16.msra.mxu0 %v2702
    %3225 = vmatprep.subr.bf16.mxu0 0
    %3226 = vmatpush1.bf16.msra.mxu0 %v2703
    %3227 = vmatprep.subr.bf16.mxu0 0
    %3228 = vmatpush1.bf16.msra.mxu0 %v2704
    %3229 = vmatprep.subr.bf16.mxu0 0
    %3230 = vmatpush1.bf16.msra.mxu0 %v2705
    %3231 = vmatprep.subr.bf16.mxu0 0
    %3232 = vmatpush1.bf16.msra.mxu0 %v2706
    %3233 = vmatprep.subr.bf16.mxu0 0
    %3234 = vmatpush1.bf16.msra.mxu0 %v2707
    %3235 = vmatprep.subr.bf16.mxu0 0
    %3236 = vmatpush1.bf16.msra.mxu0 %v2708
    %3237 = vmatprep.mubr.bf16.mxu0 %v1119
    %3238 = vmatmul.mubr.bf16.gmra.mrb[0].mxu0 %v1118
    %v3239 = vpop.f32.mrb[0].mxu0
    %v3240 = vadd.f32 %v1667, %v3239
    %v3241 = vpop.f32.mrb[0].mxu0
    %v3242 = vpop.f32.mrb[0].mxu0
    %v3243 = vpop.f32.mrb[0].mxu0
    %3244 = vdwg.mxu0
    %3245 = vmatprep.subr.bf16.mxu0 0
    %3246 = vmatpush1.bf16.msra.mxu0 %v2709
    %3247 = vmatprep.subr.bf16.mxu0 0
    %3248 = vmatpush1.bf16.msra.mxu0 %v2710
    %3249 = vmatprep.subr.bf16.mxu0 0
    %3250 = vmatpush1.bf16.msra.mxu0 %v2711
    %3251 = vmatprep.subr.bf16.mxu0 0
    %3252 = vmatpush1.bf16.msra.mxu0 %v2712
    %3253 = vmatprep.subr.bf16.mxu0 0
    %3254 = vmatpush1.bf16.msra.mxu0 %v2713
    %3255 = vmatprep.subr.bf16.mxu0 0
    %3256 = vmatpush1.bf16.msra.mxu0 %v2714
    %3257 = vmatprep.subr.bf16.mxu0 0
    %3258 = vmatpush1.bf16.msra.mxu0 %v2715
    %3259 = vmatprep.subr.bf16.mxu0 0
    %3260 = vmatpush1.bf16.msra.mxu0 %v2716
    %3261 = vmatprep.subr.bf16.mxu0 0
    %3262 = vmatpush1.bf16.msra.mxu0 %v2717
    %3263 = vmatprep.subr.bf16.mxu0 0
    %3264 = vmatpush1.bf16.msra.mxu0 %v2718
    %3265 = vmatprep.subr.bf16.mxu0 0
    %3266 = vmatpush1.bf16.msra.mxu0 %v2719
    %3267 = vmatprep.subr.bf16.mxu0 0
    %3268 = vmatpush1.bf16.msra.mxu0 %v2720
    %3269 = vmatprep.subr.bf16.mxu0 0
    %3270 = vmatpush1.bf16.msra.mxu0 %v2721
    %3271 = vmatprep.subr.bf16.mxu0 0
    %3272 = vmatpush1.bf16.msra.mxu0 %v2722
    %3273 = vmatprep.subr.bf16.mxu0 0
    %3274 = vmatpush1.bf16.msra.mxu0 %v2723
    %3275 = vmatprep.subr.bf16.mxu0 0
    %3276 = vmatpush1.bf16.msra.mxu0 %v2724
    %3277 = vmatprep.mubr.bf16.mxu0 %v1121
    %3278 = vmatmul.mubr.bf16.gmra.mrb[0].mxu0 %v1120
    %v3279 = vpop.f32.mrb[0].mxu0
    %v3280 = vadd.f32 %v3240, %v3279
    %v3281 = vpop.f32.mrb[0].mxu0
    %v3282 = vpop.f32.mrb[0].mxu0
    %v3283 = vpop.f32.mrb[0].mxu0
    %3284 = vdwg.mxu0
    %3285 = vmatprep.subr.bf16.mxu0 0
    %3286 = vmatpush1.bf16.msra.mxu0 %v2725
    %3287 = vmatprep.subr.bf16.mxu0 0
    %3288 = vmatpush1.bf16.msra.mxu0 %v2726
    %3289 = vmatprep.subr.bf16.mxu0 0
    %3290 = vmatpush1.bf16.msra.mxu0 %v2727
    %3291 = vmatprep.subr.bf16.mxu0 0
    %3292 = vmatpush1.bf16.msra.mxu0 %v2728
    %3293 = vmatprep.subr.bf16.mxu0 0
    %3294 = vmatpush1.bf16.msra.mxu0 %v2729
    %3295 = vmatprep.subr.bf16.mxu0 0
    %3296 = vmatpush1.bf16.msra.mxu0 %v2730
    %3297 = vmatprep.subr.bf16.mxu0 0
    %3298 = vmatpush1.bf16.msra.mxu0 %v2731
    %3299 = vmatprep.subr.bf16.mxu0 0
    %3300 = vmatpush1.bf16.msra.mxu0 %v2732
    %3301 = vmatprep.subr.bf16.mxu0 0
    %3302 = vmatpush1.bf16.msra.mxu0 %v2733
    %3303 = vmatprep.subr.bf16.mxu0 0
    %3304 = vmatpush1.bf16.msra.mxu0 %v2734
    %3305 = vmatprep.subr.bf16.mxu0 0
    %3306 = vmatpush1.bf16.msra.mxu0 %v2735
    %3307 = vmatprep.subr.bf16.mxu0 0
    %3308 = vmatpush1.bf16.msra.mxu0 %v2736
    %3309 = vmatprep.subr.bf16.mxu0 0
    %3310 = vmatpush1.bf16.msra.mxu0 %v2737
    %3311 = vmatprep.subr.bf16.mxu0 0
    %3312 = vmatpush1.bf16.msra.mxu0 %v2738
    %3313 = vmatprep.subr.bf16.mxu0 0
    %3314 = vmatpush1.bf16.msra.mxu0 %v2739
    %3315 = vmatprep.subr.bf16.mxu0 0
    %3316 = vmatpush1.bf16.msra.mxu0 %v2740
    %3317 = vmatprep.mubr.bf16.mxu0 %v1123
    %3318 = vmatmul.mubr.bf16.gmra.mrb[0].mxu0 %v1122
    %v3319 = vpop.f32.mrb[0].mxu0
    %v3320 = vadd.f32 %v3280, %v3319
    %v3321 = vpop.f32.mrb[0].mxu0
    %v3322 = vpop.f32.mrb[0].mxu0
    %v3323 = vpop.f32.mrb[0].mxu0
    %3324 = vdwg.mxu0
    %3325 = vmatprep.subr.bf16.mxu0 0
    %3326 = vmatpush1.bf16.msra.mxu0 %v2741
    %3327 = vmatprep.subr.bf16.mxu0 0
    %3328 = vmatpush1.bf16.msra.mxu0 %v2742
    %3329 = vmatprep.subr.bf16.mxu0 0
    %3330 = vmatpush1.bf16.msra.mxu0 %v2743
    %3331 = vmatprep.subr.bf16.mxu0 0
    %3332 = vmatpush1.bf16.msra.mxu0 %v2744
    %3333 = vmatprep.subr.bf16.mxu0 0
    %3334 = vmatpush1.bf16.msra.mxu0 %v2745
    %3335 = vmatprep.subr.bf16.mxu0 0
    %3336 = vmatpush1.bf16.msra.mxu0 %v2746
    %3337 = vmatprep.subr.bf16.mxu0 0
    %3338 = vmatpush1.bf16.msra.mxu0 %v2747
    %3339 = vmatprep.subr.bf16.mxu0 0
    %3340 = vmatpush1.bf16.msra.mxu0 %v2748
    %3341 = vmatprep.subr.bf16.mxu0 0
    %3342 = vmatpush1.bf16.msra.mxu0 %v2749
    %3343 = vmatprep.subr.bf16.mxu0 0
    %3344 = vmatpush1.bf16.msra.mxu0 %v2750
    %3345 = vmatprep.subr.bf16.mxu0 0
    %3346 = vmatpush1.bf16.msra.mxu0 %v2751
    %3347 = vmatprep.subr.bf16.mxu0 0
    %3348 = vmatpush1.bf16.msra.mxu0 %v2752
    %3349 = vmatprep.subr.bf16.mxu0 0
    %3350 = vmatpush1.bf16.msra.mxu0 %v2753
    %3351 = vmatprep.subr.bf16.mxu0 0
    %3352 = vmatpush1.bf16.msra.mxu0 %v2754
    %3353 = vmatprep.subr.bf16.mxu0 0
    %3354 = vmatpush1.bf16.msra.mxu0 %v2755
    %3355 = vmatprep.subr.bf16.mxu0 0
    %3356 = vmatpush1.bf16.msra.mxu0 %v2756
    %3357 = vmatprep.mubr.bf16.mxu0 %v1125
    %3358 = vmatmul.mubr.bf16.gmra.mrb[0].mxu0 %v1124
    %v3359 = vpop.f32.mrb[0].mxu0
    %v3360 = vadd.f32 %v3320, %v3359
    %v3361 = vpop.f32.mrb[0].mxu0
    %v3362 = vpop.f32.mrb[0].mxu0
    %v3363 = vpop.f32.mrb[0].mxu0
    %3364 = vdwg.mxu0
    %3365 = vmatprep.subr.bf16.mxu0 0
    %3366 = vmatpush1.bf16.msra.mxu0 %v2757
    %3367 = vmatprep.subr.bf16.mxu0 0
    %3368 = vmatpush1.bf16.msra.mxu0 %v2758
    %3369 = vmatprep.subr.bf16.mxu0 0
    %3370 = vmatpush1.bf16.msra.mxu0 %v2759
    %3371 = vmatprep.subr.bf16.mxu0 0
    %3372 = vmatpush1.bf16.msra.mxu0 %v2760
    %3373 = vmatprep.subr.bf16.mxu0 0
    %3374 = vmatpush1.bf16.msra.mxu0 %v2761
    %3375 = vmatprep.subr.bf16.mxu0 0
    %3376 = vmatpush1.bf16.msra.mxu0 %v2762
    %3377 = vmatprep.subr.bf16.mxu0 0
    %3378 = vmatpush1.bf16.msra.mxu0 %v2763
    %3379 = vmatprep.subr.bf16.mxu0 0
    %3380 = vmatpush1.bf16.msra.mxu0 %v2764
    %3381 = vmatprep.subr.bf16.mxu0 0
    %3382 = vmatpush1.bf16.msra.mxu0 %v2765
    %3383 = vmatprep.subr.bf16.mxu0 0
    %3384 = vmatpush1.bf16.msra.mxu0 %v2766
    %3385 = vmatprep.subr.bf16.mxu0 0
    %3386 = vmatpush1.bf16.msra.mxu0 %v2767
    %3387 = vmatprep.subr.bf16.mxu0 0
    %3388 = vmatpush1.bf16.msra.mxu0 %v2768
    %3389 = vmatprep.subr.bf16.mxu0 0
    %3390 = vmatpush1.bf16.msra.mxu0 %v2769
    %3391 = vmatprep.subr.bf16.mxu0 0
    %3392 = vmatpush1.bf16.msra.mxu0 %v2770
    %3393 = vmatprep.subr.bf16.mxu0 0
    %3394 = vmatpush1.bf16.msra.mxu0 %v2771
    %3395 = vmatprep.subr.bf16.mxu0 0
    %3396 = vmatpush1.bf16.msra.mxu0 %v2772
    %3397 = vmatprep.mubr.bf16.mxu0 %v1127
    %3398 = vmatmul.mubr.bf16.gmra.mrb[0].mxu0 %v1126
    %v3399 = vpop.f32.mrb[0].mxu0
    %v3400 = vadd.f32 %v3360, %v3399
    %v3401 = vpop.f32.mrb[0].mxu0
    %v3402 = vpop.f32.mrb[0].mxu0
    %v3403 = vpop.f32.mrb[0].mxu0
    %3404 = vdwg.mxu0
    %3405 = vmatprep.subr.bf16.mxu0 0
    %3406 = vmatpush1.bf16.msra.mxu0 %v2773
    %3407 = vmatprep.subr.bf16.mxu0 0
    %3408 = vmatpush1.bf16.msra.mxu0 %v2774
    %3409 = vmatprep.subr.bf16.mxu0 0
    %3410 = vmatpush1.bf16.msra.mxu0 %v2775
    %3411 = vmatprep.subr.bf16.mxu0 0
    %3412 = vmatpush1.bf16.msra.mxu0 %v2776
    %3413 = vmatprep.subr.bf16.mxu0 0
    %3414 = vmatpush1.bf16.msra.mxu0 %v2777
    %3415 = vmatprep.subr.bf16.mxu0 0
    %3416 = vmatpush1.bf16.msra.mxu0 %v2778
    %3417 = vmatprep.subr.bf16.mxu0 0
    %3418 = vmatpush1.bf16.msra.mxu0 %v2779
    %3419 = vmatprep.subr.bf16.mxu0 0
    %3420 = vmatpush1.bf16.msra.mxu0 %v2780
    %3421 = vmatprep.subr.bf16.mxu0 0
    %3422 = vmatpush1.bf16.msra.mxu0 %v2781
    %3423 = vmatprep.subr.bf16.mxu0 0
    %3424 = vmatpush1.bf16.msra.mxu0 %v2782
    %3425 = vmatprep.subr.bf16.mxu0 0
    %3426 = vmatpush1.bf16.msra.mxu0 %v2783
    %3427 = vmatprep.subr.bf16.mxu0 0
    %3428 = vmatpush1.bf16.msra.mxu0 %v2784
    %3429 = vmatprep.subr.bf16.mxu0 0
    %3430 = vmatpush1.bf16.msra.mxu0 %v2785
    %3431 = vmatprep.subr.bf16.mxu0 0
    %3432 = vmatpush1.bf16.msra.mxu0 %v2786
    %3433 = vmatprep.subr.bf16.mxu0 0
    %3434 = vmatpush1.bf16.msra.mxu0 %v2787
    %3435 = vmatprep.subr.bf16.mxu0 0
    %3436 = vmatpush1.bf16.msra.mxu0 %v2788
    %3437 = vmatprep.mubr.bf16.mxu0 %v1129
    %3438 = vmatmul.mubr.bf16.gmra.mrb[0].mxu0 %v1128
    %v3439 = vpop.f32.mrb[0].mxu0
    %v3440 = vadd.f32 %v3400, %v3439
    %v3441 = vpop.f32.mrb[0].mxu0
    %v3442 = vpop.f32.mrb[0].mxu0
    %v3443 = vpop.f32.mrb[0].mxu0
    %3444 = vdwg.mxu0
    %3445 = vmatprep.subr.bf16.mxu0 0
    %3446 = vmatpush1.bf16.msra.mxu0 %v2789
    %3447 = vmatprep.subr.bf16.mxu0 0
    %3448 = vmatpush1.bf16.msra.mxu0 %v2790
    %3449 = vmatprep.subr.bf16.mxu0 0
    %3450 = vmatpush1.bf16.msra.mxu0 %v2791
    %3451 = vmatprep.subr.bf16.mxu0 0
    %3452 = vmatpush1.bf16.msra.mxu0 %v2792
    %3453 = vmatprep.subr.bf16.mxu0 0
    %3454 = vmatpush1.bf16.msra.mxu0 %v2793
    %3455 = vmatprep.subr.bf16.mxu0 0
    %3456 = vmatpush1.bf16.msra.mxu0 %v2794
    %3457 = vmatprep.subr.bf16.mxu0 0
    %3458 = vmatpush1.bf16.msra.mxu0 %v2795
    %3459 = vmatprep.subr.bf16.mxu0 0
    %3460 = vmatpush1.bf16.msra.mxu0 %v2796
    %3461 = vmatprep.subr.bf16.mxu0 0
    %3462 = vmatpush1.bf16.msra.mxu0 %v2797
    %3463 = vmatprep.subr.bf16.mxu0 0
    %3464 = vmatpush1.bf16.msra.mxu0 %v2798
    %3465 = vmatprep.subr.bf16.mxu0 0
    %3466 = vmatpush1.bf16.msra.mxu0 %v2799
    %3467 = vmatprep.subr.bf16.mxu0 0
    %3468 = vmatpush1.bf16.msra.mxu0 %v2800
    %3469 = vmatprep.subr.bf16.mxu0 0
    %3470 = vmatpush1.bf16.msra.mxu0 %v2801
    %3471 = vmatprep.subr.bf16.mxu0 0
    %3472 = vmatpush1.bf16.msra.mxu0 %v2802
    %3473 = vmatprep.subr.bf16.mxu0 0
    %3474 = vmatpush1.bf16.msra.mxu0 %v2803
    %3475 = vmatprep.subr.bf16.mxu0 0
    %3476 = vmatpush1.bf16.msra.mxu0 %v2804
    %3477 = vmatprep.mubr.bf16.mxu0 %v1131
    %3478 = vmatmul.mubr.bf16.gmra.mrb[0].mxu0 %v1130
    %v3479 = vpop.f32.mrb[0].mxu0
    %v3480 = vadd.f32 %v3440, %v3479
    %v3481 = vpop.f32.mrb[0].mxu0
    %v3482 = vpop.f32.mrb[0].mxu0
    %v3483 = vpop.f32.mrb[0].mxu0
    %3484 = vdwg.mxu0
    %3485 = vmatprep.subr.bf16.mxu0 0
    %3486 = vmatpush1.bf16.msra.mxu0 %v2805
    %3487 = vmatprep.subr.bf16.mxu0 0
    %3488 = vmatpush1.bf16.msra.mxu0 %v2806
    %3489 = vmatprep.subr.bf16.mxu0 0
    %3490 = vmatpush1.bf16.msra.mxu0 %v2807
    %3491 = vmatprep.subr.bf16.mxu0 0
    %3492 = vmatpush1.bf16.msra.mxu0 %v2808
    %3493 = vmatprep.subr.bf16.mxu0 0
    %3494 = vmatpush1.bf16.msra.mxu0 %v2809
    %3495 = vmatprep.subr.bf16.mxu0 0
    %3496 = vmatpush1.bf16.msra.mxu0 %v2810
    %3497 = vmatprep.subr.bf16.mxu0 0
    %3498 = vmatpush1.bf16.msra.mxu0 %v2811
    %3499 = vmatprep.subr.bf16.mxu0 0
    %3500 = vmatpush1.bf16.msra.mxu0 %v2812
    %3501 = vmatprep.subr.bf16.mxu0 0
    %3502 = vmatpush1.bf16.msra.mxu0 %v2813
    %3503 = vmatprep.subr.bf16.mxu0 0
    %3504 = vmatpush1.bf16.msra.mxu0 %v2814
    %3505 = vmatprep.subr.bf16.mxu0 0
    %3506 = vmatpush1.bf16.msra.mxu0 %v2815
    %3507 = vmatprep.subr.bf16.mxu0 0
    %3508 = vmatpush1.bf16.msra.mxu0 %v2816
    %3509 = vmatprep.subr.bf16.mxu0 0
    %3510 = vmatpush1.bf16.msra.mxu0 %v2817
    %3511 = vmatprep.subr.bf16.mxu0 0
    %3512 = vmatpush1.bf16.msra.mxu0 %v2818
    %3513 = vmatprep.subr.bf16.mxu0 0
    %3514 = vmatpush1.bf16.msra.mxu0 %v2819
    %3515 = vmatprep.subr.bf16.mxu0 0
    %3516 = vmatpush1.bf16.msra.mxu0 %v2820
    %3517 = vmatprep.mubr.bf16.mxu0 %v1133
    %3518 = vmatmul.mubr.bf16.gmra.mrb[0].mxu0 %v1132
    %v3519 = vpop.f32.mrb[0].mxu0
    %v3520 = vadd.f32 %v3480, %v3519
    %v3521 = vpop.f32.mrb[0].mxu0
    %v3522 = vpop.f32.mrb[0].mxu0
    %v3523 = vpop.f32.mrb[0].mxu0
    %3524 = vdwg.mxu0
    %3525 = vmatprep.subr.bf16.mxu0 0
    %3526 = vmatpush1.bf16.msra.mxu0 %v2821
    %3527 = vmatprep.subr.bf16.mxu0 0
    %3528 = vmatpush1.bf16.msra.mxu0 %v2822
    %3529 = vmatprep.subr.bf16.mxu0 0
    %3530 = vmatpush1.bf16.msra.mxu0 %v2823
    %3531 = vmatprep.subr.bf16.mxu0 0
    %3532 = vmatpush1.bf16.msra.mxu0 %v2824
    %3533 = vmatprep.subr.bf16.mxu0 0
    %3534 = vmatpush1.bf16.msra.mxu0 %v2825
    %3535 = vmatprep.subr.bf16.mxu0 0
    %3536 = vmatpush1.bf16.msra.mxu0 %v2826
    %3537 = vmatprep.subr.bf16.mxu0 0
    %3538 = vmatpush1.bf16.msra.mxu0 %v2827
    %3539 = vmatprep.subr.bf16.mxu0 0
    %3540 = vmatpush1.bf16.msra.mxu0 %v2828
    %3541 = vmatprep.subr.bf16.mxu0 0
    %3542 = vmatpush1.bf16.msra.mxu0 %v2829
    %3543 = vmatprep.subr.bf16.mxu0 0
    %3544 = vmatpush1.bf16.msra.mxu0 %v2830
    %3545 = vmatprep.subr.bf16.mxu0 0
    %3546 = vmatpush1.bf16.msra.mxu0 %v2831
    %3547 = vmatprep.subr.bf16.mxu0 0
    %3548 = vmatpush1.bf16.msra.mxu0 %v2832
    %3549 = vmatprep.subr.bf16.mxu0 0
    %3550 = vmatpush1.bf16.msra.mxu0 %v2833
    %3551 = vmatprep.subr.bf16.mxu0 0
    %3552 = vmatpush1.bf16.msra.mxu0 %v2834
    %3553 = vmatprep.subr.bf16.mxu0 0
    %3554 = vmatpush1.bf16.msra.mxu0 %v2835
    %3555 = vmatprep.subr.bf16.mxu0 0
    %3556 = vmatpush1.bf16.msra.mxu0 %v2836
    %3557 = vmatprep.mubr.bf16.mxu0 %v1135
    %3558 = vmatmul.mubr.bf16.gmra.mrb[0].mxu0 %v1134
    %v3559 = vpop.f32.mrb[0].mxu0
    %v3560 = vadd.f32 %v3520, %v3559
    %v3561 = vpop.f32.mrb[0].mxu0
    %v3562 = vpop.f32.mrb[0].mxu0
    %v3563 = vpop.f32.mrb[0].mxu0
    %3564 = vdwg.mxu0
    %3565 = vmatprep.subr.bf16.mxu0 0
    %3566 = vmatpush1.bf16.msra.mxu0 %v2837
    %3567 = vmatprep.subr.bf16.mxu0 0
    %3568 = vmatpush1.bf16.msra.mxu0 %v2838
    %3569 = vmatprep.subr.bf16.mxu0 0
    %3570 = vmatpush1.bf16.msra.mxu0 %v2839
    %3571 = vmatprep.subr.bf16.mxu0 0
    %3572 = vmatpush1.bf16.msra.mxu0 %v2840
    %3573 = vmatprep.subr.bf16.mxu0 0
    %3574 = vmatpush1.bf16.msra.mxu0 %v2841
    %3575 = vmatprep.subr.bf16.mxu0 0
    %3576 = vmatpush1.bf16.msra.mxu0 %v2842
    %3577 = vmatprep.subr.bf16.mxu0 0
    %3578 = vmatpush1.bf16.msra.mxu0 %v2843
    %3579 = vmatprep.subr.bf16.mxu0 0
    %3580 = vmatpush1.bf16.msra.mxu0 %v2844
    %3581 = vmatprep.subr.bf16.mxu0 0
    %3582 = vmatpush1.bf16.msra.mxu0 %v2845
    %3583 = vmatprep.subr.bf16.mxu0 0
    %3584 = vmatpush1.bf16.msra.mxu0 %v2846
    %3585 = vmatprep.subr.bf16.mxu0 0
    %3586 = vmatpush1.bf16.msra.mxu0 %v2847
    %3587 = vmatprep.subr.bf16.mxu0 0
    %3588 = vmatpush1.bf16.msra.mxu0 %v2848
    %3589 = vmatprep.subr.bf16.mxu0 0
    %3590 = vmatpush1.bf16.msra.mxu0 %v2849
    %3591 = vmatprep.subr.bf16.mxu0 0
    %3592 = vmatpush1.bf16.msra.mxu0 %v2850
    %3593 = vmatprep.subr.bf16.mxu0 0
    %3594 = vmatpush1.bf16.msra.mxu0 %v2851
    %3595 = vmatprep.subr.bf16.mxu0 0
    %3596 = vmatpush1.bf16.msra.mxu0 %v2852
    %3597 = vmatprep.mubr.bf16.mxu0 %v1137
    %3598 = vmatmul.mubr.bf16.gmra.mrb[0].mxu0 %v1136
    %v3599 = vpop.f32.mrb[0].mxu0
    %v3600 = vadd.f32 %v3560, %v3599
    %v3601 = vpop.f32.mrb[0].mxu0
    %v3602 = vpop.f32.mrb[0].mxu0
    %v3603 = vpop.f32.mrb[0].mxu0
    %3604 = vdwg.mxu0
    %3605 = vmatprep.subr.bf16.mxu0 0
    %3606 = vmatpush1.bf16.msra.mxu0 %v2853
    %3607 = vmatprep.subr.bf16.mxu0 0
    %3608 = vmatpush1.bf16.msra.mxu0 %v2854
    %3609 = vmatprep.subr.bf16.mxu0 0
    %3610 = vmatpush1.bf16.msra.mxu0 %v2855
    %3611 = vmatprep.subr.bf16.mxu0 0
    %3612 = vmatpush1.bf16.msra.mxu0 %v2856
    %3613 = vmatprep.subr.bf16.mxu0 0
    %3614 = vmatpush1.bf16.msra.mxu0 %v2857
    %3615 = vmatprep.subr.bf16.mxu0 0
    %3616 = vmatpush1.bf16.msra.mxu0 %v2858
    %3617 = vmatprep.subr.bf16.mxu0 0
    %3618 = vmatpush1.bf16.msra.mxu0 %v2859
    %3619 = vmatprep.subr.bf16.mxu0 0
    %3620 = vmatpush1.bf16.msra.mxu0 %v2860
    %3621 = vmatprep.subr.bf16.mxu0 0
    %3622 = vmatpush1.bf16.msra.mxu0 %v2861
    %3623 = vmatprep.subr.bf16.mxu0 0
    %3624 = vmatpush1.bf16.msra.mxu0 %v2862
    %3625 = vmatprep.subr.bf16.mxu0 0
    %3626 = vmatpush1.bf16.msra.mxu0 %v2863
    %3627 = vmatprep.subr.bf16.mxu0 0
    %3628 = vmatpush1.bf16.msra.mxu0 %v2864
    %3629 = vmatprep.subr.bf16.mxu0 0
    %3630 = vmatpush1.bf16.msra.mxu0 %v2865
    %3631 = vmatprep.subr.bf16.mxu0 0
    %3632 = vmatpush1.bf16.msra.mxu0 %v2866
    %3633 = vmatprep.subr.bf16.mxu0 0
    %3634 = vmatpush1.bf16.msra.mxu0 %v2867
    %3635 = vmatprep.subr.bf16.mxu0 0
    %3636 = vmatpush1.bf16.msra.mxu0 %v2868
    %3637 = vmatprep.mubr.bf16.mxu0 %v1139
    %3638 = vmatmul.mubr.bf16.gmra.mrb[0].mxu0 %v1138
    %v3639 = vpop.f32.mrb[0].mxu0
    %v3640 = vadd.f32 %v3600, %v3639
    %v3641 = vpop.f32.mrb[0].mxu0
    %v3642 = vpop.f32.mrb[0].mxu0
    %v3643 = vpop.f32.mrb[0].mxu0
    %3644 = vdwg.mxu0
    %3645 = vmatprep.subr.bf16.mxu0 0
    %3646 = vmatpush1.bf16.msra.mxu0 %v2869
    %3647 = vmatprep.subr.bf16.mxu0 0
    %3648 = vmatpush1.bf16.msra.mxu0 %v2870
    %3649 = vmatprep.subr.bf16.mxu0 0
    %3650 = vmatpush1.bf16.msra.mxu0 %v2871
    %3651 = vmatprep.subr.bf16.mxu0 0
    %3652 = vmatpush1.bf16.msra.mxu0 %v2872
    %3653 = vmatprep.subr.bf16.mxu0 0
    %3654 = vmatpush1.bf16.msra.mxu0 %v2873
    %3655 = vmatprep.subr.bf16.mxu0 0
    %3656 = vmatpush1.bf16.msra.mxu0 %v2874
    %3657 = vmatprep.subr.bf16.mxu0 0
    %3658 = vmatpush1.bf16.msra.mxu0 %v2875
    %3659 = vmatprep.subr.bf16.mxu0 0
    %3660 = vmatpush1.bf16.msra.mxu0 %v2876
    %3661 = vmatprep.subr.bf16.mxu0 0
    %3662 = vmatpush1.bf16.msra.mxu0 %v2877
    %3663 = vmatprep.subr.bf16.mxu0 0
    %3664 = vmatpush1.bf16.msra.mxu0 %v2878
    %3665 = vmatprep.subr.bf16.mxu0 0
    %3666 = vmatpush1.bf16.msra.mxu0 %v2879
    %3667 = vmatprep.subr.bf16.mxu0 0
    %3668 = vmatpush1.bf16.msra.mxu0 %v2880
    %3669 = vmatprep.subr.bf16.mxu0 0
    %3670 = vmatpush1.bf16.msra.mxu0 %v2881
    %3671 = vmatprep.subr.bf16.mxu0 0
    %3672 = vmatpush1.bf16.msra.mxu0 %v2882
    %3673 = vmatprep.subr.bf16.mxu0 0
    %3674 = vmatpush1.bf16.msra.mxu0 %v2883
    %3675 = vmatprep.subr.bf16.mxu0 0
    %3676 = vmatpush1.bf16.msra.mxu0 %v2884
    %3677 = vmatprep.mubr.bf16.mxu0 %v1141
    %3678 = vmatmul.mubr.bf16.gmra.mrb[0].mxu0 %v1140
    %v3679 = vpop.f32.mrb[0].mxu0
    %v3680 = vadd.f32 %v3640, %v3679
    %v3681 = vpop.f32.mrb[0].mxu0
    %v3682 = vpop.f32.mrb[0].mxu0
    %v3683 = vpop.f32.mrb[0].mxu0
    %3684 = vdwg.mxu0
    %3685 = vmatprep.subr.bf16.mxu0 0
    %3686 = vmatpush1.bf16.msra.mxu0 %v2885
    %3687 = vmatprep.subr.bf16.mxu0 0
    %3688 = vmatpush1.bf16.msra.mxu0 %v2886
    %3689 = vmatprep.subr.bf16.mxu0 0
    %3690 = vmatpush1.bf16.msra.mxu0 %v2887
    %3691 = vmatprep.subr.bf16.mxu0 0
    %3692 = vmatpush1.bf16.msra.mxu0 %v2888
    %3693 = vmatprep.subr.bf16.mxu0 0
    %3694 = vmatpush1.bf16.msra.mxu0 %v2889
    %3695 = vmatprep.subr.bf16.mxu0 0
    %3696 = vmatpush1.bf16.msra.mxu0 %v2890
    %3697 = vmatprep.subr.bf16.mxu0 0
    %3698 = vmatpush1.bf16.msra.mxu0 %v2891
    %3699 = vmatprep.subr.bf16.mxu0 0
    %3700 = vmatpush1.bf16.msra.mxu0 %v2892
    %3701 = vmatprep.subr.bf16.mxu0 0
    %3702 = vmatpush1.bf16.msra.mxu0 %v2893
    %3703 = vmatprep.subr.bf16.mxu0 0
    %3704 = vmatpush1.bf16.msra.mxu0 %v2894
    %3705 = vmatprep.subr.bf16.mxu0 0
    %3706 = vmatpush1.bf16.msra.mxu0 %v2895
    %3707 = vmatprep.subr.bf16.mxu0 0
    %3708 = vmatpush1.bf16.msra.mxu0 %v2896
    %3709 = vmatprep.subr.bf16.mxu0 0
    %3710 = vmatpush1.bf16.msra.mxu0 %v2897
    %3711 = vmatprep.subr.bf16.mxu0 0
    %3712 = vmatpush1.bf16.msra.mxu0 %v2898
    %3713 = vmatprep.subr.bf16.mxu0 0
    %3714 = vmatpush1.bf16.msra.mxu0 %v2899
    %3715 = vmatprep.subr.bf16.mxu0 0
    %3716 = vmatpush1.bf16.msra.mxu0 %v2900
    %3717 = vmatprep.mubr.bf16.mxu0 %v1143
    %3718 = vmatmul.mubr.bf16.gmra.mrb[0].mxu0 %v1142
    %v3719 = vpop.f32.mrb[0].mxu0
    %v3720 = vadd.f32 %v3680, %v3719
    %v3721 = vpop.f32.mrb[0].mxu0
    %v3722 = vpop.f32.mrb[0].mxu0
    %v3723 = vpop.f32.mrb[0].mxu0
    %3724 = vdwg.mxu0
    %3725 = vmatprep.subr.bf16.mxu0 0
    %3726 = vmatpush1.bf16.msra.mxu0 %v2901
    %3727 = vmatprep.subr.bf16.mxu0 0
    %3728 = vmatpush1.bf16.msra.mxu0 %v2902
    %3729 = vmatprep.subr.bf16.mxu0 0
    %3730 = vmatpush1.bf16.msra.mxu0 %v2903
    %3731 = vmatprep.subr.bf16.mxu0 0
    %3732 = vmatpush1.bf16.msra.mxu0 %v2904
    %3733 = vmatprep.subr.bf16.mxu0 0
    %3734 = vmatpush1.bf16.msra.mxu0 %v2905
    %3735 = vmatprep.subr.bf16.mxu0 0
    %3736 = vmatpush1.bf16.msra.mxu0 %v2906
    %3737 = vmatprep.subr.bf16.mxu0 0
    %3738 = vmatpush1.bf16.msra.mxu0 %v2907
    %3739 = vmatprep.subr.bf16.mxu0 0
    %3740 = vmatpush1.bf16.msra.mxu0 %v2908
    %3741 = vmatprep.subr.bf16.mxu0 0
    %3742 = vmatpush1.bf16.msra.mxu0 %v2909
    %3743 = vmatprep.subr.bf16.mxu0 0
    %3744 = vmatpush1.bf16.msra.mxu0 %v2910
    %3745 = vmatprep.subr.bf16.mxu0 0
    %3746 = vmatpush1.bf16.msra.mxu0 %v2911
    %3747 = vmatprep.subr.bf16.mxu0 0
    %3748 = vmatpush1.bf16.msra.mxu0 %v2912
    %3749 = vmatprep.subr.bf16.mxu0 0
    %3750 = vmatpush1.bf16.msra.mxu0 %v2913
    %3751 = vmatprep.subr.bf16.mxu0 0
    %3752 = vmatpush1.bf16.msra.mxu0 %v2914
    %3753 = vmatprep.subr.bf16.mxu0 0
    %3754 = vmatpush1.bf16.msra.mxu0 %v2915
    %3755 = vmatprep.subr.bf16.mxu0 0
    %3756 = vmatpush1.bf16.msra.mxu0 %v2916
    %3757 = vmatprep.mubr.bf16.mxu0 %v1145
    %3758 = vmatmul.mubr.bf16.gmra.mrb[0].mxu0 %v1144
    %v3759 = vpop.f32.mrb[0].mxu0
    %v3760 = vadd.f32 %v3720, %v3759
    %v3761 = vpop.f32.mrb[0].mxu0
    %v3762 = vpop.f32.mrb[0].mxu0
    %v3763 = vpop.f32.mrb[0].mxu0
    %3764 = vdwg.mxu0
    %3765 = vmatprep.subr.bf16.mxu0 0
    %3766 = vmatpush1.bf16.msra.mxu0 %v2917
    %3767 = vmatprep.subr.bf16.mxu0 0
    %3768 = vmatpush1.bf16.msra.mxu0 %v2918
    %3769 = vmatprep.subr.bf16.mxu0 0
    %3770 = vmatpush1.bf16.msra.mxu0 %v2919
    %3771 = vmatprep.subr.bf16.mxu0 0
    %3772 = vmatpush1.bf16.msra.mxu0 %v2920
    %3773 = vmatprep.subr.bf16.mxu0 0
    %3774 = vmatpush1.bf16.msra.mxu0 %v2921
    %3775 = vmatprep.subr.bf16.mxu0 0
    %3776 = vmatpush1.bf16.msra.mxu0 %v2922
    %3777 = vmatprep.subr.bf16.mxu0 0
    %3778 = vmatpush1.bf16.msra.mxu0 %v2923
    %3779 = vmatprep.subr.bf16.mxu0 0
    %3780 = vmatpush1.bf16.msra.mxu0 %v2924
    %3781 = vmatprep.subr.bf16.mxu0 0
    %3782 = vmatpush1.bf16.msra.mxu0 %v2925
    %3783 = vmatprep.subr.bf16.mxu0 0
    %3784 = vmatpush1.bf16.msra.mxu0 %v2926
    %3785 = vmatprep.subr.bf16.mxu0 0
    %3786 = vmatpush1.bf16.msra.mxu0 %v2927
    %3787 = vmatprep.subr.bf16.mxu0 0
    %3788 = vmatpush1.bf16.msra.mxu0 %v2928
    %3789 = vmatprep.subr.bf16.mxu0 0
    %3790 = vmatpush1.bf16.msra.mxu0 %v2929
    %3791 = vmatprep.subr.bf16.mxu0 0
    %3792 = vmatpush1.bf16.msra.mxu0 %v2930
    %3793 = vmatprep.subr.bf16.mxu0 0
    %3794 = vmatpush1.bf16.msra.mxu0 %v2931
    %3795 = vmatprep.subr.bf16.mxu0 0
    %3796 = vmatpush1.bf16.msra.mxu0 %v2932
    %3797 = vmatprep.mubr.bf16.mxu0 %v1147
    %3798 = vmatmul.mubr.bf16.gmra.mrb[0].mxu0 %v1146
    %v3799 = vpop.f32.mrb[0].mxu0
    %v3800 = vadd.f32 %v3760, %v3799
    %v3801 = vpop.f32.mrb[0].mxu0
    %v3802 = vpop.f32.mrb[0].mxu0
    %v3803 = vpop.f32.mrb[0].mxu0
    %3804 = vdwg.mxu0
    %3805 = vmatprep.subr.bf16.mxu0 0
    %3806 = vmatpush1.bf16.msra.mxu0 %v2933
    %3807 = vmatprep.subr.bf16.mxu0 0
    %3808 = vmatpush1.bf16.msra.mxu0 %v2934
    %3809 = vmatprep.subr.bf16.mxu0 0
    %3810 = vmatpush1.bf16.msra.mxu0 %v2935
    %3811 = vmatprep.subr.bf16.mxu0 0
    %3812 = vmatpush1.bf16.msra.mxu0 %v2936
    %3813 = vmatprep.subr.bf16.mxu0 0
    %3814 = vmatpush1.bf16.msra.mxu0 %v2937
    %3815 = vmatprep.subr.bf16.mxu0 0
    %3816 = vmatpush1.bf16.msra.mxu0 %v2938
    %3817 = vmatprep.subr.bf16.mxu0 0
    %3818 = vmatpush1.bf16.msra.mxu0 %v2939
    %3819 = vmatprep.subr.bf16.mxu0 0
    %3820 = vmatpush1.bf16.msra.mxu0 %v2940
    %3821 = vmatprep.subr.bf16.mxu0 0
    %3822 = vmatpush1.bf16.msra.mxu0 %v2941
    %3823 = vmatprep.subr.bf16.mxu0 0
    %3824 = vmatpush1.bf16.msra.mxu0 %v2942
    %3825 = vmatprep.subr.bf16.mxu0 0
    %3826 = vmatpush1.bf16.msra.mxu0 %v2943
    %3827 = vmatprep.subr.bf16.mxu0 0
    %3828 = vmatpush1.bf16.msra.mxu0 %v2944
    %3829 = vmatprep.subr.bf16.mxu0 0
    %3830 = vmatpush1.bf16.msra.mxu0 %v2945
    %3831 = vmatprep.subr.bf16.mxu0 0
    %3832 = vmatpush1.bf16.msra.mxu0 %v2946
    %3833 = vmatprep.subr.bf16.mxu0 0
    %3834 = vmatpush1.bf16.msra.mxu0 %v2947
    %3835 = vmatprep.subr.bf16.mxu0 0
    %3836 = vmatpush1.bf16.msra.mxu0 %v2948
    %3837 = vmatprep.mubr.bf16.mxu0 %v1149
    %3838 = vmatmul.mubr.bf16.gmra.mrb[0].mxu0 %v1148
    %v3839 = vpop.f32.mrb[0].mxu0
    %v3840 = vadd.f32 %v3800, %v3839
    %v3841 = vpop.f32.mrb[0].mxu0
    %v3842 = vpop.f32.mrb[0].mxu0
    %v3843 = vpop.f32.mrb[0].mxu0
    %3844 = vdwg.mxu0
    %v3845 = vmax.f32 %v3840, 0.0
    %v3846 = vld [vmem:[%s5] sm:$0xff]
    %v3847 = vld [vmem:[%s5 + $0x8] sm:$0xff]
    %v3848 = vld [vmem:[%s5 + $0x10] sm:$0xff]
    %v3849 = vld [vmem:[%s5 + $0x18] sm:$0xff]
    %v3850 = vld [vmem:[%s5 + $0x20] sm:$0xff]
    %v3851 = vld [vmem:[%s5 + $0x28] sm:$0xff]
    %v3852 = vld [vmem:[%s5 + $0x30] sm:$0xff]
    %v3853 = vld [vmem:[%s5 + $0x38] sm:$0xff]
    %v3854 = vld [vmem:[%s5 + $0x40] sm:$0xff]
    %v3855 = vld [vmem:[%s5 + $0x48] sm:$0xff]
    %v3856 = vld [vmem:[%s5 + $0x50] sm:$0xff]
    %v3857 = vld [vmem:[%s5 + $0x58] sm:$0xff]
    %v3858 = vld [vmem:[%s5 + $0x60] sm:$0xff]
    %v3859 = vld [vmem:[%s5 + $0x68] sm:$0xff]
    %v3860 = vld [vmem:[%s5 + $0x70] sm:$0xff]
    %v3861 = vld [vmem:[%s5 + $0x78] sm:$0xff]
    %v3862 = vld [vmem:[%s6] sm:$0x1]
    %v3864 = vlaneseq
    %v3865 = vshrl.u32 %v3864, 7
    %v3866 = vsub.s32 0, %v3865
    %v3867 = vrot.slane %v3862, %v3866
    %3869 = vmatprep.subr.mxu0 0.0
    %3870 = vmatpush1.msra.mxu0 %v3846
    %3871 = vmatprep.subr.mxu0 0.0
    %3872 = vmatpush1.msra.mxu0 %v3847
    %3873 = vmatprep.subr.mxu0 0.0
    %3874 = vmatpush1.msra.mxu0 %v3848
    %3875 = vmatprep.subr.mxu0 0.0
    %3876 = vmatpush1.msra.mxu0 %v3849
    %3877 = vmatprep.subr.mxu0 0.0
    %3878 = vmatpush1.msra.mxu0 %v3850
    %3879 = vmatprep.subr.mxu0 0.0
    %3880 = vmatpush1.msra.mxu0 %v3851
    %3881 = vmatprep.subr.mxu0 0.0
    %3882 = vmatpush1.msra.mxu0 %v3852
    %3883 = vmatprep.subr.mxu0 0.0
    %3884 = vmatpush1.msra.mxu0 %v3853
    %3885 = vmatprep.subr.mxu0 0.0
    %3886 = vmatpush1.msra.mxu0 %v3854
    %3887 = vmatprep.subr.mxu0 0.0
    %3888 = vmatpush1.msra.mxu0 %v3855
    %3889 = vmatprep.subr.mxu0 0.0
    %3890 = vmatpush1.msra.mxu0 %v3856
    %3891 = vmatprep.subr.mxu0 0.0
    %3892 = vmatpush1.msra.mxu0 %v3857
    %3893 = vmatprep.subr.mxu0 0.0
    %3894 = vmatpush1.msra.mxu0 %v3858
    %3895 = vmatprep.subr.mxu0 0.0
    %3896 = vmatpush1.msra.mxu0 %v3859
    %3897 = vmatprep.subr.mxu0 0.0
    %3898 = vmatpush1.msra.mxu0 %v3860
    %3899 = vmatprep.subr.mxu0 0.0
    %3900 = vmatpush1.msra.mxu0 %v3861
    %3901 = vmatprep.subr.mxu0 0.0
    %3902 = vmatpush1.msra.mxu0 0.0
    %3903 = vmatprep.subr.mxu0 0.0
    %3904 = vmatpush1.msra.mxu0 0.0
    %3905 = vmatprep.subr.mxu0 0.0
    %3906 = vmatpush1.msra.mxu0 0.0
    %3907 = vmatprep.subr.mxu0 0.0
    %3908 = vmatpush1.msra.mxu0 0.0
    %3909 = vmatprep.subr.mxu0 0.0
    %3910 = vmatpush1.msra.mxu0 0.0
    %3911 = vmatprep.subr.mxu0 0.0
    %3912 = vmatpush1.msra.mxu0 0.0
    %3913 = vmatprep.subr.mxu0 0.0
    %3914 = vmatpush1.msra.mxu0 0.0
    %3915 = vmatprep.subr.mxu0 0.0
    %3916 = vmatpush1.msra.mxu0 0.0
    %3917 = vmatprep.subr.mxu0 0.0
    %3918 = vmatpush1.msra.mxu0 0.0
    %3919 = vmatprep.subr.mxu0 0.0
    %3920 = vmatpush1.msra.mxu0 0.0
    %3921 = vmatprep.subr.mxu0 0.0
    %3922 = vmatpush1.msra.mxu0 0.0
    %3923 = vmatprep.subr.mxu0 0.0
    %3924 = vmatpush1.msra.mxu0 0.0
    %3925 = vmatprep.subr.mxu0 0.0
    %3926 = vmatpush1.msra.mxu0 0.0
    %3927 = vmatprep.subr.mxu0 0.0
    %3928 = vmatpush1.msra.mxu0 0.0
    %3929 = vmatprep.subr.mxu0 0.0
    %3930 = vmatpush1.msra.mxu0 0.0
    %3931 = vmatprep.subr.mxu0 0.0
    %3932 = vmatpush1.msra.mxu0 0.0
    %3933 = vmatprep.mubr.f32.mxu0 0.0
    %3934 = vmatmul.mubr.f32.gmra.mrb[0].mxu0 %v3845
    %v3935 = vpop.f32.mrb[0].mxu0
    %v3936 = vadd.f32 %v3867, %v3935
    %v3937 = vpop.f32.mrb[0].mxu0
    %3938 = vdwg.mxu0
    %3939 = vst [vmem:[#allocation3] sm:$0x3] %v3936
    // Predicated region
    $region30: #{policy_network_forward.1} parent=1 // pred_check
      _
    $region31: #{policy_network_forward.1} parent=1 // pred_check_branch
      %3941 = sbr.rel (0) target = $region33
    $region32: #{policy_network_forward.1} parent=1 // pred_region
      %s3943 = ssub.s32 32, 32
      %3944 = vsyncadd [#allocation4], %s3943
      %s3946 = sshll.u32 [#allocation3], 4
      %s3947 = int_to_ptr.vmem [resolvable:$true] %s3946
      %3949 = dma.vmem_to_hbm [thread:$0]  %s3947, 32, %s7, [#allocation4]
    $region33: #{policy_network_forward.1} parent=1 // pred_fallthru
      _
    // Predicated region
    $region34: #{policy_network_forward.1} parent=1 // pred_check
      _
    $region35: #{policy_network_forward.1} parent=1 // pred_check_branch
      %3951 = sbr.rel (0) target = $region37
    $region36: #{policy_network_forward.1} parent=1 // pred_region
      %3952 = dma.done [#allocation4], 32
    $region37: #{policy_network_forward.1} parent=1 // pred_fallthru
      _
    %3953 = vsyncpa [#allocation4], 1

</llo_original>
